<compile_context>
chip_gen: v5e
topology: v5e:2x2
jax: 0.10.0
libtpu: 0.0.40
codegen_flags: <defaults>
</compile_context>

<pallas_src>
import functools

import jax
import jax.numpy as jnp
from jax.experimental import pallas as pl
from jax.experimental.pallas import tpu as pltpu


LANE = 128                                 # lane width (pad feature dims to this)
_RESIDENT_SUPPORT_BYTES = 12 * 1024 * 1024  # keep support resident in VMEM below this


def _round_up(n, m):
    return ((n + m - 1) // m) * m


def _vmem_limit_bytes():
    """Per-generation scoped-VMEM budget (v7x: 64 MiB physical; v5e/v6e: 128)."""
    try:
        kind = jax.devices()[0].device_kind.lower()
    except Exception:
        return 32 * 1024 * 1024
    if "v7" in kind or "tpu7" in kind:
        return 44 * 1024 * 1024
    if "tpu" in kind:
        return 64 * 1024 * 1024
    return 32 * 1024 * 1024   # CPU interpret / unknown: value is ignored anyway


def _choose_tiles(n):
    """Row/contraction tiles for the adj matmul; n_pad is a multiple of both.
    Prefer 512 tiles (better HBM-roofline fraction) but keep >= 2 row tiles so
    v7x's two TensorCores both get work."""
    n_pad = _round_up(max(n, 8), 256)
    tm = 512 if (n_pad % 512 == 0 and n_pad // 512 >= 2) else 256
    tk = 512 if n_pad % 512 == 0 else 256
    return n_pad, tm, tk


# ----------------------------------------------------------------------------
# Kernel 1: support = pairnorm_relu(x) @ W   (PairNorm+ReLU fused as a prologue;
#           identity prologue for the first layer).  Row-tiled, W resident.
# ----------------------------------------------------------------------------
def _support_kernel(x_ref, cm_ref, gm_ref, w_ref, o_ref, *, apply_pn, mode, scale,
                    compute_dtype):
    if apply_pn:
        # VPU math in f32 (v5e has no bf16 VPU); padded feature lanes of x and
        # col_mean are exactly 0, so per-row sums only see valid lanes.
        x = x_ref[...].astype(jnp.float32)
        if mode == 'PN':
            x = (x - cm_ref[...]) * gm_ref[...]
        elif mode == 'PN-SI':
            xc = x - cm_ref[...]
            rs = jnp.sum(xc * xc, axis=1, keepdims=True)
            x = xc * (scale * jax.lax.rsqrt(1e-06 + rs))
        elif mode == 'PN-SCS':
            rs = jnp.sum(x * x, axis=1, keepdims=True)
            x = x * (scale * jax.lax.rsqrt(1e-06 + rs)) - cm_ref[...]
        # mode == 'None': PairNorm is the identity.
        x = jnp.maximum(x, 0.0).astype(compute_dtype)
    else:
        x = x_ref[...].astype(compute_dtype)
    o_ref[...] = jnp.dot(x, w_ref[...],
                         preferred_element_type=jnp.float32).astype(o_ref.dtype)


def gcn_support(x, col_mean, gmul, w_cd, *, apply_pn, mode, scale,
                compute_dtype, tm):
    n_pad, f_in_p = x.shape
    f_out_p = w_cd.shape[1]
    gi = n_pad // tm
    return pl.pallas_call(
        functools.partial(_support_kernel, apply_pn=apply_pn, mode=mode,
                          scale=scale, compute_dtype=compute_dtype),
        out_shape=jax.ShapeDtypeStruct((n_pad, f_out_p), compute_dtype),
        grid=(gi,),
        in_specs=[pl.BlockSpec((tm, f_in_p), lambda i: (i, 0)),
                  pl.BlockSpec((1, f_in_p), lambda i: (0, 0)),
                  pl.BlockSpec((1, f_in_p), lambda i: (0, 0)),
                  pl.BlockSpec((f_in_p, f_out_p), lambda i: (0, 0))],
        out_specs=pl.BlockSpec((tm, f_out_p), lambda i: (i, 0)),
        compiler_params=pltpu.CompilerParams(
            dimension_semantics=("parallel",),
            vmem_limit_bytes=_vmem_limit_bytes()),
    )(x, col_mean, gmul, w_cd)


# ----------------------------------------------------------------------------
# Kernel 2 (hidden layers): out = adj @ support + b, fused statistics epilogue.
#   grid = (row tiles, k tiles); f32 VMEM accumulator; support resident in VMEM
#   when it fits.  On the last k step: write the activation (compute dtype) and
#   per-row-tile column sums + sums-of-squares with padded rows masked out, so
#   PairNorm needs no extra pass over x.
# ----------------------------------------------------------------------------
def _gcn_hidden_kernel(adj_ref, sup_ref, b_ref, o_ref, stats_ref, acc_ref, *,
                       n_valid, tk, resident_support):
    # All program_id / num_programs reads stay at the kernel top level
    # (calling them inside pl.when bodies breaks interpret-mode lowering).
    i = pl.program_id(0)
    k = pl.program_id(1)
    k_last = pl.num_programs(1) - 1

    @pl.when(k == 0)
    def _():
        acc_ref[...] = jnp.zeros_like(acc_ref)

    if resident_support:
        sup = sup_ref[pl.ds(k * tk, tk), :]   # support loaded into VMEM once
    else:
        sup = sup_ref[...]                     # streamed (TK, fp) fallback
    acc_ref[...] += jnp.dot(adj_ref[...], sup, preferred_element_type=jnp.float32)

    @pl.when(k == k_last)
    def _():
        out = acc_ref[...] + b_ref[...]
        o_ref[...] = out.astype(o_ref.dtype)
        tm, fp = out.shape
        # Mask padded node rows out of the statistics.
        row_ids = jax.lax.broadcasted_iota(jnp.int32, (tm, fp), 0) + i * tm
        masked = jnp.where(row_ids < n_valid, out, 0.0)
        colsum = jnp.sum(masked, axis=0, keepdims=True)          # (1, fp)
        sqsum = jnp.sum(masked * masked, axis=0, keepdims=True)  # (1, fp)
        # Pack [colsum; sqsum; 0...] into an (8, fp) lane-dense stats slab.
        sel = jax.lax.broadcasted_iota(jnp.int32, (8, fp), 0)
        stats_ref[...] = (jnp.where(sel == 0, colsum, 0.0)
                          + jnp.where(sel == 1, sqsum, 0.0))


def gcn_layer_hidden(adj_cd, support, bias, *, n_valid, tm, tk, out_dtype):
    n_pad = adj_cd.shape[0]
    fp = support.shape[1]
    gi, gk = n_pad // tm, n_pad // tk
    resident = (support.size * support.dtype.itemsize) <= _RESIDENT_SUPPORT_BYTES
    sup_spec = (pl.BlockSpec((n_pad, fp), lambda i, k: (0, 0)) if resident
                else pl.BlockSpec((tk, fp), lambda i, k: (k, 0)))
    out, stats = pl.pallas_call(
        functools.partial(_gcn_hidden_kernel, n_valid=n_valid, tk=tk,
                          resident_support=resident),
        out_shape=(jax.ShapeDtypeStruct((n_pad, fp), out_dtype),
                   jax.ShapeDtypeStruct((gi * 8, fp), jnp.float32)),
        grid=(gi, gk),
        in_specs=[pl.BlockSpec((tm, tk), lambda i, k: (i, k)),
                  sup_spec,
                  pl.BlockSpec((1, fp), lambda i, k: (0, 0))],
        out_specs=(pl.BlockSpec((tm, fp), lambda i, k: (i, 0)),
                   pl.BlockSpec((8, fp), lambda i, k: (i, 0))),
        scratch_shapes=[pltpu.VMEM((tm, fp), jnp.float32)],
        compiler_params=pltpu.CompilerParams(
            dimension_semantics=("parallel", "arbitrary"),
            vmem_limit_bytes=_vmem_limit_bytes()),
    )(adj_cd, support, bias)
    return out, stats


# ----------------------------------------------------------------------------
# Kernel 3 (final layer): out = log_softmax(adj @ support + b) — the row-local
# log_softmax (padded class lanes masked to -inf) is fused into the last-k
# epilogue, eliminating a separate memory-bound pass.
# ----------------------------------------------------------------------------
def _gcn_final_kernel(adj_ref, sup_ref, b_ref, o_ref, acc_ref, *,
                      n_class, tk, resident_support):
    k = pl.program_id(1)
    k_last = pl.num_programs(1) - 1

    @pl.when(k == 0)
    def _():
        acc_ref[...] = jnp.zeros_like(acc_ref)

    if resident_support:
        sup = sup_ref[pl.ds(k * tk, tk), :]
    else:
        sup = sup_ref[...]
    acc_ref[...] += jnp.dot(adj_ref[...], sup, preferred_element_type=jnp.float32)

    @pl.when(k == k_last)
    def _():
        out = acc_ref[...] + b_ref[...]
        lane = jax.lax.broadcasted_iota(jnp.int32, out.shape, 1)
        xm = jnp.where(lane < n_class, out, -jnp.inf)
        m = jnp.max(xm, axis=1, keepdims=True)
        s = xm - m
        denom = jnp.sum(jnp.where(lane < n_class, jnp.exp(s), 0.0),
                        axis=1, keepdims=True)
        o_ref[...] = s - jnp.log(denom)


def gcn_layer_final(adj_cd, support, bias, *, n_class, tm, tk):
    n_pad = adj_cd.shape[0]
    fp = support.shape[1]
    gi, gk = n_pad // tm, n_pad // tk
    resident = (support.size * support.dtype.itemsize) <= _RESIDENT_SUPPORT_BYTES
    sup_spec = (pl.BlockSpec((n_pad, fp), lambda i, k: (0, 0)) if resident
                else pl.BlockSpec((tk, fp), lambda i, k: (k, 0)))
    return pl.pallas_call(
        functools.partial(_gcn_final_kernel, n_class=n_class, tk=tk,
                          resident_support=resident),
        out_shape=jax.ShapeDtypeStruct((n_pad, fp), jnp.float32),
        grid=(gi, gk),
        in_specs=[pl.BlockSpec((tm, tk), lambda i, k: (i, k)),
                  sup_spec,
                  pl.BlockSpec((1, fp), lambda i, k: (0, 0))],
        out_specs=pl.BlockSpec((tm, fp), lambda i, k: (i, 0)),
        scratch_shapes=[pltpu.VMEM((tm, fp), jnp.float32)],
        compiler_params=pltpu.CompilerParams(
            dimension_semantics=("parallel", "arbitrary"),
            vmem_limit_bytes=_vmem_limit_bytes()),
    )(adj_cd, support, bias)


# ----------------------------------------------------------------------------
# Parameter init (mirrors GraphConvolution.reset_parameters: U(-stdv, stdv),
# stdv = 1/sqrt(d_out)) and one-time padding / casting helpers.
# ----------------------------------------------------------------------------
def init_params(key, n_layer, n_feature, n_hidden, n_class):
    params = []
    for i in range(n_layer):
        d_in = n_feature if i == 0 else n_hidden
        d_out = n_class if i == n_layer - 1 else n_hidden
        key, kw, kb = jax.random.split(key, 3)
        stdv = 1.0 / (d_out ** 0.5)
        w = jax.random.uniform(kw, (d_in, d_out), jnp.float32, -stdv, stdv)
        b = jax.random.uniform(kb, (1, d_out), jnp.float32, -stdv, stdv)
        params.append((w, b))
    return params


def prepare_params(params, compute_dtype):
    """Zero-pad W/b to lane-dense shapes and cast W once (hoisted out of forward).
    Zero-padded W/b columns keep padded activation lanes exactly 0 — an invariant
    the fused PairNorm row-sums rely on."""
    out = []
    for w, b in params:
        d_in, d_out = w.shape
        d_in_p, d_out_p = _round_up(d_in, LANE), _round_up(d_out, LANE)
        w_cd = jnp.pad(w, ((0, d_in_p - d_in),
                           (0, d_out_p - d_out))).astype(compute_dtype)
        b_p = jnp.pad(b, ((0, 0), (0, d_out_p - d_out))).astype(jnp.float32)
        out.append((w_cd, b_p))
    return out


def prepare_inputs(feature, adj, compute_dtype):
    """Pad feature/adj once and cast to the MXU compute dtype (hoisted out of
    the per-call forward so the big adj cast isn't paid every step)."""
    n, f_in = feature.shape
    n_pad, _, _ = _choose_tiles(n)
    f_in_p = _round_up(f_in, LANE)
    feature_p = jnp.pad(feature.astype(jnp.float32),
                        ((0, n_pad - n), (0, f_in_p - f_in))).astype(compute_dtype)
    adj_cd = jnp.pad(adj.astype(jnp.float32),
                     ((0, n_pad - n), (0, n_pad - n))).astype(compute_dtype)
    return feature_p, adj_cd


# ----------------------------------------------------------------------------
# Forward pass (inference mode).  Only the tiny cross-tile reductions over the
# per-tile stats slabs run in plain JAX.
# ----------------------------------------------------------------------------
def pairnorm_forward(params_padded, feature_p, adj_cd, *, n_valid, n_class,
                     scale, mode, compute_dtype=jnp.bfloat16):
    n_pad = adj_cd.shape[0]
    _, tm, tk = _choose_tiles(n_pad)
    gi = n_pad // tm
    n_layer = len(params_padded)

    x = feature_p
    col_mean = jnp.zeros((1, x.shape[1]), jnp.float32)
    gmul = jnp.ones((1, x.shape[1]), jnp.float32)

    for i, (w_cd, b_p) in enumerate(params_padded):
        # F.dropout(training=False) is the identity (inference semantics).
        # For i>0 the previous layer's PairNorm+ReLU is applied in the prologue.
        support = gcn_support(x, col_mean, gmul, w_cd,
                              apply_pn=(i > 0), mode=mode, scale=scale,
                              compute_dtype=compute_dtype, tm=tm)
        if i < n_layer - 1:
            x, stats = gcn_layer_hidden(adj_cd, support, b_p,
                                        n_valid=n_valid, tm=tm, tk=tk,
                                        out_dtype=compute_dtype)
            fp = x.shape[1]
            stats = stats.reshape(gi, 8, fp)
            colsum = jnp.sum(stats[:, 0, :], axis=0)             # (fp,)
            col_mean = (colsum / n_valid)[None, :].astype(jnp.float32)
            if mode == 'PN':
                # sum_rows ||x - mean||^2 = sum(x^2) - N * ||mean||^2
                # (single-pass formula; clamped at 0 to guard cancellation).
                sqsum_total = jnp.sum(stats[:, 1, :])
                tot_c = jnp.maximum(
                    sqsum_total - n_valid * jnp.sum(col_mean * col_mean), 0.0)
                gval = scale * jax.lax.rsqrt(1e-06 + tot_c / n_valid)
                gmul = jnp.ones((1, fp), jnp.float32) * gval
            else:
                gmul = jnp.ones((1, fp), jnp.float32)
        else:
            logp = gcn_layer_final(adj_cd, support, b_p,
                                   n_class=n_class, tm=tm, tk=tk)
            return logp[:n_valid, :n_class]


# ----------------------------------------------------------------------------
# Pure-JAX reference (f32, highest matmul precision)
# ----------------------------------------------------------------------------
def _dot_hi(a, b):
    return jnp.dot(a, b, precision=jax.lax.Precision.HIGHEST)


def reference_forward(params, feature, adj, *, scale, mode):
    x = feature
    n_layer = len(params)
    for i, (w, b) in enumerate(params):
        x = _dot_hi(adj, _dot_hi(x, w)) + b
        if i < n_layer - 1:
            if mode != 'None':
                col_mean = x.mean(axis=0, keepdims=True)
                if mode == 'PN':
                    x = x - col_mean
                    rnm = jnp.sqrt(1e-06 + (x ** 2).sum(axis=1).mean())
                    x = scale * x / rnm
                elif mode == 'PN-SI':
                    x = x - col_mean
                    rni = jnp.sqrt(1e-06 + (x ** 2).sum(axis=1, keepdims=True))
                    x = scale * x / rni
                elif mode == 'PN-SCS':
                    rni = jnp.sqrt(1e-06 + (x ** 2).sum(axis=1, keepdims=True))
                    x = scale * x / rni - col_mean
            x = jnp.maximum(x, 0.0)
    return jax.nn.log_softmax(x, axis=1)


if __name__ == "__main__":
    # Small config: n_layer=2, n_feature=32, n_hidden=32, n_class=8, N=16 nodes
    n_layer, n_feature, n_hidden, n_class = 2, 32, 32, 8
    n_nodes = 16
    scale = 1.0

    key = jax.random.PRNGKey(0)
    k_param, k_feat, k_adj = jax.random.split(key, 3)

    params = init_params(k_param, n_layer, n_feature, n_hidden, n_class)
    feature = jax.random.normal(k_feat, (n_nodes, n_feature), jnp.float32)

    # Symmetric normalized adjacency with self-loops (typical GCN "Laplacian")
    a = (jax.random.uniform(k_adj, (n_nodes, n_nodes)) > 0.7).astype(jnp.float32)
    a = jnp.maximum(a, a.T) + jnp.eye(n_nodes, dtype=jnp.float32)
    d_inv_sqrt = 1.0 / jnp.sqrt(a.sum(axis=1))
    adj = a * d_inv_sqrt[:, None] * d_inv_sqrt[None, :]

    fwd = jax.jit(pairnorm_forward,
                  static_argnames=("n_valid", "n_class", "scale", "mode",
                                   "compute_dtype"))

    # f32 path: check every PairNorm mode against the pure-JAX reference.
    # (Tolerance covers MXU multi-pass rounding of f32 matmuls on TPU.)
    params_f32 = prepare_params(params, jnp.float32)
    feat_f32, adj_f32 = prepare_inputs(feature, adj, jnp.float32)
    for mode in ("None", "PN", "PN-SI", "PN-SCS"):
        out = jax.block_until_ready(
            fwd(params_f32, feat_f32, adj_f32, n_valid=n_nodes, n_class=n_class,
                scale=scale, mode=mode, compute_dtype=jnp.float32))
        ref = reference_forward(params, feature, adj, scale=scale, mode=mode)
        assert out.shape == (n_nodes, n_class)
        err = float(jnp.max(jnp.abs(out - ref)))
        assert jnp.allclose(out, ref, atol=2e-2, rtol=2e-2), \
            f"f32 mismatch vs reference (mode={mode}, max_err={err})"

    # Default (bf16-matmul, bf16-activation) fast path: sanity check.
    params_bf = prepare_params(params, jnp.bfloat16)
    feat_bf, adj_bf = prepare_inputs(feature, adj, jnp.bfloat16)
    out_bf = jax.block_until_ready(
        fwd(params_bf, feat_bf, adj_bf, n_valid=n_nodes, n_class=n_class,
            scale=scale, mode="PN", compute_dtype=jnp.bfloat16))
    ref = reference_forward(params, feature, adj, scale=scale, mode="PN")
    assert out_bf.shape == (n_nodes, n_class)
    err = float(jnp.max(jnp.abs(out_bf - ref)))
    assert jnp.allclose(out_bf, ref, atol=1e-1, rtol=1e-1), \
        f"bf16 mismatch vs reference (max_err={err})"

    print("KERNEL_OK")
</pallas_src>

<mosaic_0001>
module attributes {stable_mosaic.version = 11 : i64} {
  func.func @_gcn_hidden_kernel(%arg0: i32, %arg1: i32, %arg2: memref<256x256xf32, #tpu.memory_space<vmem>>, %arg3: memref<256x128xf32, #tpu.memory_space<vmem>>, %arg4: memref<1x128xf32, #tpu.memory_space<vmem>>, %arg5: memref<256x128xf32, #tpu.memory_space<vmem>>, %arg6: memref<8x128xf32, #tpu.memory_space<vmem>>, %arg7: memref<256x128xf32, #tpu.memory_space<vmem>>) attributes {dimension_semantics = [#tpu.dimension_semantics<parallel>, #tpu.dimension_semantics<arbitrary>], iteration_bounds = array<i64: 1, 1>, scalar_prefetch = 0 : i64, scratch_operands = 1 : i64, tpu.core_type = #tpu.core_type<tc>, window_params = [{transform_indices = @transform_0, window_bounds = array<i64: 256, 256>}, {pipeline_mode = #tpu.pipeline_mode<synchronous>, transform_indices = @transform_1, window_bounds = array<i64: 256, 128>}, {pipeline_mode = #tpu.pipeline_mode<synchronous>, transform_indices = @transform_2, window_bounds = array<i64: 1, 128>}, {transform_indices = @transform_3, window_bounds = array<i64: 256, 128>}, {transform_indices = @transform_4, window_bounds = array<i64: 8, 128>}]} {
    %c0_i32 = arith.constant 0 : i32
    %0 = arith.cmpi eq, %arg1, %c0_i32 : i32
    %1 = arith.extui %0 : i1 to i32
    %c0_i32_0 = arith.constant 0 : i32
    %2 = arith.cmpi ne, %1, %c0_i32_0 : i32
    scf.if %2 {
      %cst_9 = arith.constant 0.000000e+00 : f32
      %14 = vector.broadcast %cst_9 : f32 to vector<256x128xf32>
      %c0_10 = arith.constant 0 : index
      %c0_11 = arith.constant 0 : index
      %15 = vector.load %arg7[%c0_10, %c0_11] : memref<256x128xf32, #tpu.memory_space<vmem>>, vector<256x128xf32>
      tpu.vector_store %arg7[%c0_10, %c0_11], %14 {strides = array<i32>} : memref<256x128xf32, #tpu.memory_space<vmem>>, vector<256x128xf32>,
    } else {
    }
    %c256_i32 = arith.constant 256 : i32
    %3 = arith.muli %arg1, %c256_i32 : i32
    %4 = arith.index_cast %3 : i32 to index
    %c0 = arith.constant 0 : index
    %5 = vector.load %arg3[%4, %c0] : memref<256x128xf32, #tpu.memory_space<vmem>>, vector<256x128xf32>
    %c0_1 = arith.constant 0 : index
    %c0_2 = arith.constant 0 : index
    %6 = vector.load %arg7[%c0_1, %c0_2] : memref<256x128xf32, #tpu.memory_space<vmem>>, vector<256x128xf32>
    %c0_3 = arith.constant 0 : index
    %c0_4 = arith.constant 0 : index
    %7 = vector.load %arg2[%c0_3, %c0_4] : memref<256x256xf32, #tpu.memory_space<vmem>>, vector<256x256xf32>
    %cst = arith.constant dense<0.000000e+00> : vector<256x128xf32>
    %8 = tpu.matmul %7, %5, %cst {dimension_numbers = #tpu.dot_dimension_numbers<[1], [0], [0], [1], [0, 0, 1, 1], [], []>} : vector<256x256xf32>, vector<256x128xf32>, vector<256x128xf32> -> vector<256x128xf32>
    %9 = arith.addf %6, %8 : vector<256x128xf32>
    %c0_5 = arith.constant 0 : index
    %c0_6 = arith.constant 0 : index
    %10 = vector.load %arg7[%c0_5, %c0_6] : memref<256x128xf32, #tpu.memory_space<vmem>>, vector<256x128xf32>
    tpu.vector_store %arg7[%c0_5, %c0_6], %9 {strides = array<i32>} : memref<256x128xf32, #tpu.memory_space<vmem>>, vector<256x128xf32>,
    %c0_i32_7 = arith.constant 0 : i32
    %11 = arith.cmpi eq, %arg1, %c0_i32_7 : i32
    %12 = arith.extui %11 : i1 to i32
    %c0_i32_8 = arith.constant 0 : i32
    %13 = arith.cmpi ne, %12, %c0_i32_8 : i32
    scf.if %13 {
      %c0_9 = arith.constant 0 : index
      %c0_10 = arith.constant 0 : index
      %14 = vector.load %arg7[%c0_9, %c0_10] : memref<256x128xf32, #tpu.memory_space<vmem>>, vector<256x128xf32>
      %c0_11 = arith.constant 0 : index
      %c0_12 = arith.constant 0 : index
      %15 = vector.load %arg4[%c0_11, %c0_12] : memref<1x128xf32, #tpu.memory_space<vmem>>, vector<1x128xf32>
      %16 = vector.broadcast %15 : vector<1x128xf32> to vector<256x128xf32>
      %17 = arith.addf %14, %16 : vector<256x128xf32>
      %c0_13 = arith.constant 0 : index
      %c0_14 = arith.constant 0 : index
      %18 = vector.load %arg5[%c0_13, %c0_14] : memref<256x128xf32, #tpu.memory_space<vmem>>, vector<256x128xf32>
      tpu.vector_store %arg5[%c0_13, %c0_14], %17 {strides = array<i32>} : memref<256x128xf32, #tpu.memory_space<vmem>>, vector<256x128xf32>,
      %19 = tpu.iota {dimensions = array<i32: 0>} : vector<256x128xi32>
      %c256_i32_15 = arith.constant 256 : i32
      %20 = arith.muli %arg0, %c256_i32_15 : i32
      %21 = vector.broadcast %20 : i32 to vector<256x128xi32>
      %22 = arith.addi %19, %21 : vector<256x128xi32>
      %c16_i32 = arith.constant 16 : i32
      %23 = vector.broadcast %c16_i32 : i32 to vector<256x128xi32>
      %24 = arith.cmpi slt, %22, %23 : vector<256x128xi32>
      %cst_16 = arith.constant 0.000000e+00 : f32
      %25 = vector.broadcast %cst_16 : f32 to vector<256x128xf32>
      %26 = arith.select %24, %17, %25 : vector<256x128xi1>, vector<256x128xf32>
      %cst_17 = arith.constant dense<0.000000e+00> : vector<128xf32>
      %27 = vector.multi_reduction <add>, %26, %cst_17 [0] : vector<256x128xf32> to vector<128xf32>
      %28 = vector.shape_cast %27 : vector<128xf32> to vector<1x128xf32>
      %29 = arith.mulf %26, %26 : vector<256x128xf32>
      %cst_18 = arith.constant dense<0.000000e+00> : vector<128xf32>
      %30 = vector.multi_reduction <add>, %29, %cst_18 [0] : vector<256x128xf32> to vector<128xf32>
      %31 = vector.shape_cast %30 : vector<128xf32> to vector<1x128xf32>
      %32 = tpu.iota {dimensions = array<i32: 0>} : vector<8x128xi32>
      %c0_i32_19 = arith.constant 0 : i32
      %33 = vector.broadcast %c0_i32_19 : i32 to vector<8x128xi32>
      %34 = arith.cmpi eq, %32, %33 : vector<8x128xi32>
      %cst_20 = arith.constant 0.000000e+00 : f32
      %35 = vector.shape_cast %28 : vector<1x128xf32> to vector<1x128xf32>
      %36 = vector.broadcast %35 : vector<1x128xf32> to vector<8x128xf32>
      %37 = vector.broadcast %cst_20 : f32 to vector<8x128xf32>
      %38 = arith.select %34, %36, %37 : vector<8x128xi1>, vector<8x128xf32>
      %c1_i32 = arith.constant 1 : i32
      %39 = vector.broadcast %c1_i32 : i32 to vector<8x128xi32>
      %40 = arith.cmpi eq, %32, %39 : vector<8x128xi32>
      %cst_21 = arith.constant 0.000000e+00 : f32
      %41 = vector.shape_cast %31 : vector<1x128xf32> to vector<1x128xf32>
      %42 = vector.broadcast %41 : vector<1x128xf32> to vector<8x128xf32>
      %43 = vector.broadcast %cst_21 : f32 to vector<8x128xf32>
      %44 = arith.select %40, %42, %43 : vector<8x128xi1>, vector<8x128xf32>
      %45 = arith.addf %38, %44 : vector<8x128xf32>
      %c0_22 = arith.constant 0 : index
      %c0_23 = arith.constant 0 : index
      %46 = vector.load %arg6[%c0_22, %c0_23] : memref<8x128xf32, #tpu.memory_space<vmem>>, vector<8x128xf32>
      tpu.vector_store %arg6[%c0_22, %c0_23], %45 {strides = array<i32>} : memref<8x128xf32, #tpu.memory_space<vmem>>, vector<8x128xf32>,
    } else {
    }
    return
  }
  func.func @transform_0(%arg0: i32, %arg1: i32) -> (i32, i32) {
    %c0_i32 = arith.constant 0 : i32
    return %arg0, %arg1 : i32, i32
  }
  func.func @transform_1(%arg0: i32, %arg1: i32) -> (i32, i32) {
    %c0_i32 = arith.constant 0 : i32
    %c0_i32_0 = arith.constant 0 : i32
    %c0_i32_1 = arith.constant 0 : i32
    return %c0_i32, %c0_i32_0 : i32, i32
  }
  func.func @transform_2(%arg0: i32, %arg1: i32) -> (i32, i32) {
    %c0_i32 = arith.constant 0 : i32
    %c0_i32_0 = arith.constant 0 : i32
    %c0_i32_1 = arith.constant 0 : i32
    return %c0_i32, %c0_i32_0 : i32, i32
  }
  func.func @transform_3(%arg0: i32, %arg1: i32) -> (i32, i32) {
    %c0_i32 = arith.constant 0 : i32
    %c0_i32_0 = arith.constant 0 : i32
    return %arg0, %c0_i32 : i32, i32
  }
  func.func @transform_4(%arg0: i32, %arg1: i32) -> (i32, i32) {
    %c0_i32 = arith.constant 0 : i32
    %c0_i32_0 = arith.constant 0 : i32
    return %arg0, %c0_i32 : i32, i32
  }
}

module attributes {stable_mosaic.version = 11 : i64} {
  func.func @_support_kernel(%arg0: i32, %arg1: memref<256x128xf32, #tpu.memory_space<vmem>>, %arg2: memref<1x128xf32, #tpu.memory_space<vmem>>, %arg3: memref<1x128xf32, #tpu.memory_space<vmem>>, %arg4: memref<128x128xf32, #tpu.memory_space<vmem>>, %arg5: memref<256x128xf32, #tpu.memory_space<vmem>>) attributes {dimension_semantics = [#tpu.dimension_semantics<parallel>], iteration_bounds = array<i64: 1>, scalar_prefetch = 0 : i64, scratch_operands = 0 : i64, tpu.core_type = #tpu.core_type<tc>, window_params = [{transform_indices = @transform_0, window_bounds = array<i64: 256, 128>}, {pipeline_mode = #tpu.pipeline_mode<synchronous>, transform_indices = @transform_1, window_bounds = array<i64: 1, 128>}, {pipeline_mode = #tpu.pipeline_mode<synchronous>, transform_indices = @transform_2, window_bounds = array<i64: 1, 128>}, {pipeline_mode = #tpu.pipeline_mode<synchronous>, transform_indices = @transform_3, window_bounds = array<i64: 128, 128>}, {transform_indices = @transform_4, window_bounds = array<i64: 256, 128>}]} {
    %c0 = arith.constant 0 : index
    %c0_0 = arith.constant 0 : index
    %0 = vector.load %arg1[%c0, %c0_0] : memref<256x128xf32, #tpu.memory_space<vmem>>, vector<256x128xf32>
    %c0_1 = arith.constant 0 : index
    %c0_2 = arith.constant 0 : index
    %1 = vector.load %arg4[%c0_1, %c0_2] : memref<128x128xf32, #tpu.memory_space<vmem>>, vector<128x128xf32>
    %cst = arith.constant dense<0.000000e+00> : vector<256x128xf32>
    %2 = tpu.matmul %0, %1, %cst {dimension_numbers = #tpu.dot_dimension_numbers<[1], [0], [0], [1], [0, 0, 1, 1], [], []>} : vector<256x128xf32>, vector<128x128xf32>, vector<256x128xf32> -> vector<256x128xf32>
    %c0_3 = arith.constant 0 : index
    %c0_4 = arith.constant 0 : index
    %3 = vector.load %arg5[%c0_3, %c0_4] : memref<256x128xf32, #tpu.memory_space<vmem>>, vector<256x128xf32>
    tpu.vector_store %arg5[%c0_3, %c0_4], %2 {strides = array<i32>} : memref<256x128xf32, #tpu.memory_space<vmem>>, vector<256x128xf32>,
    return
  }
  func.func @transform_0(%arg0: i32) -> (i32, i32) {
    %c0_i32 = arith.constant 0 : i32
    %c0_i32_0 = arith.constant 0 : i32
    return %arg0, %c0_i32 : i32, i32
  }
  func.func @transform_1(%arg0: i32) -> (i32, i32) {
    %c0_i32 = arith.constant 0 : i32
    %c0_i32_0 = arith.constant 0 : i32
    %c0_i32_1 = arith.constant 0 : i32
    return %c0_i32, %c0_i32_0 : i32, i32
  }
  func.func @transform_2(%arg0: i32) -> (i32, i32) {
    %c0_i32 = arith.constant 0 : i32
    %c0_i32_0 = arith.constant 0 : i32
    %c0_i32_1 = arith.constant 0 : i32
    return %c0_i32, %c0_i32_0 : i32, i32
  }
  func.func @transform_3(%arg0: i32) -> (i32, i32) {
    %c0_i32 = arith.constant 0 : i32
    %c0_i32_0 = arith.constant 0 : i32
    %c0_i32_1 = arith.constant 0 : i32
    return %c0_i32, %c0_i32_0 : i32, i32
  }
  func.func @transform_4(%arg0: i32) -> (i32, i32) {
    %c0_i32 = arith.constant 0 : i32
    %c0_i32_0 = arith.constant 0 : i32
    return %arg0, %c0_i32 : i32, i32
  }
}

module attributes {stable_mosaic.version = 11 : i64} {
  func.func @_support_kernel(%arg0: i32, %arg1: memref<256x128xf32, #tpu.memory_space<vmem>>, %arg2: memref<1x128xf32, #tpu.memory_space<vmem>>, %arg3: memref<1x128xf32, #tpu.memory_space<vmem>>, %arg4: memref<128x128xf32, #tpu.memory_space<vmem>>, %arg5: memref<256x128xf32, #tpu.memory_space<vmem>>) attributes {dimension_semantics = [#tpu.dimension_semantics<parallel>], iteration_bounds = array<i64: 1>, scalar_prefetch = 0 : i64, scratch_operands = 0 : i64, tpu.core_type = #tpu.core_type<tc>, window_params = [{transform_indices = @transform_0, window_bounds = array<i64: 256, 128>}, {pipeline_mode = #tpu.pipeline_mode<synchronous>, transform_indices = @transform_1, window_bounds = array<i64: 1, 128>}, {pipeline_mode = #tpu.pipeline_mode<synchronous>, transform_indices = @transform_2, window_bounds = array<i64: 1, 128>}, {pipeline_mode = #tpu.pipeline_mode<synchronous>, transform_indices = @transform_3, window_bounds = array<i64: 128, 128>}, {transform_indices = @transform_4, window_bounds = array<i64: 256, 128>}]} {
    %c0 = arith.constant 0 : index
    %c0_0 = arith.constant 0 : index
    %0 = vector.load %arg1[%c0, %c0_0] : memref<256x128xf32, #tpu.memory_space<vmem>>, vector<256x128xf32>
    %cst = arith.constant 0.000000e+00 : f32
    %1 = vector.broadcast %cst : f32 to vector<256x128xf32>
    %2 = arith.maximumf %0, %1 : vector<256x128xf32>
    %c0_1 = arith.constant 0 : index
    %c0_2 = arith.constant 0 : index
    %3 = vector.load %arg4[%c0_1, %c0_2] : memref<128x128xf32, #tpu.memory_space<vmem>>, vector<128x128xf32>
    %cst_3 = arith.constant dense<0.000000e+00> : vector<256x128xf32>
    %4 = tpu.matmul %2, %3, %cst_3 {dimension_numbers = #tpu.dot_dimension_numbers<[1], [0], [0], [1], [0, 0, 1, 1], [], []>} : vector<256x128xf32>, vector<128x128xf32>, vector<256x128xf32> -> vector<256x128xf32>
    %c0_4 = arith.constant 0 : index
    %c0_5 = arith.constant 0 : index
    %5 = vector.load %arg5[%c0_4, %c0_5] : memref<256x128xf32, #tpu.memory_space<vmem>>, vector<256x128xf32>
    tpu.vector_store %arg5[%c0_4, %c0_5], %4 {strides = array<i32>} : memref<256x128xf32, #tpu.memory_space<vmem>>, vector<256x128xf32>,
    return
  }
  func.func @transform_0(%arg0: i32) -> (i32, i32) {
    %c0_i32 = arith.constant 0 : i32
    %c0_i32_0 = arith.constant 0 : i32
    return %arg0, %c0_i32 : i32, i32
  }
  func.func @transform_1(%arg0: i32) -> (i32, i32) {
    %c0_i32 = arith.constant 0 : i32
    %c0_i32_0 = arith.constant 0 : i32
    %c0_i32_1 = arith.constant 0 : i32
    return %c0_i32, %c0_i32_0 : i32, i32
  }
  func.func @transform_2(%arg0: i32) -> (i32, i32) {
    %c0_i32 = arith.constant 0 : i32
    %c0_i32_0 = arith.constant 0 : i32
    %c0_i32_1 = arith.constant 0 : i32
    return %c0_i32, %c0_i32_0 : i32, i32
  }
  func.func @transform_3(%arg0: i32) -> (i32, i32) {
    %c0_i32 = arith.constant 0 : i32
    %c0_i32_0 = arith.constant 0 : i32
    %c0_i32_1 = arith.constant 0 : i32
    return %c0_i32, %c0_i32_0 : i32, i32
  }
  func.func @transform_4(%arg0: i32) -> (i32, i32) {
    %c0_i32 = arith.constant 0 : i32
    %c0_i32_0 = arith.constant 0 : i32
    return %arg0, %c0_i32 : i32, i32
  }
}

module attributes {stable_mosaic.version = 11 : i64} {
  func.func @_gcn_final_kernel(%arg0: i32, %arg1: i32, %arg2: memref<256x256xf32, #tpu.memory_space<vmem>>, %arg3: memref<256x128xf32, #tpu.memory_space<vmem>>, %arg4: memref<1x128xf32, #tpu.memory_space<vmem>>, %arg5: memref<256x128xf32, #tpu.memory_space<vmem>>, %arg6: memref<256x128xf32, #tpu.memory_space<vmem>>) attributes {dimension_semantics = [#tpu.dimension_semantics<parallel>, #tpu.dimension_semantics<arbitrary>], iteration_bounds = array<i64: 1, 1>, scalar_prefetch = 0 : i64, scratch_operands = 1 : i64, tpu.core_type = #tpu.core_type<tc>, window_params = [{transform_indices = @transform_0, window_bounds = array<i64: 256, 256>}, {pipeline_mode = #tpu.pipeline_mode<synchronous>, transform_indices = @transform_1, window_bounds = array<i64: 256, 128>}, {pipeline_mode = #tpu.pipeline_mode<synchronous>, transform_indices = @transform_2, window_bounds = array<i64: 1, 128>}, {transform_indices = @transform_3, window_bounds = array<i64: 256, 128>}]} {
    %c0_i32 = arith.constant 0 : i32
    %0 = arith.cmpi eq, %arg1, %c0_i32 : i32
    %1 = arith.extui %0 : i1 to i32
    %c0_i32_0 = arith.constant 0 : i32
    %2 = arith.cmpi ne, %1, %c0_i32_0 : i32
    scf.if %2 {
      %cst_9 = arith.constant 0.000000e+00 : f32
      %14 = vector.broadcast %cst_9 : f32 to vector<256x128xf32>
      %c0_10 = arith.constant 0 : index
      %c0_11 = arith.constant 0 : index
      %15 = vector.load %arg6[%c0_10, %c0_11] : memref<256x128xf32, #tpu.memory_space<vmem>>, vector<256x128xf32>
      tpu.vector_store %arg6[%c0_10, %c0_11], %14 {strides = array<i32>} : memref<256x128xf32, #tpu.memory_space<vmem>>, vector<256x128xf32>,
    } else {
    }
    %c256_i32 = arith.constant 256 : i32
    %3 = arith.muli %arg1, %c256_i32 : i32
    %4 = arith.index_cast %3 : i32 to index
    %c0 = arith.constant 0 : index
    %5 = vector.load %arg3[%4, %c0] : memref<256x128xf32, #tpu.memory_space<vmem>>, vector<256x128xf32>
    %c0_1 = arith.constant 0 : index
    %c0_2 = arith.constant 0 : index
    %6 = vector.load %arg6[%c0_1, %c0_2] : memref<256x128xf32, #tpu.memory_space<vmem>>, vector<256x128xf32>
    %c0_3 = arith.constant 0 : index
    %c0_4 = arith.constant 0 : index
    %7 = vector.load %arg2[%c0_3, %c0_4] : memref<256x256xf32, #tpu.memory_space<vmem>>, vector<256x256xf32>
    %cst = arith.constant dense<0.000000e+00> : vector<256x128xf32>
    %8 = tpu.matmul %7, %5, %cst {dimension_numbers = #tpu.dot_dimension_numbers<[1], [0], [0], [1], [0, 0, 1, 1], [], []>} : vector<256x256xf32>, vector<256x128xf32>, vector<256x128xf32> -> vector<256x128xf32>
    %9 = arith.addf %6, %8 : vector<256x128xf32>
    %c0_5 = arith.constant 0 : index
    %c0_6 = arith.constant 0 : index
    %10 = vector.load %arg6[%c0_5, %c0_6] : memref<256x128xf32, #tpu.memory_space<vmem>>, vector<256x128xf32>
    tpu.vector_store %arg6[%c0_5, %c0_6], %9 {strides = array<i32>} : memref<256x128xf32, #tpu.memory_space<vmem>>, vector<256x128xf32>,
    %c0_i32_7 = arith.constant 0 : i32
    %11 = arith.cmpi eq, %arg1, %c0_i32_7 : i32
    %12 = arith.extui %11 : i1 to i32
    %c0_i32_8 = arith.constant 0 : i32
    %13 = arith.cmpi ne, %12, %c0_i32_8 : i32
    scf.if %13 {
      %c0_9 = arith.constant 0 : index
      %c0_10 = arith.constant 0 : index
      %14 = vector.load %arg6[%c0_9, %c0_10] : memref<256x128xf32, #tpu.memory_space<vmem>>, vector<256x128xf32>
      %c0_11 = arith.constant 0 : index
      %c0_12 = arith.constant 0 : index
      %15 = vector.load %arg4[%c0_11, %c0_12] : memref<1x128xf32, #tpu.memory_space<vmem>>, vector<1x128xf32>
      %16 = vector.broadcast %15 : vector<1x128xf32> to vector<256x128xf32>
      %17 = arith.addf %14, %16 : vector<256x128xf32>
      %18 = tpu.iota {dimensions = array<i32: 1>} : vector<256x128xi32>
      %c8_i32 = arith.constant 8 : i32
      %19 = vector.broadcast %c8_i32 : i32 to vector<256x128xi32>
      %20 = arith.cmpi slt, %18, %19 : vector<256x128xi32>
      %cst_13 = arith.constant 0xFF800000 : f32
      %21 = vector.broadcast %cst_13 : f32 to vector<256x128xf32>
      %22 = arith.select %20, %17, %21 : vector<256x128xi1>, vector<256x128xf32>
      %cst_14 = arith.constant dense<0xFF800000> : vector<256xf32>
      %23 = vector.multi_reduction <maximumf>, %22, %cst_14 [1] : vector<256x128xf32> to vector<256xf32>
      %24 = vector.shape_cast %23 : vector<256xf32> to vector<256x1xf32>
      %25 = vector.broadcast %24 : vector<256x1xf32> to vector<256x128xf32>
      %26 = arith.subf %22, %25 : vector<256x128xf32>
      %c8_i32_15 = arith.constant 8 : i32
      %27 = vector.broadcast %c8_i32_15 : i32 to vector<256x128xi32>
      %28 = arith.cmpi slt, %18, %27 : vector<256x128xi32>
      %29 = math.exp %26 : vector<256x128xf32>
      %cst_16 = arith.constant 0.000000e+00 : f32
      %30 = vector.broadcast %cst_16 : f32 to vector<256x128xf32>
      %31 = arith.select %28, %29, %30 : vector<256x128xi1>, vector<256x128xf32>
      %cst_17 = arith.constant dense<0.000000e+00> : vector<256xf32>
      %32 = vector.multi_reduction <add>, %31, %cst_17 [1] : vector<256x128xf32> to vector<256xf32>
      %33 = vector.shape_cast %32 : vector<256xf32> to vector<256x1xf32>
      %34 = math.log %33 : vector<256x1xf32>
      %35 = vector.broadcast %34 : vector<256x1xf32> to vector<256x128xf32>
      %36 = arith.subf %26, %35 : vector<256x128xf32>
      %c0_18 = arith.constant 0 : index
      %c0_19 = arith.constant 0 : index
      %37 = vector.load %arg5[%c0_18, %c0_19] : memref<256x128xf32, #tpu.memory_space<vmem>>, vector<256x128xf32>
      tpu.vector_store %arg5[%c0_18, %c0_19], %36 {strides = array<i32>} : memref<256x128xf32, #tpu.memory_space<vmem>>, vector<256x128xf32>,
    } else {
    }
    return
  }
  func.func @transform_0(%arg0: i32, %arg1: i32) -> (i32, i32) {
    %c0_i32 = arith.constant 0 : i32
    return %arg0, %arg1 : i32, i32
  }
  func.func @transform_1(%arg0: i32, %arg1: i32) -> (i32, i32) {
    %c0_i32 = arith.constant 0 : i32
    %c0_i32_0 = arith.constant 0 : i32
    %c0_i32_1 = arith.constant 0 : i32
    return %c0_i32, %c0_i32_0 : i32, i32
  }
  func.func @transform_2(%arg0: i32, %arg1: i32) -> (i32, i32) {
    %c0_i32 = arith.constant 0 : i32
    %c0_i32_0 = arith.constant 0 : i32
    %c0_i32_1 = arith.constant 0 : i32
    return %c0_i32, %c0_i32_0 : i32, i32
  }
  func.func @transform_3(%arg0: i32, %arg1: i32) -> (i32, i32) {
    %c0_i32 = arith.constant 0 : i32
    %c0_i32_0 = arith.constant 0 : i32
    return %arg0, %c0_i32 : i32, i32
  }
}

</mosaic_0001>

<llo_original>
// kernel: pairnorm_forward.4
$region0: #{pairnorm_forward.4}
  #allocation0 [shape = 'u32[]', space=smem, size = 0x4, offset = 0x4, fixed_abs, tag = 'smem constant byte address 0x4 - core index']
  #allocation1 [shape = 'u32[72,128]{1,0:T(1,128)}', space=vmem, size = 0x9000, scoped, tag = 'internal scratch']
  %s0 = inlined_call_operand.hbm [shape: f32[256,128], index: 0, kind: input, shape index: {}]
  %s1 = inlined_call_operand.vmem [shape: f32[1,128], index: 1, kind: input, shape index: {}]
  %s2 = inlined_call_operand.vmem [shape: f32[1,128], index: 2, kind: input, shape index: {}]
  %s3 = inlined_call_operand.hbm [shape: f32[128,128], index: 3, kind: input, shape index: {}]
  %s4 = inlined_call_operand.vmem [shape: f32[256,128], index: 4, kind: output, shape index: {}]
  %s5 = sld [smem:[#allocation0]]
  $region34: #{pairnorm_forward.4} parent=0
    _
  %s7 = ssub.s32 1, %s5
  %s8 = scalar_select 0, %s7, %s5
  $region1: #{pairnorm_forward.4} parent=0
    #allocation2 [shape = 'u8[131072]{0}', space=vmem, size = 0x20000, scoped, tag = 'input window, operand 0, single buffered']
    #allocation3 [shape = 's32[1]{0}', space=sflag, size = 0x4, scoped, tag = 'scoped memory for pairnorm_forward.4']
    #allocation4 [shape = 'u8[65536]{0}', space=vmem, size = 0x10000, scoped, tag = 'input window, operand 3, single buffered']
    #allocation5 [shape = 's32[1]{0}', space=sflag, size = 0x4, scoped, tag = 'scoped memory for pairnorm_forward.4']
    %9 = vsyncpa [#allocation3], 0
    %10 = vsyncpa [#allocation5], 0
    // Predicated region
    $region2: #{pairnorm_forward.4} parent=1 // pred_check
      _
    $region3: #{pairnorm_forward.4} parent=1 // pred_check_branch
      %12 = sbr.rel (0) target = $region5
    $region4: #{pairnorm_forward.4} parent=1 // pred_region
      %14 = vsyncadd [#allocation3], 0
      %s15 = sshll.u32 %s0, 4
      %s16 = int_to_ptr.hbm [resolvable:$true] %s15
      %s17 = sshll.u32 [#allocation2], 4
      %s18 = int_to_ptr.vmem [resolvable:$true] %s17
      %23 = dma.hbm_to_vmem [thread:$0]  %s16, 4096, %s18, [#allocation3], 128, 128, 8
    $region5: #{pairnorm_forward.4} parent=1 // pred_fallthru
      _
    // Predicated region
    $region6: #{pairnorm_forward.4} parent=1 // pred_check
      _
    $region7: #{pairnorm_forward.4} parent=1 // pred_check_branch
      %25 = sbr.rel (0) target = $region9
    $region8: #{pairnorm_forward.4} parent=1 // pred_region
      _
    $region9: #{pairnorm_forward.4} parent=1 // pred_fallthru
      _
    // Predicated region
    $region10: #{pairnorm_forward.4} parent=1 // pred_check
      _
    $region11: #{pairnorm_forward.4} parent=1 // pred_check_branch
      %27 = sbr.rel (0) target = $region13
    $region12: #{pairnorm_forward.4} parent=1 // pred_region
      _
    $region13: #{pairnorm_forward.4} parent=1 // pred_fallthru
      _
    // Predicated region
    $region14: #{pairnorm_forward.4} parent=1 // pred_check
      _
    $region15: #{pairnorm_forward.4} parent=1 // pred_check_branch
      %29 = sbr.rel (0) target = $region17
    $region16: #{pairnorm_forward.4} parent=1 // pred_region
      %31 = vsyncadd [#allocation5], 0
      %s32 = sshll.u32 %s3, 4
      %s33 = int_to_ptr.hbm [resolvable:$true] %s32
      %s34 = sshll.u32 [#allocation4], 4
      %s35 = int_to_ptr.vmem [resolvable:$true] %s34
      %40 = dma.hbm_to_vmem [thread:$0]  %s33, 2048, %s35, [#allocation5], 128, 128, 8
    $region17: #{pairnorm_forward.4} parent=1 // pred_fallthru
      _
    // Predicated region
    $region18: #{pairnorm_forward.4} parent=1 // pred_check
      _
    $region19: #{pairnorm_forward.4} parent=1 // pred_check_branch
      %42 = sbr.rel (0) target = $region21
    $region20: #{pairnorm_forward.4} parent=1 // pred_region
      %44 = dma.done [#allocation3], 4096
    $region21: #{pairnorm_forward.4} parent=1 // pred_fallthru
      _
    // Predicated region
    $region22: #{pairnorm_forward.4} parent=1 // pred_check
      _
    $region23: #{pairnorm_forward.4} parent=1 // pred_check_branch
      %46 = sbr.rel (0) target = $region25
    $region24: #{pairnorm_forward.4} parent=1 // pred_region
      %48 = dma.done [#allocation5], 2048
    $region25: #{pairnorm_forward.4} parent=1 // pred_fallthru
      _
    %v49 = vld [vmem:[#allocation2] sm:$0xff]
    %v50 = vld [vmem:[#allocation2 + $0x8] sm:$0xff]
    %v51 = vld [vmem:[#allocation2 + $0x10] sm:$0xff]
    %v52 = vld [vmem:[#allocation2 + $0x18] sm:$0xff]
    %v53 = vld [vmem:[#allocation2 + $0x20] sm:$0xff]
    %v54 = vld [vmem:[#allocation2 + $0x28] sm:$0xff]
    %v55 = vld [vmem:[#allocation2 + $0x30] sm:$0xff]
    %v56 = vld [vmem:[#allocation2 + $0x38] sm:$0xff]
    %v57 = vld [vmem:[#allocation2 + $0x40] sm:$0xff]
    %v58 = vld [vmem:[#allocation2 + $0x48] sm:$0xff]
    %v59 = vld [vmem:[#allocation2 + $0x50] sm:$0xff]
    %v60 = vld [vmem:[#allocation2 + $0x58] sm:$0xff]
    %v61 = vld [vmem:[#allocation2 + $0x60] sm:$0xff]
    %v62 = vld [vmem:[#allocation2 + $0x68] sm:$0xff]
    %v63 = vld [vmem:[#allocation2 + $0x70] sm:$0xff]
    %v64 = vld [vmem:[#allocation2 + $0x78] sm:$0xff]
    %v65 = vld [vmem:[#allocation2 + $0x80] sm:$0xff]
    %v66 = vld [vmem:[#allocation2 + $0x88] sm:$0xff]
    %v67 = vld [vmem:[#allocation2 + $0x90] sm:$0xff]
    %v68 = vld [vmem:[#allocation2 + $0x98] sm:$0xff]
    %v69 = vld [vmem:[#allocation2 + $0xa0] sm:$0xff]
    %v70 = vld [vmem:[#allocation2 + $0xa8] sm:$0xff]
    %v71 = vld [vmem:[#allocation2 + $0xb0] sm:$0xff]
    %v72 = vld [vmem:[#allocation2 + $0xb8] sm:$0xff]
    %v73 = vld [vmem:[#allocation2 + $0xc0] sm:$0xff]
    %v74 = vld [vmem:[#allocation2 + $0xc8] sm:$0xff]
    %v75 = vld [vmem:[#allocation2 + $0xd0] sm:$0xff]
    %v76 = vld [vmem:[#allocation2 + $0xd8] sm:$0xff]
    %v77 = vld [vmem:[#allocation2 + $0xe0] sm:$0xff]
    %v78 = vld [vmem:[#allocation2 + $0xe8] sm:$0xff]
    %v79 = vld [vmem:[#allocation2 + $0xf0] sm:$0xff]
    %v80 = vld [vmem:[#allocation2 + $0xf8] sm:$0xff]
    %v81 = vld [vmem:[#allocation4] sm:$0xff]
    %v82 = vld [vmem:[#allocation4 + $0x8] sm:$0xff]
    %v83 = vld [vmem:[#allocation4 + $0x10] sm:$0xff]
    %v84 = vld [vmem:[#allocation4 + $0x18] sm:$0xff]
    %v85 = vld [vmem:[#allocation4 + $0x20] sm:$0xff]
    %v86 = vld [vmem:[#allocation4 + $0x28] sm:$0xff]
    %v87 = vld [vmem:[#allocation4 + $0x30] sm:$0xff]
    %v88 = vld [vmem:[#allocation4 + $0x38] sm:$0xff]
    %v89 = vld [vmem:[#allocation4 + $0x40] sm:$0xff]
    %v90 = vld [vmem:[#allocation4 + $0x48] sm:$0xff]
    %v91 = vld [vmem:[#allocation4 + $0x50] sm:$0xff]
    %v92 = vld [vmem:[#allocation4 + $0x58] sm:$0xff]
    %v93 = vld [vmem:[#allocation4 + $0x60] sm:$0xff]
    %v94 = vld [vmem:[#allocation4 + $0x68] sm:$0xff]
    %v95 = vld [vmem:[#allocation4 + $0x70] sm:$0xff]
    %v96 = vld [vmem:[#allocation4 + $0x78] sm:$0xff]
    %97 = vmatpush.msra.mxu0 %v96
    %98 = vmatpush.msra.mxu0 %v95
    %99 = vmatpush.msra.mxu0 %v94
    %100 = vmatpush.msra.mxu0 %v93
    %101 = vmatpush.msra.mxu0 %v92
    %102 = vmatpush.msra.mxu0 %v91
    %103 = vmatpush.msra.mxu0 %v90
    %104 = vmatpush.msra.mxu0 %v89
    %105 = vmatpush.msra.mxu0 %v88
    %106 = vmatpush.msra.mxu0 %v87
    %107 = vmatpush.msra.mxu0 %v86
    %108 = vmatpush.msra.mxu0 %v85
    %109 = vmatpush.msra.mxu0 %v84
    %110 = vmatpush.msra.mxu0 %v83
    %111 = vmatpush.msra.mxu0 %v82
    %112 = vmatpush.msra.mxu0 %v81
    %113 = vmatmul.f32.gmra.mxu0 %v49
    %v114 = vpop.f32.mrf.mxu0
    %v115 = vadd.f32 0.0, %v114
    %116 = vmatmul.f32.gmra.mxu0 %v50
    %v117 = vpop.f32.mrf.mxu0
    %v118 = vadd.f32 0.0, %v117
    %119 = vmatmul.f32.gmra.mxu0 %v51
    %v120 = vpop.f32.mrf.mxu0
    %v121 = vadd.f32 0.0, %v120
    %122 = vmatmul.f32.gmra.mxu0 %v52
    %v123 = vpop.f32.mrf.mxu0
    %v124 = vadd.f32 0.0, %v123
    %125 = vmatmul.f32.gmra.mxu0 %v53
    %v126 = vpop.f32.mrf.mxu0
    %v127 = vadd.f32 0.0, %v126
    %128 = vmatmul.f32.gmra.mxu0 %v54
    %v129 = vpop.f32.mrf.mxu0
    %v130 = vadd.f32 0.0, %v129
    %131 = vmatmul.f32.gmra.mxu0 %v55
    %v132 = vpop.f32.mrf.mxu0
    %v133 = vadd.f32 0.0, %v132
    %134 = vmatmul.f32.gmra.mxu0 %v56
    %v135 = vpop.f32.mrf.mxu0
    %v136 = vadd.f32 0.0, %v135
    %137 = vmatmul.f32.gmra.mxu0 %v57
    %v138 = vpop.f32.mrf.mxu0
    %v139 = vadd.f32 0.0, %v138
    %140 = vmatmul.f32.gmra.mxu0 %v58
    %v141 = vpop.f32.mrf.mxu0
    %v142 = vadd.f32 0.0, %v141
    %143 = vmatmul.f32.gmra.mxu0 %v59
    %v144 = vpop.f32.mrf.mxu0
    %v145 = vadd.f32 0.0, %v144
    %146 = vmatmul.f32.gmra.mxu0 %v60
    %v147 = vpop.f32.mrf.mxu0
    %v148 = vadd.f32 0.0, %v147
    %149 = vmatmul.f32.gmra.mxu0 %v61
    %v150 = vpop.f32.mrf.mxu0
    %v151 = vadd.f32 0.0, %v150
    %152 = vmatmul.f32.gmra.mxu0 %v62
    %v153 = vpop.f32.mrf.mxu0
    %v154 = vadd.f32 0.0, %v153
    %155 = vmatmul.f32.gmra.mxu0 %v63
    %v156 = vpop.f32.mrf.mxu0
    %v157 = vadd.f32 0.0, %v156
    %158 = vmatmul.f32.gmra.mxu0 %v64
    %v159 = vpop.f32.mrf.mxu0
    %v160 = vadd.f32 0.0, %v159
    %161 = vmatmul.f32.gmra.mxu0 %v65
    %v162 = vpop.f32.mrf.mxu0
    %v163 = vadd.f32 0.0, %v162
    %164 = vmatmul.f32.gmra.mxu0 %v66
    %v165 = vpop.f32.mrf.mxu0
    %v166 = vadd.f32 0.0, %v165
    %167 = vmatmul.f32.gmra.mxu0 %v67
    %v168 = vpop.f32.mrf.mxu0
    %v169 = vadd.f32 0.0, %v168
    %170 = vmatmul.f32.gmra.mxu0 %v68
    %v171 = vpop.f32.mrf.mxu0
    %v172 = vadd.f32 0.0, %v171
    %173 = vmatmul.f32.gmra.mxu0 %v69
    %v174 = vpop.f32.mrf.mxu0
    %v175 = vadd.f32 0.0, %v174
    %176 = vmatmul.f32.gmra.mxu0 %v70
    %v177 = vpop.f32.mrf.mxu0
    %v178 = vadd.f32 0.0, %v177
    %179 = vmatmul.f32.gmra.mxu0 %v71
    %v180 = vpop.f32.mrf.mxu0
    %v181 = vadd.f32 0.0, %v180
    %182 = vmatmul.f32.gmra.mxu0 %v72
    %v183 = vpop.f32.mrf.mxu0
    %v184 = vadd.f32 0.0, %v183
    %185 = vmatmul.f32.gmra.mxu0 %v73
    %v186 = vpop.f32.mrf.mxu0
    %v187 = vadd.f32 0.0, %v186
    %188 = vmatmul.f32.gmra.mxu0 %v74
    %v189 = vpop.f32.mrf.mxu0
    %v190 = vadd.f32 0.0, %v189
    %191 = vmatmul.f32.gmra.mxu0 %v75
    %v192 = vpop.f32.mrf.mxu0
    %v193 = vadd.f32 0.0, %v192
    %194 = vmatmul.f32.gmra.mxu0 %v76
    %v195 = vpop.f32.mrf.mxu0
    %v196 = vadd.f32 0.0, %v195
    %197 = vmatmul.f32.gmra.mxu0 %v77
    %v198 = vpop.f32.mrf.mxu0
    %v199 = vadd.f32 0.0, %v198
    %200 = vmatmul.f32.gmra.mxu0 %v78
    %v201 = vpop.f32.mrf.mxu0
    %v202 = vadd.f32 0.0, %v201
    %203 = vmatmul.f32.gmra.mxu0 %v79
    %v204 = vpop.f32.mrf.mxu0
    %v205 = vadd.f32 0.0, %v204
    %206 = vmatmul.f32.gmra.mxu0 %v80
    %v207 = vpop.f32.mrf.mxu0
    %v208 = vadd.f32 0.0, %v207
    %209 = vdwg.mxu0
    %210 = vst [vmem:[%s4] sm:$0xff] %v115
    %211 = vst [vmem:[%s4 + $0x8] sm:$0xff] %v118
    %212 = vst [vmem:[%s4 + $0x10] sm:$0xff] %v121
    %213 = vst [vmem:[%s4 + $0x18] sm:$0xff] %v124
    %214 = vst [vmem:[%s4 + $0x20] sm:$0xff] %v127
    %215 = vst [vmem:[%s4 + $0x28] sm:$0xff] %v130
    %216 = vst [vmem:[%s4 + $0x30] sm:$0xff] %v133
    %217 = vst [vmem:[%s4 + $0x38] sm:$0xff] %v136
    %218 = vst [vmem:[%s4 + $0x40] sm:$0xff] %v139
    %219 = vst [vmem:[%s4 + $0x48] sm:$0xff] %v142
    %220 = vst [vmem:[%s4 + $0x50] sm:$0xff] %v145
    %221 = vst [vmem:[%s4 + $0x58] sm:$0xff] %v148
    %222 = vst [vmem:[%s4 + $0x60] sm:$0xff] %v151
    %223 = vst [vmem:[%s4 + $0x68] sm:$0xff] %v154
    %224 = vst [vmem:[%s4 + $0x70] sm:$0xff] %v157
    %225 = vst [vmem:[%s4 + $0x78] sm:$0xff] %v160
    %226 = vst [vmem:[%s4 + $0x80] sm:$0xff] %v163
    %227 = vst [vmem:[%s4 + $0x88] sm:$0xff] %v166
    %228 = vst [vmem:[%s4 + $0x90] sm:$0xff] %v169
    %229 = vst [vmem:[%s4 + $0x98] sm:$0xff] %v172
    %230 = vst [vmem:[%s4 + $0xa0] sm:$0xff] %v175
    %231 = vst [vmem:[%s4 + $0xa8] sm:$0xff] %v178
    %232 = vst [vmem:[%s4 + $0xb0] sm:$0xff] %v181
    %233 = vst [vmem:[%s4 + $0xb8] sm:$0xff] %v184
    %234 = vst [vmem:[%s4 + $0xc0] sm:$0xff] %v187
    %235 = vst [vmem:[%s4 + $0xc8] sm:$0xff] %v190
    %236 = vst [vmem:[%s4 + $0xd0] sm:$0xff] %v193
    %237 = vst [vmem:[%s4 + $0xd8] sm:$0xff] %v196
    %238 = vst [vmem:[%s4 + $0xe0] sm:$0xff] %v199
    %239 = vst [vmem:[%s4 + $0xe8] sm:$0xff] %v202
    %240 = vst [vmem:[%s4 + $0xf0] sm:$0xff] %v205
    %241 = vst [vmem:[%s4 + $0xf8] sm:$0xff] %v208
    // Predicated region
    $region26: #{pairnorm_forward.4} parent=1 // pred_check
      _
    $region27: #{pairnorm_forward.4} parent=1 // pred_check_branch
      %243 = sbr.rel (0) target = $region29
    $region28: #{pairnorm_forward.4} parent=1 // pred_region
      _
    $region29: #{pairnorm_forward.4} parent=1 // pred_fallthru
      _
    // Predicated region
    $region30: #{pairnorm_forward.4} parent=1 // pred_check
      _
    $region31: #{pairnorm_forward.4} parent=1 // pred_check_branch
      %245 = sbr.rel (0) target = $region33
    $region32: #{pairnorm_forward.4} parent=1 // pred_region
      _
    $region33: #{pairnorm_forward.4} parent=1 // pred_fallthru
      _
    %246 = vsyncpa [#allocation3], 1
    %247 = vsyncpa [#allocation5], 1

// kernel: pairnorm_forward.6
$region0: #{pairnorm_forward.6}
  #allocation0 [shape = 'u32[]', space=smem, size = 0x4, offset = 0x4, fixed_abs, tag = 'smem constant byte address 0x4 - core index']
  #allocation1 [shape = 'u32[72,128]{1,0:T(1,128)}', space=vmem, size = 0x9000, scoped, tag = 'internal scratch']
  %s0 = inlined_call_operand.vmem [shape: f32[256,128], index: 0, kind: input, shape index: {}]
  %s1 = inlined_call_operand.vmem [shape: f32[1,128], index: 1, kind: input, shape index: {}]
  %s2 = inlined_call_operand.vmem [shape: f32[1,128], index: 2, kind: input, shape index: {}]
  %s3 = inlined_call_operand.hbm [shape: f32[128,128], index: 3, kind: input, shape index: {}]
  %s4 = inlined_call_operand.vmem [shape: f32[256,128], index: 4, kind: output, shape index: {}]
  %s5 = sld [smem:[#allocation0]]
  $region30: #{pairnorm_forward.6} parent=0
    _
  %s7 = ssub.s32 1, %s5
  %s8 = scalar_select 0, %s7, %s5
  $region1: #{pairnorm_forward.6} parent=0
    #allocation2 [shape = 'u8[65536]{0}', space=vmem, size = 0x10000, scoped, tag = 'input window, operand 3, single buffered']
    #allocation3 [shape = 's32[1]{0}', space=sflag, size = 0x4, scoped, tag = 'scoped memory for pairnorm_forward.6']
    %9 = vsyncpa [#allocation3], 0
    // Predicated region
    $region2: #{pairnorm_forward.6} parent=1 // pred_check
      _
    $region3: #{pairnorm_forward.6} parent=1 // pred_check_branch
      %11 = sbr.rel (0) target = $region5
    $region4: #{pairnorm_forward.6} parent=1 // pred_region
      _
    $region5: #{pairnorm_forward.6} parent=1 // pred_fallthru
      _
    // Predicated region
    $region6: #{pairnorm_forward.6} parent=1 // pred_check
      _
    $region7: #{pairnorm_forward.6} parent=1 // pred_check_branch
      %13 = sbr.rel (0) target = $region9
    $region8: #{pairnorm_forward.6} parent=1 // pred_region
      _
    $region9: #{pairnorm_forward.6} parent=1 // pred_fallthru
      _
    // Predicated region
    $region10: #{pairnorm_forward.6} parent=1 // pred_check
      _
    $region11: #{pairnorm_forward.6} parent=1 // pred_check_branch
      %15 = sbr.rel (0) target = $region13
    $region12: #{pairnorm_forward.6} parent=1 // pred_region
      _
    $region13: #{pairnorm_forward.6} parent=1 // pred_fallthru
      _
    // Predicated region
    $region14: #{pairnorm_forward.6} parent=1 // pred_check
      _
    $region15: #{pairnorm_forward.6} parent=1 // pred_check_branch
      %17 = sbr.rel (0) target = $region17
    $region16: #{pairnorm_forward.6} parent=1 // pred_region
      %19 = vsyncadd [#allocation3], 0
      %s20 = sshll.u32 %s3, 4
      %s21 = int_to_ptr.hbm [resolvable:$true] %s20
      %s22 = sshll.u32 [#allocation2], 4
      %s23 = int_to_ptr.vmem [resolvable:$true] %s22
      %28 = dma.hbm_to_vmem [thread:$0]  %s21, 2048, %s23, [#allocation3], 128, 128, 8
    $region17: #{pairnorm_forward.6} parent=1 // pred_fallthru
      _
    // Predicated region
    $region18: #{pairnorm_forward.6} parent=1 // pred_check
      _
    $region19: #{pairnorm_forward.6} parent=1 // pred_check_branch
      %30 = sbr.rel (0) target = $region21
    $region20: #{pairnorm_forward.6} parent=1 // pred_region
      %32 = dma.done [#allocation3], 2048
    $region21: #{pairnorm_forward.6} parent=1 // pred_fallthru
      _
    %v33 = vld [vmem:[%s0] sm:$0xff]
    %v34 = vld [vmem:[%s0 + $0x8] sm:$0xff]
    %v35 = vld [vmem:[%s0 + $0x10] sm:$0xff]
    %v36 = vld [vmem:[%s0 + $0x18] sm:$0xff]
    %v37 = vld [vmem:[%s0 + $0x20] sm:$0xff]
    %v38 = vld [vmem:[%s0 + $0x28] sm:$0xff]
    %v39 = vld [vmem:[%s0 + $0x30] sm:$0xff]
    %v40 = vld [vmem:[%s0 + $0x38] sm:$0xff]
    %v41 = vld [vmem:[%s0 + $0x40] sm:$0xff]
    %v42 = vld [vmem:[%s0 + $0x48] sm:$0xff]
    %v43 = vld [vmem:[%s0 + $0x50] sm:$0xff]
    %v44 = vld [vmem:[%s0 + $0x58] sm:$0xff]
    %v45 = vld [vmem:[%s0 + $0x60] sm:$0xff]
    %v46 = vld [vmem:[%s0 + $0x68] sm:$0xff]
    %v47 = vld [vmem:[%s0 + $0x70] sm:$0xff]
    %v48 = vld [vmem:[%s0 + $0x78] sm:$0xff]
    %v49 = vld [vmem:[%s0 + $0x80] sm:$0xff]
    %v50 = vld [vmem:[%s0 + $0x88] sm:$0xff]
    %v51 = vld [vmem:[%s0 + $0x90] sm:$0xff]
    %v52 = vld [vmem:[%s0 + $0x98] sm:$0xff]
    %v53 = vld [vmem:[%s0 + $0xa0] sm:$0xff]
    %v54 = vld [vmem:[%s0 + $0xa8] sm:$0xff]
    %v55 = vld [vmem:[%s0 + $0xb0] sm:$0xff]
    %v56 = vld [vmem:[%s0 + $0xb8] sm:$0xff]
    %v57 = vld [vmem:[%s0 + $0xc0] sm:$0xff]
    %v58 = vld [vmem:[%s0 + $0xc8] sm:$0xff]
    %v59 = vld [vmem:[%s0 + $0xd0] sm:$0xff]
    %v60 = vld [vmem:[%s0 + $0xd8] sm:$0xff]
    %v61 = vld [vmem:[%s0 + $0xe0] sm:$0xff]
    %v62 = vld [vmem:[%s0 + $0xe8] sm:$0xff]
    %v63 = vld [vmem:[%s0 + $0xf0] sm:$0xff]
    %v64 = vld [vmem:[%s0 + $0xf8] sm:$0xff]
    %v65 = vmax.f32 %v33, 0.0
    %v66 = vmax.f32 %v34, 0.0
    %v67 = vmax.f32 %v35, 0.0
    %v68 = vmax.f32 %v36, 0.0
    %v69 = vmax.f32 %v37, 0.0
    %v70 = vmax.f32 %v38, 0.0
    %v71 = vmax.f32 %v39, 0.0
    %v72 = vmax.f32 %v40, 0.0
    %v73 = vmax.f32 %v41, 0.0
    %v74 = vmax.f32 %v42, 0.0
    %v75 = vmax.f32 %v43, 0.0
    %v76 = vmax.f32 %v44, 0.0
    %v77 = vmax.f32 %v45, 0.0
    %v78 = vmax.f32 %v46, 0.0
    %v79 = vmax.f32 %v47, 0.0
    %v80 = vmax.f32 %v48, 0.0
    %v81 = vmax.f32 %v49, 0.0
    %v82 = vmax.f32 %v50, 0.0
    %v83 = vmax.f32 %v51, 0.0
    %v84 = vmax.f32 %v52, 0.0
    %v85 = vmax.f32 %v53, 0.0
    %v86 = vmax.f32 %v54, 0.0
    %v87 = vmax.f32 %v55, 0.0
    %v88 = vmax.f32 %v56, 0.0
    %v89 = vmax.f32 %v57, 0.0
    %v90 = vmax.f32 %v58, 0.0
    %v91 = vmax.f32 %v59, 0.0
    %v92 = vmax.f32 %v60, 0.0
    %v93 = vmax.f32 %v61, 0.0
    %v94 = vmax.f32 %v62, 0.0
    %v95 = vmax.f32 %v63, 0.0
    %v96 = vmax.f32 %v64, 0.0
    %v97 = vld [vmem:[#allocation2] sm:$0xff]
    %v98 = vld [vmem:[#allocation2 + $0x8] sm:$0xff]
    %v99 = vld [vmem:[#allocation2 + $0x10] sm:$0xff]
    %v100 = vld [vmem:[#allocation2 + $0x18] sm:$0xff]
    %v101 = vld [vmem:[#allocation2 + $0x20] sm:$0xff]
    %v102 = vld [vmem:[#allocation2 + $0x28] sm:$0xff]
    %v103 = vld [vmem:[#allocation2 + $0x30] sm:$0xff]
    %v104 = vld [vmem:[#allocation2 + $0x38] sm:$0xff]
    %v105 = vld [vmem:[#allocation2 + $0x40] sm:$0xff]
    %v106 = vld [vmem:[#allocation2 + $0x48] sm:$0xff]
    %v107 = vld [vmem:[#allocation2 + $0x50] sm:$0xff]
    %v108 = vld [vmem:[#allocation2 + $0x58] sm:$0xff]
    %v109 = vld [vmem:[#allocation2 + $0x60] sm:$0xff]
    %v110 = vld [vmem:[#allocation2 + $0x68] sm:$0xff]
    %v111 = vld [vmem:[#allocation2 + $0x70] sm:$0xff]
    %v112 = vld [vmem:[#allocation2 + $0x78] sm:$0xff]
    %113 = vmatpush.msra.mxu0 %v112
    %114 = vmatpush.msra.mxu0 %v111
    %115 = vmatpush.msra.mxu0 %v110
    %116 = vmatpush.msra.mxu0 %v109
    %117 = vmatpush.msra.mxu0 %v108
    %118 = vmatpush.msra.mxu0 %v107
    %119 = vmatpush.msra.mxu0 %v106
    %120 = vmatpush.msra.mxu0 %v105
    %121 = vmatpush.msra.mxu0 %v104
    %122 = vmatpush.msra.mxu0 %v103
    %123 = vmatpush.msra.mxu0 %v102
    %124 = vmatpush.msra.mxu0 %v101
    %125 = vmatpush.msra.mxu0 %v100
    %126 = vmatpush.msra.mxu0 %v99
    %127 = vmatpush.msra.mxu0 %v98
    %128 = vmatpush.msra.mxu0 %v97
    %129 = vmatmul.f32.gmra.mxu0 %v65
    %v130 = vpop.f32.mrf.mxu0
    %v131 = vadd.f32 0.0, %v130
    %132 = vmatmul.f32.gmra.mxu0 %v66
    %v133 = vpop.f32.mrf.mxu0
    %v134 = vadd.f32 0.0, %v133
    %135 = vmatmul.f32.gmra.mxu0 %v67
    %v136 = vpop.f32.mrf.mxu0
    %v137 = vadd.f32 0.0, %v136
    %138 = vmatmul.f32.gmra.mxu0 %v68
    %v139 = vpop.f32.mrf.mxu0
    %v140 = vadd.f32 0.0, %v139
    %141 = vmatmul.f32.gmra.mxu0 %v69
    %v142 = vpop.f32.mrf.mxu0
    %v143 = vadd.f32 0.0, %v142
    %144 = vmatmul.f32.gmra.mxu0 %v70
    %v145 = vpop.f32.mrf.mxu0
    %v146 = vadd.f32 0.0, %v145
    %147 = vmatmul.f32.gmra.mxu0 %v71
    %v148 = vpop.f32.mrf.mxu0
    %v149 = vadd.f32 0.0, %v148
    %150 = vmatmul.f32.gmra.mxu0 %v72
    %v151 = vpop.f32.mrf.mxu0
    %v152 = vadd.f32 0.0, %v151
    %153 = vmatmul.f32.gmra.mxu0 %v73
    %v154 = vpop.f32.mrf.mxu0
    %v155 = vadd.f32 0.0, %v154
    %156 = vmatmul.f32.gmra.mxu0 %v74
    %v157 = vpop.f32.mrf.mxu0
    %v158 = vadd.f32 0.0, %v157
    %159 = vmatmul.f32.gmra.mxu0 %v75
    %v160 = vpop.f32.mrf.mxu0
    %v161 = vadd.f32 0.0, %v160
    %162 = vmatmul.f32.gmra.mxu0 %v76
    %v163 = vpop.f32.mrf.mxu0
    %v164 = vadd.f32 0.0, %v163
    %165 = vmatmul.f32.gmra.mxu0 %v77
    %v166 = vpop.f32.mrf.mxu0
    %v167 = vadd.f32 0.0, %v166
    %168 = vmatmul.f32.gmra.mxu0 %v78
    %v169 = vpop.f32.mrf.mxu0
    %v170 = vadd.f32 0.0, %v169
    %171 = vmatmul.f32.gmra.mxu0 %v79
    %v172 = vpop.f32.mrf.mxu0
    %v173 = vadd.f32 0.0, %v172
    %174 = vmatmul.f32.gmra.mxu0 %v80
    %v175 = vpop.f32.mrf.mxu0
    %v176 = vadd.f32 0.0, %v175
    %177 = vmatmul.f32.gmra.mxu0 %v81
    %v178 = vpop.f32.mrf.mxu0
    %v179 = vadd.f32 0.0, %v178
    %180 = vmatmul.f32.gmra.mxu0 %v82
    %v181 = vpop.f32.mrf.mxu0
    %v182 = vadd.f32 0.0, %v181
    %183 = vmatmul.f32.gmra.mxu0 %v83
    %v184 = vpop.f32.mrf.mxu0
    %v185 = vadd.f32 0.0, %v184
    %186 = vmatmul.f32.gmra.mxu0 %v84
    %v187 = vpop.f32.mrf.mxu0
    %v188 = vadd.f32 0.0, %v187
    %189 = vmatmul.f32.gmra.mxu0 %v85
    %v190 = vpop.f32.mrf.mxu0
    %v191 = vadd.f32 0.0, %v190
    %192 = vmatmul.f32.gmra.mxu0 %v86
    %v193 = vpop.f32.mrf.mxu0
    %v194 = vadd.f32 0.0, %v193
    %195 = vmatmul.f32.gmra.mxu0 %v87
    %v196 = vpop.f32.mrf.mxu0
    %v197 = vadd.f32 0.0, %v196
    %198 = vmatmul.f32.gmra.mxu0 %v88
    %v199 = vpop.f32.mrf.mxu0
    %v200 = vadd.f32 0.0, %v199
    %201 = vmatmul.f32.gmra.mxu0 %v89
    %v202 = vpop.f32.mrf.mxu0
    %v203 = vadd.f32 0.0, %v202
    %204 = vmatmul.f32.gmra.mxu0 %v90
    %v205 = vpop.f32.mrf.mxu0
    %v206 = vadd.f32 0.0, %v205
    %207 = vmatmul.f32.gmra.mxu0 %v91
    %v208 = vpop.f32.mrf.mxu0
    %v209 = vadd.f32 0.0, %v208
    %210 = vmatmul.f32.gmra.mxu0 %v92
    %v211 = vpop.f32.mrf.mxu0
    %v212 = vadd.f32 0.0, %v211
    %213 = vmatmul.f32.gmra.mxu0 %v93
    %v214 = vpop.f32.mrf.mxu0
    %v215 = vadd.f32 0.0, %v214
    %216 = vmatmul.f32.gmra.mxu0 %v94
    %v217 = vpop.f32.mrf.mxu0
    %v218 = vadd.f32 0.0, %v217
    %219 = vmatmul.f32.gmra.mxu0 %v95
    %v220 = vpop.f32.mrf.mxu0
    %v221 = vadd.f32 0.0, %v220
    %222 = vmatmul.f32.gmra.mxu0 %v96
    %v223 = vpop.f32.mrf.mxu0
    %v224 = vadd.f32 0.0, %v223
    %225 = vdwg.mxu0
    %226 = vst [vmem:[%s4] sm:$0xff] %v131
    %227 = vst [vmem:[%s4 + $0x8] sm:$0xff] %v134
    %228 = vst [vmem:[%s4 + $0x10] sm:$0xff] %v137
    %229 = vst [vmem:[%s4 + $0x18] sm:$0xff] %v140
    %230 = vst [vmem:[%s4 + $0x20] sm:$0xff] %v143
    %231 = vst [vmem:[%s4 + $0x28] sm:$0xff] %v146
    %232 = vst [vmem:[%s4 + $0x30] sm:$0xff] %v149
    %233 = vst [vmem:[%s4 + $0x38] sm:$0xff] %v152
    %234 = vst [vmem:[%s4 + $0x40] sm:$0xff] %v155
    %235 = vst [vmem:[%s4 + $0x48] sm:$0xff] %v158
    %236 = vst [vmem:[%s4 + $0x50] sm:$0xff] %v161
    %237 = vst [vmem:[%s4 + $0x58] sm:$0xff] %v164
    %238 = vst [vmem:[%s4 + $0x60] sm:$0xff] %v167
    %239 = vst [vmem:[%s4 + $0x68] sm:$0xff] %v170
    %240 = vst [vmem:[%s4 + $0x70] sm:$0xff] %v173
    %241 = vst [vmem:[%s4 + $0x78] sm:$0xff] %v176
    %242 = vst [vmem:[%s4 + $0x80] sm:$0xff] %v179
    %243 = vst [vmem:[%s4 + $0x88] sm:$0xff] %v182
    %244 = vst [vmem:[%s4 + $0x90] sm:$0xff] %v185
    %245 = vst [vmem:[%s4 + $0x98] sm:$0xff] %v188
    %246 = vst [vmem:[%s4 + $0xa0] sm:$0xff] %v191
    %247 = vst [vmem:[%s4 + $0xa8] sm:$0xff] %v194
    %248 = vst [vmem:[%s4 + $0xb0] sm:$0xff] %v197
    %249 = vst [vmem:[%s4 + $0xb8] sm:$0xff] %v200
    %250 = vst [vmem:[%s4 + $0xc0] sm:$0xff] %v203
    %251 = vst [vmem:[%s4 + $0xc8] sm:$0xff] %v206
    %252 = vst [vmem:[%s4 + $0xd0] sm:$0xff] %v209
    %253 = vst [vmem:[%s4 + $0xd8] sm:$0xff] %v212
    %254 = vst [vmem:[%s4 + $0xe0] sm:$0xff] %v215
    %255 = vst [vmem:[%s4 + $0xe8] sm:$0xff] %v218
    %256 = vst [vmem:[%s4 + $0xf0] sm:$0xff] %v221
    %257 = vst [vmem:[%s4 + $0xf8] sm:$0xff] %v224
    // Predicated region
    $region22: #{pairnorm_forward.6} parent=1 // pred_check
      _
    $region23: #{pairnorm_forward.6} parent=1 // pred_check_branch
      %259 = sbr.rel (0) target = $region25
    $region24: #{pairnorm_forward.6} parent=1 // pred_region
      _
    $region25: #{pairnorm_forward.6} parent=1 // pred_fallthru
      _
    // Predicated region
    $region26: #{pairnorm_forward.6} parent=1 // pred_check
      _
    $region27: #{pairnorm_forward.6} parent=1 // pred_check_branch
      %261 = sbr.rel (0) target = $region29
    $region28: #{pairnorm_forward.6} parent=1 // pred_region
      _
    $region29: #{pairnorm_forward.6} parent=1 // pred_fallthru
      _
    %262 = vsyncpa [#allocation3], 1

// kernel: pairnorm_forward.5
$region0: #{pairnorm_forward.5}
  #allocation0 [shape = 'u32[]', space=smem, size = 0x4, offset = 0x4, fixed_abs, tag = 'smem constant byte address 0x4 - core index']
  #allocation1 [shape = 'u32[72,128]{1,0:T(1,128)}', space=vmem, size = 0x9000, scoped, tag = 'internal scratch']
  #allocation2 [shape = 'f32[256,128]{1,0:T(8,128)}', space=vmem, size = 0x20000, scoped, tag = 'scratch operand']
  %s0 = inlined_call_operand.hbm [shape: f32[256,256], index: 0, kind: input, shape index: {}]
  %s1 = inlined_call_operand.vmem [shape: f32[256,128], index: 1, kind: input, shape index: {}]
  %s2 = inlined_call_operand.vmem [shape: f32[1,128], index: 2, kind: input, shape index: {}]
  %s3 = inlined_call_operand.vmem [shape: f32[256,128], index: 3, kind: output, shape index: {0}]
  %s4 = inlined_call_operand.vmem [shape: f32[8,128], index: 4, kind: output, shape index: {1}]
  %5 = xla_tuple %s3, %s4
  %s6 = sld [smem:[#allocation0]]
  $region42: #{pairnorm_forward.5} parent=0
    _
  %s8 = ssub.s32 1, %s6
  %s9 = scalar_select 0, %s8, %s6
  $region1: #{pairnorm_forward.5} parent=0
    #allocation3 [shape = 'u8[262144]{0}', space=vmem, size = 0x40000, scoped, tag = 'input window, operand 0, single buffered']
    #allocation4 [shape = 's32[1]{0}', space=sflag, size = 0x4, scoped, tag = 'scoped memory for pairnorm_forward.5']
    %10 = vsyncpa [#allocation4], 0
    // Predicated region
    $region2: #{pairnorm_forward.5} parent=1 // pred_check
      _
    $region3: #{pairnorm_forward.5} parent=1 // pred_check_branch
      %12 = sbr.rel (0) target = $region5
    $region4: #{pairnorm_forward.5} parent=1 // pred_region
      %14 = vsyncadd [#allocation4], 0
      %s15 = sshll.u32 %s0, 4
      %s16 = int_to_ptr.hbm [resolvable:$true] %s15
      %s17 = sshll.u32 [#allocation3], 4
      %s18 = int_to_ptr.vmem [resolvable:$true] %s17
      %23 = dma.hbm_to_vmem [thread:$0]  %s16, 8192, %s18, [#allocation4], 256, 256, 16
    $region5: #{pairnorm_forward.5} parent=1 // pred_fallthru
      _
    // Predicated region
    $region6: #{pairnorm_forward.5} parent=1 // pred_check
      _
    $region7: #{pairnorm_forward.5} parent=1 // pred_check_branch
      %25 = sbr.rel (0) target = $region9
    $region8: #{pairnorm_forward.5} parent=1 // pred_region
      _
    $region9: #{pairnorm_forward.5} parent=1 // pred_fallthru
      _
    // Predicated region
    $region10: #{pairnorm_forward.5} parent=1 // pred_check
      _
    $region11: #{pairnorm_forward.5} parent=1 // pred_check_branch
      %27 = sbr.rel (0) target = $region13
    $region12: #{pairnorm_forward.5} parent=1 // pred_region
      _
    $region13: #{pairnorm_forward.5} parent=1 // pred_fallthru
      _
    // Predicated region
    $region14: #{pairnorm_forward.5} parent=1 // pred_check
      _
    $region15: #{pairnorm_forward.5} parent=1 // pred_check_branch
      %29 = sbr.rel (0) target = $region17
    $region16: #{pairnorm_forward.5} parent=1 // pred_region
      %31 = dma.done [#allocation4], 8192
    $region17: #{pairnorm_forward.5} parent=1 // pred_fallthru
      _
    %p32 = scmp.eq.s32.totalorder 0, 0
    // Predicated region
    $region18: #{pairnorm_forward.5} parent=1 // pred_check
      %p33 = pneg %p32
    $region19: #{pairnorm_forward.5} parent=1 // pred_check_branch
      %35 = sbr.rel (%p33) target = $region21
    $region20: #{pairnorm_forward.5} parent=1 // pred_region
      %36 = vst [vmem:[#allocation2] sm:$0xff] 0.0
      %37 = vst [vmem:[#allocation2 + $0x8] sm:$0xff] 0.0
      %38 = vst [vmem:[#allocation2 + $0x10] sm:$0xff] 0.0
      %39 = vst [vmem:[#allocation2 + $0x18] sm:$0xff] 0.0
      %40 = vst [vmem:[#allocation2 + $0x20] sm:$0xff] 0.0
      %41 = vst [vmem:[#allocation2 + $0x28] sm:$0xff] 0.0
      %42 = vst [vmem:[#allocation2 + $0x30] sm:$0xff] 0.0
      %43 = vst [vmem:[#allocation2 + $0x38] sm:$0xff] 0.0
      %44 = vst [vmem:[#allocation2 + $0x40] sm:$0xff] 0.0
      %45 = vst [vmem:[#allocation2 + $0x48] sm:$0xff] 0.0
      %46 = vst [vmem:[#allocation2 + $0x50] sm:$0xff] 0.0
      %47 = vst [vmem:[#allocation2 + $0x58] sm:$0xff] 0.0
      %48 = vst [vmem:[#allocation2 + $0x60] sm:$0xff] 0.0
      %49 = vst [vmem:[#allocation2 + $0x68] sm:$0xff] 0.0
      %50 = vst [vmem:[#allocation2 + $0x70] sm:$0xff] 0.0
      %51 = vst [vmem:[#allocation2 + $0x78] sm:$0xff] 0.0
      %52 = vst [vmem:[#allocation2 + $0x80] sm:$0xff] 0.0
      %53 = vst [vmem:[#allocation2 + $0x88] sm:$0xff] 0.0
      %54 = vst [vmem:[#allocation2 + $0x90] sm:$0xff] 0.0
      %55 = vst [vmem:[#allocation2 + $0x98] sm:$0xff] 0.0
      %56 = vst [vmem:[#allocation2 + $0xa0] sm:$0xff] 0.0
      %57 = vst [vmem:[#allocation2 + $0xa8] sm:$0xff] 0.0
      %58 = vst [vmem:[#allocation2 + $0xb0] sm:$0xff] 0.0
      %59 = vst [vmem:[#allocation2 + $0xb8] sm:$0xff] 0.0
      %60 = vst [vmem:[#allocation2 + $0xc0] sm:$0xff] 0.0
      %61 = vst [vmem:[#allocation2 + $0xc8] sm:$0xff] 0.0
      %62 = vst [vmem:[#allocation2 + $0xd0] sm:$0xff] 0.0
      %63 = vst [vmem:[#allocation2 + $0xd8] sm:$0xff] 0.0
      %64 = vst [vmem:[#allocation2 + $0xe0] sm:$0xff] 0.0
      %65 = vst [vmem:[#allocation2 + $0xe8] sm:$0xff] 0.0
      %66 = vst [vmem:[#allocation2 + $0xf0] sm:$0xff] 0.0
      %67 = vst [vmem:[#allocation2 + $0xf8] sm:$0xff] 0.0
    $region21: #{pairnorm_forward.5} parent=1 // pred_fallthru
      _
    %s68 = smul.u32 0, 256
    %s69 = scalar_lea.vmem %s1, %s68
    %v70 = vld [vmem:[%s69] sm:$0xff]
    %v71 = vld [vmem:[%s69 + $0x8] sm:$0xff]
    %v72 = vld [vmem:[%s69 + $0x10] sm:$0xff]
    %v73 = vld [vmem:[%s69 + $0x18] sm:$0xff]
    %v74 = vld [vmem:[%s69 + $0x20] sm:$0xff]
    %v75 = vld [vmem:[%s69 + $0x28] sm:$0xff]
    %v76 = vld [vmem:[%s69 + $0x30] sm:$0xff]
    %v77 = vld [vmem:[%s69 + $0x38] sm:$0xff]
    %v78 = vld [vmem:[%s69 + $0x40] sm:$0xff]
    %v79 = vld [vmem:[%s69 + $0x48] sm:$0xff]
    %v80 = vld [vmem:[%s69 + $0x50] sm:$0xff]
    %v81 = vld [vmem:[%s69 + $0x58] sm:$0xff]
    %v82 = vld [vmem:[%s69 + $0x60] sm:$0xff]
    %v83 = vld [vmem:[%s69 + $0x68] sm:$0xff]
    %v84 = vld [vmem:[%s69 + $0x70] sm:$0xff]
    %v85 = vld [vmem:[%s69 + $0x78] sm:$0xff]
    %v86 = vld [vmem:[%s69 + $0x80] sm:$0xff]
    %v87 = vld [vmem:[%s69 + $0x88] sm:$0xff]
    %v88 = vld [vmem:[%s69 + $0x90] sm:$0xff]
    %v89 = vld [vmem:[%s69 + $0x98] sm:$0xff]
    %v90 = vld [vmem:[%s69 + $0xa0] sm:$0xff]
    %v91 = vld [vmem:[%s69 + $0xa8] sm:$0xff]
    %v92 = vld [vmem:[%s69 + $0xb0] sm:$0xff]
    %v93 = vld [vmem:[%s69 + $0xb8] sm:$0xff]
    %v94 = vld [vmem:[%s69 + $0xc0] sm:$0xff]
    %v95 = vld [vmem:[%s69 + $0xc8] sm:$0xff]
    %v96 = vld [vmem:[%s69 + $0xd0] sm:$0xff]
    %v97 = vld [vmem:[%s69 + $0xd8] sm:$0xff]
    %v98 = vld [vmem:[%s69 + $0xe0] sm:$0xff]
    %v99 = vld [vmem:[%s69 + $0xe8] sm:$0xff]
    %v100 = vld [vmem:[%s69 + $0xf0] sm:$0xff]
    %v101 = vld [vmem:[%s69 + $0xf8] sm:$0xff]
    %v102 = vld [vmem:[#allocation2] sm:$0xff]
    %v103 = vld [vmem:[#allocation2 + $0x8] sm:$0xff]
    %v104 = vld [vmem:[#allocation2 + $0x10] sm:$0xff]
    %v105 = vld [vmem:[#allocation2 + $0x18] sm:$0xff]
    %v106 = vld [vmem:[#allocation2 + $0x20] sm:$0xff]
    %v107 = vld [vmem:[#allocation2 + $0x28] sm:$0xff]
    %v108 = vld [vmem:[#allocation2 + $0x30] sm:$0xff]
    %v109 = vld [vmem:[#allocation2 + $0x38] sm:$0xff]
    %v110 = vld [vmem:[#allocation2 + $0x40] sm:$0xff]
    %v111 = vld [vmem:[#allocation2 + $0x48] sm:$0xff]
    %v112 = vld [vmem:[#allocation2 + $0x50] sm:$0xff]
    %v113 = vld [vmem:[#allocation2 + $0x58] sm:$0xff]
    %v114 = vld [vmem:[#allocation2 + $0x60] sm:$0xff]
    %v115 = vld [vmem:[#allocation2 + $0x68] sm:$0xff]
    %v116 = vld [vmem:[#allocation2 + $0x70] sm:$0xff]
    %v117 = vld [vmem:[#allocation2 + $0x78] sm:$0xff]
    %v118 = vld [vmem:[#allocation2 + $0x80] sm:$0xff]
    %v119 = vld [vmem:[#allocation2 + $0x88] sm:$0xff]
    %v120 = vld [vmem:[#allocation2 + $0x90] sm:$0xff]
    %v121 = vld [vmem:[#allocation2 + $0x98] sm:$0xff]
    %v122 = vld [vmem:[#allocation2 + $0xa0] sm:$0xff]
    %v123 = vld [vmem:[#allocation2 + $0xa8] sm:$0xff]
    %v124 = vld [vmem:[#allocation2 + $0xb0] sm:$0xff]
    %v125 = vld [vmem:[#allocation2 + $0xb8] sm:$0xff]
    %v126 = vld [vmem:[#allocation2 + $0xc0] sm:$0xff]
    %v127 = vld [vmem:[#allocation2 + $0xc8] sm:$0xff]
    %v128 = vld [vmem:[#allocation2 + $0xd0] sm:$0xff]
    %v129 = vld [vmem:[#allocation2 + $0xd8] sm:$0xff]
    %v130 = vld [vmem:[#allocation2 + $0xe0] sm:$0xff]
    %v131 = vld [vmem:[#allocation2 + $0xe8] sm:$0xff]
    %v132 = vld [vmem:[#allocation2 + $0xf0] sm:$0xff]
    %v133 = vld [vmem:[#allocation2 + $0xf8] sm:$0xff]
    %v134 = vld [vmem:[#allocation3] sm:$0xff]
    %v135 = vld [vmem:[#allocation3 + $0x8] sm:$0xff]
    %v136 = vld [vmem:[#allocation3 + $0x10] sm:$0xff]
    %v137 = vld [vmem:[#allocation3 + $0x18] sm:$0xff]
    %v138 = vld [vmem:[#allocation3 + $0x20] sm:$0xff]
    %v139 = vld [vmem:[#allocation3 + $0x28] sm:$0xff]
    %v140 = vld [vmem:[#allocation3 + $0x30] sm:$0xff]
    %v141 = vld [vmem:[#allocation3 + $0x38] sm:$0xff]
    %v142 = vld [vmem:[#allocation3 + $0x40] sm:$0xff]
    %v143 = vld [vmem:[#allocation3 + $0x48] sm:$0xff]
    %v144 = vld [vmem:[#allocation3 + $0x50] sm:$0xff]
    %v145 = vld [vmem:[#allocation3 + $0x58] sm:$0xff]
    %v146 = vld [vmem:[#allocation3 + $0x60] sm:$0xff]
    %v147 = vld [vmem:[#allocation3 + $0x68] sm:$0xff]
    %v148 = vld [vmem:[#allocation3 + $0x70] sm:$0xff]
    %v149 = vld [vmem:[#allocation3 + $0x78] sm:$0xff]
    %v150 = vld [vmem:[#allocation3 + $0x80] sm:$0xff]
    %v151 = vld [vmem:[#allocation3 + $0x88] sm:$0xff]
    %v152 = vld [vmem:[#allocation3 + $0x90] sm:$0xff]
    %v153 = vld [vmem:[#allocation3 + $0x98] sm:$0xff]
    %v154 = vld [vmem:[#allocation3 + $0xa0] sm:$0xff]
    %v155 = vld [vmem:[#allocation3 + $0xa8] sm:$0xff]
    %v156 = vld [vmem:[#allocation3 + $0xb0] sm:$0xff]
    %v157 = vld [vmem:[#allocation3 + $0xb8] sm:$0xff]
    %v158 = vld [vmem:[#allocation3 + $0xc0] sm:$0xff]
    %v159 = vld [vmem:[#allocation3 + $0xc8] sm:$0xff]
    %v160 = vld [vmem:[#allocation3 + $0xd0] sm:$0xff]
    %v161 = vld [vmem:[#allocation3 + $0xd8] sm:$0xff]
    %v162 = vld [vmem:[#allocation3 + $0xe0] sm:$0xff]
    %v163 = vld [vmem:[#allocation3 + $0xe8] sm:$0xff]
    %v164 = vld [vmem:[#allocation3 + $0xf0] sm:$0xff]
    %v165 = vld [vmem:[#allocation3 + $0xf8] sm:$0xff]
    %v166 = vld [vmem:[#allocation3 + $0x100] sm:$0xff]
    %v167 = vld [vmem:[#allocation3 + $0x108] sm:$0xff]
    %v168 = vld [vmem:[#allocation3 + $0x110] sm:$0xff]
    %v169 = vld [vmem:[#allocation3 + $0x118] sm:$0xff]
    %v170 = vld [vmem:[#allocation3 + $0x120] sm:$0xff]
    %v171 = vld [vmem:[#allocation3 + $0x128] sm:$0xff]
    %v172 = vld [vmem:[#allocation3 + $0x130] sm:$0xff]
    %v173 = vld [vmem:[#allocation3 + $0x138] sm:$0xff]
    %v174 = vld [vmem:[#allocation3 + $0x140] sm:$0xff]
    %v175 = vld [vmem:[#allocation3 + $0x148] sm:$0xff]
    %v176 = vld [vmem:[#allocation3 + $0x150] sm:$0xff]
    %v177 = vld [vmem:[#allocation3 + $0x158] sm:$0xff]
    %v178 = vld [vmem:[#allocation3 + $0x160] sm:$0xff]
    %v179 = vld [vmem:[#allocation3 + $0x168] sm:$0xff]
    %v180 = vld [vmem:[#allocation3 + $0x170] sm:$0xff]
    %v181 = vld [vmem:[#allocation3 + $0x178] sm:$0xff]
    %v182 = vld [vmem:[#allocation3 + $0x180] sm:$0xff]
    %v183 = vld [vmem:[#allocation3 + $0x188] sm:$0xff]
    %v184 = vld [vmem:[#allocation3 + $0x190] sm:$0xff]
    %v185 = vld [vmem:[#allocation3 + $0x198] sm:$0xff]
    %v186 = vld [vmem:[#allocation3 + $0x1a0] sm:$0xff]
    %v187 = vld [vmem:[#allocation3 + $0x1a8] sm:$0xff]
    %v188 = vld [vmem:[#allocation3 + $0x1b0] sm:$0xff]
    %v189 = vld [vmem:[#allocation3 + $0x1b8] sm:$0xff]
    %v190 = vld [vmem:[#allocation3 + $0x1c0] sm:$0xff]
    %v191 = vld [vmem:[#allocation3 + $0x1c8] sm:$0xff]
    %v192 = vld [vmem:[#allocation3 + $0x1d0] sm:$0xff]
    %v193 = vld [vmem:[#allocation3 + $0x1d8] sm:$0xff]
    %v194 = vld [vmem:[#allocation3 + $0x1e0] sm:$0xff]
    %v195 = vld [vmem:[#allocation3 + $0x1e8] sm:$0xff]
    %v196 = vld [vmem:[#allocation3 + $0x1f0] sm:$0xff]
    %v197 = vld [vmem:[#allocation3 + $0x1f8] sm:$0xff]
    %198 = vmatpush.msra.mxu0 %v85
    %199 = vmatpush.msra.mxu0 %v84
    %200 = vmatpush.msra.mxu0 %v83
    %201 = vmatpush.msra.mxu0 %v82
    %202 = vmatpush.msra.mxu0 %v81
    %203 = vmatpush.msra.mxu0 %v80
    %204 = vmatpush.msra.mxu0 %v79
    %205 = vmatpush.msra.mxu0 %v78
    %206 = vmatpush.msra.mxu0 %v77
    %207 = vmatpush.msra.mxu0 %v76
    %208 = vmatpush.msra.mxu0 %v75
    %209 = vmatpush.msra.mxu0 %v74
    %210 = vmatpush.msra.mxu0 %v73
    %211 = vmatpush.msra.mxu0 %v72
    %212 = vmatpush.msra.mxu0 %v71
    %213 = vmatpush.msra.mxu0 %v70
    %214 = vmatmul.f32.gmra.mxu0 %v134
    %v215 = vpop.f32.mrf.mxu0
    %v216 = vadd.f32 0.0, %v215
    %217 = vmatmul.f32.gmra.mxu0 %v136
    %v218 = vpop.f32.mrf.mxu0
    %v219 = vadd.f32 0.0, %v218
    %220 = vmatmul.f32.gmra.mxu0 %v138
    %v221 = vpop.f32.mrf.mxu0
    %v222 = vadd.f32 0.0, %v221
    %223 = vmatmul.f32.gmra.mxu0 %v140
    %v224 = vpop.f32.mrf.mxu0
    %v225 = vadd.f32 0.0, %v224
    %226 = vmatmul.f32.gmra.mxu0 %v142
    %v227 = vpop.f32.mrf.mxu0
    %v228 = vadd.f32 0.0, %v227
    %229 = vmatmul.f32.gmra.mxu0 %v144
    %v230 = vpop.f32.mrf.mxu0
    %v231 = vadd.f32 0.0, %v230
    %232 = vmatmul.f32.gmra.mxu0 %v146
    %v233 = vpop.f32.mrf.mxu0
    %v234 = vadd.f32 0.0, %v233
    %235 = vmatmul.f32.gmra.mxu0 %v148
    %v236 = vpop.f32.mrf.mxu0
    %v237 = vadd.f32 0.0, %v236
    %238 = vmatmul.f32.gmra.mxu0 %v150
    %v239 = vpop.f32.mrf.mxu0
    %v240 = vadd.f32 0.0, %v239
    %241 = vmatmul.f32.gmra.mxu0 %v152
    %v242 = vpop.f32.mrf.mxu0
    %v243 = vadd.f32 0.0, %v242
    %244 = vmatmul.f32.gmra.mxu0 %v154
    %v245 = vpop.f32.mrf.mxu0
    %v246 = vadd.f32 0.0, %v245
    %247 = vmatmul.f32.gmra.mxu0 %v156
    %v248 = vpop.f32.mrf.mxu0
    %v249 = vadd.f32 0.0, %v248
    %250 = vmatmul.f32.gmra.mxu0 %v158
    %v251 = vpop.f32.mrf.mxu0
    %v252 = vadd.f32 0.0, %v251
    %253 = vmatmul.f32.gmra.mxu0 %v160
    %v254 = vpop.f32.mrf.mxu0
    %v255 = vadd.f32 0.0, %v254
    %256 = vmatmul.f32.gmra.mxu0 %v162
    %v257 = vpop.f32.mrf.mxu0
    %v258 = vadd.f32 0.0, %v257
    %259 = vmatmul.f32.gmra.mxu0 %v164
    %v260 = vpop.f32.mrf.mxu0
    %v261 = vadd.f32 0.0, %v260
    %262 = vmatmul.f32.gmra.mxu0 %v166
    %v263 = vpop.f32.mrf.mxu0
    %v264 = vadd.f32 0.0, %v263
    %265 = vmatmul.f32.gmra.mxu0 %v168
    %v266 = vpop.f32.mrf.mxu0
    %v267 = vadd.f32 0.0, %v266
    %268 = vmatmul.f32.gmra.mxu0 %v170
    %v269 = vpop.f32.mrf.mxu0
    %v270 = vadd.f32 0.0, %v269
    %271 = vmatmul.f32.gmra.mxu0 %v172
    %v272 = vpop.f32.mrf.mxu0
    %v273 = vadd.f32 0.0, %v272
    %274 = vmatmul.f32.gmra.mxu0 %v174
    %v275 = vpop.f32.mrf.mxu0
    %v276 = vadd.f32 0.0, %v275
    %277 = vmatmul.f32.gmra.mxu0 %v176
    %v278 = vpop.f32.mrf.mxu0
    %v279 = vadd.f32 0.0, %v278
    %280 = vmatmul.f32.gmra.mxu0 %v178
    %v281 = vpop.f32.mrf.mxu0
    %v282 = vadd.f32 0.0, %v281
    %283 = vmatmul.f32.gmra.mxu0 %v180
    %v284 = vpop.f32.mrf.mxu0
    %v285 = vadd.f32 0.0, %v284
    %286 = vmatmul.f32.gmra.mxu0 %v182
    %v287 = vpop.f32.mrf.mxu0
    %v288 = vadd.f32 0.0, %v287
    %289 = vmatmul.f32.gmra.mxu0 %v184
    %v290 = vpop.f32.mrf.mxu0
    %v291 = vadd.f32 0.0, %v290
    %292 = vmatmul.f32.gmra.mxu0 %v186
    %v293 = vpop.f32.mrf.mxu0
    %v294 = vadd.f32 0.0, %v293
    %295 = vmatmul.f32.gmra.mxu0 %v188
    %v296 = vpop.f32.mrf.mxu0
    %v297 = vadd.f32 0.0, %v296
    %298 = vmatmul.f32.gmra.mxu0 %v190
    %v299 = vpop.f32.mrf.mxu0
    %v300 = vadd.f32 0.0, %v299
    %301 = vmatmul.f32.gmra.mxu0 %v192
    %v302 = vpop.f32.mrf.mxu0
    %v303 = vadd.f32 0.0, %v302
    %304 = vmatmul.f32.gmra.mxu0 %v194
    %v305 = vpop.f32.mrf.mxu0
    %v306 = vadd.f32 0.0, %v305
    %307 = vmatmul.f32.gmra.mxu0 %v196
    %v308 = vpop.f32.mrf.mxu0
    %v309 = vadd.f32 0.0, %v308
    %310 = vdwg.mxu0
    %311 = vmatpush.msra.mxu0 %v101
    %312 = vmatpush.msra.mxu0 %v100
    %313 = vmatpush.msra.mxu0 %v99
    %314 = vmatpush.msra.mxu0 %v98
    %315 = vmatpush.msra.mxu0 %v97
    %316 = vmatpush.msra.mxu0 %v96
    %317 = vmatpush.msra.mxu0 %v95
    %318 = vmatpush.msra.mxu0 %v94
    %319 = vmatpush.msra.mxu0 %v93
    %320 = vmatpush.msra.mxu0 %v92
    %321 = vmatpush.msra.mxu0 %v91
    %322 = vmatpush.msra.mxu0 %v90
    %323 = vmatpush.msra.mxu0 %v89
    %324 = vmatpush.msra.mxu0 %v88
    %325 = vmatpush.msra.mxu0 %v87
    %326 = vmatpush.msra.mxu0 %v86
    %327 = vmatmul.f32.gmra.mxu0 %v135
    %v328 = vpop.f32.mrf.mxu0
    %v329 = vadd.f32 %v216, %v328
    %330 = vmatmul.f32.gmra.mxu0 %v137
    %v331 = vpop.f32.mrf.mxu0
    %v332 = vadd.f32 %v219, %v331
    %333 = vmatmul.f32.gmra.mxu0 %v139
    %v334 = vpop.f32.mrf.mxu0
    %v335 = vadd.f32 %v222, %v334
    %336 = vmatmul.f32.gmra.mxu0 %v141
    %v337 = vpop.f32.mrf.mxu0
    %v338 = vadd.f32 %v225, %v337
    %339 = vmatmul.f32.gmra.mxu0 %v143
    %v340 = vpop.f32.mrf.mxu0
    %v341 = vadd.f32 %v228, %v340
    %342 = vmatmul.f32.gmra.mxu0 %v145
    %v343 = vpop.f32.mrf.mxu0
    %v344 = vadd.f32 %v231, %v343
    %345 = vmatmul.f32.gmra.mxu0 %v147
    %v346 = vpop.f32.mrf.mxu0
    %v347 = vadd.f32 %v234, %v346
    %348 = vmatmul.f32.gmra.mxu0 %v149
    %v349 = vpop.f32.mrf.mxu0
    %v350 = vadd.f32 %v237, %v349
    %351 = vmatmul.f32.gmra.mxu0 %v151
    %v352 = vpop.f32.mrf.mxu0
    %v353 = vadd.f32 %v240, %v352
    %354 = vmatmul.f32.gmra.mxu0 %v153
    %v355 = vpop.f32.mrf.mxu0
    %v356 = vadd.f32 %v243, %v355
    %357 = vmatmul.f32.gmra.mxu0 %v155
    %v358 = vpop.f32.mrf.mxu0
    %v359 = vadd.f32 %v246, %v358
    %360 = vmatmul.f32.gmra.mxu0 %v157
    %v361 = vpop.f32.mrf.mxu0
    %v362 = vadd.f32 %v249, %v361
    %363 = vmatmul.f32.gmra.mxu0 %v159
    %v364 = vpop.f32.mrf.mxu0
    %v365 = vadd.f32 %v252, %v364
    %366 = vmatmul.f32.gmra.mxu0 %v161
    %v367 = vpop.f32.mrf.mxu0
    %v368 = vadd.f32 %v255, %v367
    %369 = vmatmul.f32.gmra.mxu0 %v163
    %v370 = vpop.f32.mrf.mxu0
    %v371 = vadd.f32 %v258, %v370
    %372 = vmatmul.f32.gmra.mxu0 %v165
    %v373 = vpop.f32.mrf.mxu0
    %v374 = vadd.f32 %v261, %v373
    %375 = vmatmul.f32.gmra.mxu0 %v167
    %v376 = vpop.f32.mrf.mxu0
    %v377 = vadd.f32 %v264, %v376
    %378 = vmatmul.f32.gmra.mxu0 %v169
    %v379 = vpop.f32.mrf.mxu0
    %v380 = vadd.f32 %v267, %v379
    %381 = vmatmul.f32.gmra.mxu0 %v171
    %v382 = vpop.f32.mrf.mxu0
    %v383 = vadd.f32 %v270, %v382
    %384 = vmatmul.f32.gmra.mxu0 %v173
    %v385 = vpop.f32.mrf.mxu0
    %v386 = vadd.f32 %v273, %v385
    %387 = vmatmul.f32.gmra.mxu0 %v175
    %v388 = vpop.f32.mrf.mxu0
    %v389 = vadd.f32 %v276, %v388
    %390 = vmatmul.f32.gmra.mxu0 %v177
    %v391 = vpop.f32.mrf.mxu0
    %v392 = vadd.f32 %v279, %v391
    %393 = vmatmul.f32.gmra.mxu0 %v179
    %v394 = vpop.f32.mrf.mxu0
    %v395 = vadd.f32 %v282, %v394
    %396 = vmatmul.f32.gmra.mxu0 %v181
    %v397 = vpop.f32.mrf.mxu0
    %v398 = vadd.f32 %v285, %v397
    %399 = vmatmul.f32.gmra.mxu0 %v183
    %v400 = vpop.f32.mrf.mxu0
    %v401 = vadd.f32 %v288, %v400
    %402 = vmatmul.f32.gmra.mxu0 %v185
    %v403 = vpop.f32.mrf.mxu0
    %v404 = vadd.f32 %v291, %v403
    %405 = vmatmul.f32.gmra.mxu0 %v187
    %v406 = vpop.f32.mrf.mxu0
    %v407 = vadd.f32 %v294, %v406
    %408 = vmatmul.f32.gmra.mxu0 %v189
    %v409 = vpop.f32.mrf.mxu0
    %v410 = vadd.f32 %v297, %v409
    %411 = vmatmul.f32.gmra.mxu0 %v191
    %v412 = vpop.f32.mrf.mxu0
    %v413 = vadd.f32 %v300, %v412
    %414 = vmatmul.f32.gmra.mxu0 %v193
    %v415 = vpop.f32.mrf.mxu0
    %v416 = vadd.f32 %v303, %v415
    %417 = vmatmul.f32.gmra.mxu0 %v195
    %v418 = vpop.f32.mrf.mxu0
    %v419 = vadd.f32 %v306, %v418
    %420 = vmatmul.f32.gmra.mxu0 %v197
    %v421 = vpop.f32.mrf.mxu0
    %v422 = vadd.f32 %v309, %v421
    %423 = vdwg.mxu0
    %v424 = vadd.f32 %v102, %v329
    %v425 = vadd.f32 %v103, %v332
    %v426 = vadd.f32 %v104, %v335
    %v427 = vadd.f32 %v105, %v338
    %v428 = vadd.f32 %v106, %v341
    %v429 = vadd.f32 %v107, %v344
    %v430 = vadd.f32 %v108, %v347
    %v431 = vadd.f32 %v109, %v350
    %v432 = vadd.f32 %v110, %v353
    %v433 = vadd.f32 %v111, %v356
    %v434 = vadd.f32 %v112, %v359
    %v435 = vadd.f32 %v113, %v362
    %v436 = vadd.f32 %v114, %v365
    %v437 = vadd.f32 %v115, %v368
    %v438 = vadd.f32 %v116, %v371
    %v439 = vadd.f32 %v117, %v374
    %v440 = vadd.f32 %v118, %v377
    %v441 = vadd.f32 %v119, %v380
    %v442 = vadd.f32 %v120, %v383
    %v443 = vadd.f32 %v121, %v386
    %v444 = vadd.f32 %v122, %v389
    %v445 = vadd.f32 %v123, %v392
    %v446 = vadd.f32 %v124, %v395
    %v447 = vadd.f32 %v125, %v398
    %v448 = vadd.f32 %v126, %v401
    %v449 = vadd.f32 %v127, %v404
    %v450 = vadd.f32 %v128, %v407
    %v451 = vadd.f32 %v129, %v410
    %v452 = vadd.f32 %v130, %v413
    %v453 = vadd.f32 %v131, %v416
    %v454 = vadd.f32 %v132, %v419
    %v455 = vadd.f32 %v133, %v422
    %456 = vst [vmem:[#allocation2] sm:$0xff] %v424
    %457 = vst [vmem:[#allocation2 + $0x8] sm:$0xff] %v425
    %458 = vst [vmem:[#allocation2 + $0x10] sm:$0xff] %v426
    %459 = vst [vmem:[#allocation2 + $0x18] sm:$0xff] %v427
    %460 = vst [vmem:[#allocation2 + $0x20] sm:$0xff] %v428
    %461 = vst [vmem:[#allocation2 + $0x28] sm:$0xff] %v429
    %462 = vst [vmem:[#allocation2 + $0x30] sm:$0xff] %v430
    %463 = vst [vmem:[#allocation2 + $0x38] sm:$0xff] %v431
    %464 = vst [vmem:[#allocation2 + $0x40] sm:$0xff] %v432
    %465 = vst [vmem:[#allocation2 + $0x48] sm:$0xff] %v433
    %466 = vst [vmem:[#allocation2 + $0x50] sm:$0xff] %v434
    %467 = vst [vmem:[#allocation2 + $0x58] sm:$0xff] %v435
    %468 = vst [vmem:[#allocation2 + $0x60] sm:$0xff] %v436
    %469 = vst [vmem:[#allocation2 + $0x68] sm:$0xff] %v437
    %470 = vst [vmem:[#allocation2 + $0x70] sm:$0xff] %v438
    %471 = vst [vmem:[#allocation2 + $0x78] sm:$0xff] %v439
    %472 = vst [vmem:[#allocation2 + $0x80] sm:$0xff] %v440
    %473 = vst [vmem:[#allocation2 + $0x88] sm:$0xff] %v441
    %474 = vst [vmem:[#allocation2 + $0x90] sm:$0xff] %v442
    %475 = vst [vmem:[#allocation2 + $0x98] sm:$0xff] %v443
    %476 = vst [vmem:[#allocation2 + $0xa0] sm:$0xff] %v444
    %477 = vst [vmem:[#allocation2 + $0xa8] sm:$0xff] %v445
    %478 = vst [vmem:[#allocation2 + $0xb0] sm:$0xff] %v446
    %479 = vst [vmem:[#allocation2 + $0xb8] sm:$0xff] %v447
    %480 = vst [vmem:[#allocation2 + $0xc0] sm:$0xff] %v448
    %481 = vst [vmem:[#allocation2 + $0xc8] sm:$0xff] %v449
    %482 = vst [vmem:[#allocation2 + $0xd0] sm:$0xff] %v450
    %483 = vst [vmem:[#allocation2 + $0xd8] sm:$0xff] %v451
    %484 = vst [vmem:[#allocation2 + $0xe0] sm:$0xff] %v452
    %485 = vst [vmem:[#allocation2 + $0xe8] sm:$0xff] %v453
    %486 = vst [vmem:[#allocation2 + $0xf0] sm:$0xff] %v454
    %487 = vst [vmem:[#allocation2 + $0xf8] sm:$0xff] %v455
    // Predicated region
    $region22: #{pairnorm_forward.5} parent=1 // pred_check
      %p488 = pneg %p32
    $region23: #{pairnorm_forward.5} parent=1 // pred_check_branch
      %490 = sbr.rel (%p488) target = $region25
    $region24: #{pairnorm_forward.5} parent=1 // pred_region
      %v491 = vld [vmem:[#allocation2] sm:$0xff]
      %v492 = vld [vmem:[#allocation2 + $0x8] sm:$0xff]
      %v493 = vld [vmem:[#allocation2 + $0x10] sm:$0xff]
      %v494 = vld [vmem:[#allocation2 + $0x18] sm:$0xff]
      %v495 = vld [vmem:[#allocation2 + $0x20] sm:$0xff]
      %v496 = vld [vmem:[#allocation2 + $0x28] sm:$0xff]
      %v497 = vld [vmem:[#allocation2 + $0x30] sm:$0xff]
      %v498 = vld [vmem:[#allocation2 + $0x38] sm:$0xff]
      %v499 = vld [vmem:[#allocation2 + $0x40] sm:$0xff]
      %v500 = vld [vmem:[#allocation2 + $0x48] sm:$0xff]
      %v501 = vld [vmem:[#allocation2 + $0x50] sm:$0xff]
      %v502 = vld [vmem:[#allocation2 + $0x58] sm:$0xff]
      %v503 = vld [vmem:[#allocation2 + $0x60] sm:$0xff]
      %v504 = vld [vmem:[#allocation2 + $0x68] sm:$0xff]
      %v505 = vld [vmem:[#allocation2 + $0x70] sm:$0xff]
      %v506 = vld [vmem:[#allocation2 + $0x78] sm:$0xff]
      %v507 = vld [vmem:[#allocation2 + $0x80] sm:$0xff]
      %v508 = vld [vmem:[#allocation2 + $0x88] sm:$0xff]
      %v509 = vld [vmem:[#allocation2 + $0x90] sm:$0xff]
      %v510 = vld [vmem:[#allocation2 + $0x98] sm:$0xff]
      %v511 = vld [vmem:[#allocation2 + $0xa0] sm:$0xff]
      %v512 = vld [vmem:[#allocation2 + $0xa8] sm:$0xff]
      %v513 = vld [vmem:[#allocation2 + $0xb0] sm:$0xff]
      %v514 = vld [vmem:[#allocation2 + $0xb8] sm:$0xff]
      %v515 = vld [vmem:[#allocation2 + $0xc0] sm:$0xff]
      %v516 = vld [vmem:[#allocation2 + $0xc8] sm:$0xff]
      %v517 = vld [vmem:[#allocation2 + $0xd0] sm:$0xff]
      %v518 = vld [vmem:[#allocation2 + $0xd8] sm:$0xff]
      %v519 = vld [vmem:[#allocation2 + $0xe0] sm:$0xff]
      %v520 = vld [vmem:[#allocation2 + $0xe8] sm:$0xff]
      %v521 = vld [vmem:[#allocation2 + $0xf0] sm:$0xff]
      %v522 = vld [vmem:[#allocation2 + $0xf8] sm:$0xff]
      %v523 = vld [vmem:[%s2] sm:$0x1]
      %v525 = vperm.slane %v523, 0
      %v527 = vadd.f32 %v491, %v525
      %v528 = vadd.f32 %v492, %v525
      %v529 = vadd.f32 %v493, %v525
      %v530 = vadd.f32 %v494, %v525
      %v531 = vadd.f32 %v495, %v525
      %v532 = vadd.f32 %v496, %v525
      %v533 = vadd.f32 %v497, %v525
      %v534 = vadd.f32 %v498, %v525
      %v535 = vadd.f32 %v499, %v525
      %v536 = vadd.f32 %v500, %v525
      %v537 = vadd.f32 %v501, %v525
      %v538 = vadd.f32 %v502, %v525
      %v539 = vadd.f32 %v503, %v525
      %v540 = vadd.f32 %v504, %v525
      %v541 = vadd.f32 %v505, %v525
      %v542 = vadd.f32 %v506, %v525
      %v543 = vadd.f32 %v507, %v525
      %v544 = vadd.f32 %v508, %v525
      %v545 = vadd.f32 %v509, %v525
      %v546 = vadd.f32 %v510, %v525
      %v547 = vadd.f32 %v511, %v525
      %v548 = vadd.f32 %v512, %v525
      %v549 = vadd.f32 %v513, %v525
      %v550 = vadd.f32 %v514, %v525
      %v551 = vadd.f32 %v515, %v525
      %v552 = vadd.f32 %v516, %v525
      %v553 = vadd.f32 %v517, %v525
      %v554 = vadd.f32 %v518, %v525
      %v555 = vadd.f32 %v519, %v525
      %v556 = vadd.f32 %v520, %v525
      %v557 = vadd.f32 %v521, %v525
      %v558 = vadd.f32 %v522, %v525
      %559 = vst [vmem:[%s3] sm:$0xff] %v527
      %560 = vst [vmem:[%s3 + $0x8] sm:$0xff] %v528
      %561 = vst [vmem:[%s3 + $0x10] sm:$0xff] %v529
      %562 = vst [vmem:[%s3 + $0x18] sm:$0xff] %v530
      %563 = vst [vmem:[%s3 + $0x20] sm:$0xff] %v531
      %564 = vst [vmem:[%s3 + $0x28] sm:$0xff] %v532
      %565 = vst [vmem:[%s3 + $0x30] sm:$0xff] %v533
      %566 = vst [vmem:[%s3 + $0x38] sm:$0xff] %v534
      %567 = vst [vmem:[%s3 + $0x40] sm:$0xff] %v535
      %568 = vst [vmem:[%s3 + $0x48] sm:$0xff] %v536
      %569 = vst [vmem:[%s3 + $0x50] sm:$0xff] %v537
      %570 = vst [vmem:[%s3 + $0x58] sm:$0xff] %v538
      %571 = vst [vmem:[%s3 + $0x60] sm:$0xff] %v539
      %572 = vst [vmem:[%s3 + $0x68] sm:$0xff] %v540
      %573 = vst [vmem:[%s3 + $0x70] sm:$0xff] %v541
      %574 = vst [vmem:[%s3 + $0x78] sm:$0xff] %v542
      %575 = vst [vmem:[%s3 + $0x80] sm:$0xff] %v543
      %576 = vst [vmem:[%s3 + $0x88] sm:$0xff] %v544
      %577 = vst [vmem:[%s3 + $0x90] sm:$0xff] %v545
      %578 = vst [vmem:[%s3 + $0x98] sm:$0xff] %v546
      %579 = vst [vmem:[%s3 + $0xa0] sm:$0xff] %v547
      %580 = vst [vmem:[%s3 + $0xa8] sm:$0xff] %v548
      %581 = vst [vmem:[%s3 + $0xb0] sm:$0xff] %v549
      %582 = vst [vmem:[%s3 + $0xb8] sm:$0xff] %v550
      %583 = vst [vmem:[%s3 + $0xc0] sm:$0xff] %v551
      %584 = vst [vmem:[%s3 + $0xc8] sm:$0xff] %v552
      %585 = vst [vmem:[%s3 + $0xd0] sm:$0xff] %v553
      %586 = vst [vmem:[%s3 + $0xd8] sm:$0xff] %v554
      %587 = vst [vmem:[%s3 + $0xe0] sm:$0xff] %v555
      %588 = vst [vmem:[%s3 + $0xe8] sm:$0xff] %v556
      %589 = vst [vmem:[%s3 + $0xf0] sm:$0xff] %v557
      %590 = vst [vmem:[%s3 + $0xf8] sm:$0xff] %v558
      %v591 = vlaneseq
      %v592 = vshrl.u32 %v591, 7
      %v593 = vadd.s32 %v592, 8
      %v594 = vadd.s32 %v592, 16
      %v595 = vadd.s32 %v592, 24
      %v596 = vadd.s32 %v592, 32
      %v597 = vadd.s32 %v592, 40
      %v598 = vadd.s32 %v592, 48
      %v599 = vadd.s32 %v592, 56
      %v600 = vadd.s32 %v592, 64
      %v601 = vadd.s32 %v592, 72
      %v602 = vadd.s32 %v592, 80
      %v603 = vadd.s32 %v592, 88
      %v604 = vadd.s32 %v592, 96
      %v605 = vadd.s32 %v592, 104
      %v606 = vadd.s32 %v592, 112
      %v607 = vadd.s32 %v592, 120
      %v608 = vadd.s32 %v592, 128
      %v609 = vadd.s32 %v592, 136
      %v610 = vadd.s32 %v592, 144
      %v611 = vadd.s32 %v592, 152
      %v612 = vadd.s32 %v592, 160
      %v613 = vadd.s32 %v592, 168
      %v614 = vadd.s32 %v592, 176
      %v615 = vadd.s32 %v592, 184
      %v616 = vadd.s32 %v592, 192
      %v617 = vadd.s32 %v592, 200
      %v618 = vadd.s32 %v592, 208
      %v619 = vadd.s32 %v592, 216
      %v620 = vadd.s32 %v592, 224
      %v621 = vadd.s32 %v592, 232
      %v622 = vadd.s32 %v592, 240
      %v623 = vadd.s32 %v592, 248
      %s624 = smul.u32 0, 256
      %v625 = vstv %s624
      %v626 = vadd.s32 %v592, %v625
      %v627 = vadd.s32 %v593, %v625
      %v628 = vadd.s32 %v594, %v625
      %v629 = vadd.s32 %v595, %v625
      %v630 = vadd.s32 %v596, %v625
      %v631 = vadd.s32 %v597, %v625
      %v632 = vadd.s32 %v598, %v625
      %v633 = vadd.s32 %v599, %v625
      %v634 = vadd.s32 %v600, %v625
      %v635 = vadd.s32 %v601, %v625
      %v636 = vadd.s32 %v602, %v625
      %v637 = vadd.s32 %v603, %v625
      %v638 = vadd.s32 %v604, %v625
      %v639 = vadd.s32 %v605, %v625
      %v640 = vadd.s32 %v606, %v625
      %v641 = vadd.s32 %v607, %v625
      %v642 = vadd.s32 %v608, %v625
      %v643 = vadd.s32 %v609, %v625
      %v644 = vadd.s32 %v610, %v625
      %v645 = vadd.s32 %v611, %v625
      %v646 = vadd.s32 %v612, %v625
      %v647 = vadd.s32 %v613, %v625
      %v648 = vadd.s32 %v614, %v625
      %v649 = vadd.s32 %v615, %v625
      %v650 = vadd.s32 %v616, %v625
      %v651 = vadd.s32 %v617, %v625
      %v652 = vadd.s32 %v618, %v625
      %v653 = vadd.s32 %v619, %v625
      %v654 = vadd.s32 %v620, %v625
      %v655 = vadd.s32 %v621, %v625
      %v656 = vadd.s32 %v622, %v625
      %v657 = vadd.s32 %v623, %v625
      %vm658 = vcmp.lt.s32.totalorder %v626, 16
      %vm659 = vcmp.lt.s32.totalorder %v627, 16
      %vm660 = vcmp.lt.s32.totalorder %v628, 16
      %vm661 = vcmp.lt.s32.totalorder %v629, 16
      %vm662 = vcmp.lt.s32.totalorder %v630, 16
      %vm663 = vcmp.lt.s32.totalorder %v631, 16
      %vm664 = vcmp.lt.s32.totalorder %v632, 16
      %vm665 = vcmp.lt.s32.totalorder %v633, 16
      %vm666 = vcmp.lt.s32.totalorder %v634, 16
      %vm667 = vcmp.lt.s32.totalorder %v635, 16
      %vm668 = vcmp.lt.s32.totalorder %v636, 16
      %vm669 = vcmp.lt.s32.totalorder %v637, 16
      %vm670 = vcmp.lt.s32.totalorder %v638, 16
      %vm671 = vcmp.lt.s32.totalorder %v639, 16
      %vm672 = vcmp.lt.s32.totalorder %v640, 16
      %vm673 = vcmp.lt.s32.totalorder %v641, 16
      %vm674 = vcmp.lt.s32.totalorder %v642, 16
      %vm675 = vcmp.lt.s32.totalorder %v643, 16
      %vm676 = vcmp.lt.s32.totalorder %v644, 16
      %vm677 = vcmp.lt.s32.totalorder %v645, 16
      %vm678 = vcmp.lt.s32.totalorder %v646, 16
      %vm679 = vcmp.lt.s32.totalorder %v647, 16
      %vm680 = vcmp.lt.s32.totalorder %v648, 16
      %vm681 = vcmp.lt.s32.totalorder %v649, 16
      %vm682 = vcmp.lt.s32.totalorder %v650, 16
      %vm683 = vcmp.lt.s32.totalorder %v651, 16
      %vm684 = vcmp.lt.s32.totalorder %v652, 16
      %vm685 = vcmp.lt.s32.totalorder %v653, 16
      %vm686 = vcmp.lt.s32.totalorder %v654, 16
      %vm687 = vcmp.lt.s32.totalorder %v655, 16
      %vm688 = vcmp.lt.s32.totalorder %v656, 16
      %vm689 = vcmp.lt.s32.totalorder %v657, 16
      %v690 = vsel %vm658, %v527, 0.0
      %v691 = vsel %vm659, %v528, 0.0
      %v692 = vsel %vm660, %v529, 0.0
      %v693 = vsel %vm661, %v530, 0.0
      %v694 = vsel %vm662, %v531, 0.0
      %v695 = vsel %vm663, %v532, 0.0
      %v696 = vsel %vm664, %v533, 0.0
      %v697 = vsel %vm665, %v534, 0.0
      %v698 = vsel %vm666, %v535, 0.0
      %v699 = vsel %vm667, %v536, 0.0
      %v700 = vsel %vm668, %v537, 0.0
      %v701 = vsel %vm669, %v538, 0.0
      %v702 = vsel %vm670, %v539, 0.0
      %v703 = vsel %vm671, %v540, 0.0
      %v704 = vsel %vm672, %v541, 0.0
      %v705 = vsel %vm673, %v542, 0.0
      %v706 = vsel %vm674, %v543, 0.0
      %v707 = vsel %vm675, %v544, 0.0
      %v708 = vsel %vm676, %v545, 0.0
      %v709 = vsel %vm677, %v546, 0.0
      %v710 = vsel %vm678, %v547, 0.0
      %v711 = vsel %vm679, %v548, 0.0
      %v712 = vsel %vm680, %v549, 0.0
      %v713 = vsel %vm681, %v550, 0.0
      %v714 = vsel %vm682, %v551, 0.0
      %v715 = vsel %vm683, %v552, 0.0
      %v716 = vsel %vm684, %v553, 0.0
      %v717 = vsel %vm685, %v554, 0.0
      %v718 = vsel %vm686, %v555, 0.0
      %v719 = vsel %vm687, %v556, 0.0
      %v720 = vsel %vm688, %v557, 0.0
      %v721 = vsel %vm689, %v558, 0.0
      %v722 = vadd.f32 %v690, %v691
      %v723 = vadd.f32 %v722, %v692
      %v724 = vadd.f32 %v723, %v693
      %v725 = vadd.f32 %v724, %v694
      %v726 = vadd.f32 %v725, %v695
      %v727 = vadd.f32 %v726, %v696
      %v728 = vadd.f32 %v727, %v697
      %v729 = vadd.f32 %v728, %v698
      %v730 = vadd.f32 %v729, %v699
      %v731 = vadd.f32 %v730, %v700
      %v732 = vadd.f32 %v731, %v701
      %v733 = vadd.f32 %v732, %v702
      %v734 = vadd.f32 %v733, %v703
      %v735 = vadd.f32 %v734, %v704
      %v736 = vadd.f32 %v735, %v705
      %v737 = vadd.f32 %v736, %v706
      %v738 = vadd.f32 %v737, %v707
      %v739 = vadd.f32 %v738, %v708
      %v740 = vadd.f32 %v739, %v709
      %v741 = vadd.f32 %v740, %v710
      %v742 = vadd.f32 %v741, %v711
      %v743 = vadd.f32 %v742, %v712
      %v744 = vadd.f32 %v743, %v713
      %v745 = vadd.f32 %v744, %v714
      %v746 = vadd.f32 %v745, %v715
      %v747 = vadd.f32 %v746, %v716
      %v748 = vadd.f32 %v747, %v717
      %v749 = vadd.f32 %v748, %v718
      %v750 = vadd.f32 %v749, %v719
      %v751 = vadd.f32 %v750, %v720
      %v752 = vadd.f32 %v751, %v721
      %v753 = vrot.slane %v752, 4
      %v754 = vadd.f32 %v752, %v753
      %v755 = vrot.slane %v754, 2
      %v756 = vadd.f32 %v754, %v755
      %v757 = vrot.slane %v756, 1
      %v758 = vadd.f32 %v756, %v757
      %v759 = vmul.f32 %v690, %v690
      %v760 = vmul.f32 %v691, %v691
      %v761 = vmul.f32 %v692, %v692
      %v762 = vmul.f32 %v693, %v693
      %v763 = vmul.f32 %v694, %v694
      %v764 = vmul.f32 %v695, %v695
      %v765 = vmul.f32 %v696, %v696
      %v766 = vmul.f32 %v697, %v697
      %v767 = vmul.f32 %v698, %v698
      %v768 = vmul.f32 %v699, %v699
      %v769 = vmul.f32 %v700, %v700
      %v770 = vmul.f32 %v701, %v701
      %v771 = vmul.f32 %v702, %v702
      %v772 = vmul.f32 %v703, %v703
      %v773 = vmul.f32 %v704, %v704
      %v774 = vmul.f32 %v705, %v705
      %v775 = vmul.f32 %v706, %v706
      %v776 = vmul.f32 %v707, %v707
      %v777 = vmul.f32 %v708, %v708
      %v778 = vmul.f32 %v709, %v709
      %v779 = vmul.f32 %v710, %v710
      %v780 = vmul.f32 %v711, %v711
      %v781 = vmul.f32 %v712, %v712
      %v782 = vmul.f32 %v713, %v713
      %v783 = vmul.f32 %v714, %v714
      %v784 = vmul.f32 %v715, %v715
      %v785 = vmul.f32 %v716, %v716
      %v786 = vmul.f32 %v717, %v717
      %v787 = vmul.f32 %v718, %v718
      %v788 = vmul.f32 %v719, %v719
      %v789 = vmul.f32 %v720, %v720
      %v790 = vmul.f32 %v721, %v721
      %v791 = vadd.f32 %v759, %v760
      %v792 = vadd.f32 %v791, %v761
      %v793 = vadd.f32 %v792, %v762
      %v794 = vadd.f32 %v793, %v763
      %v795 = vadd.f32 %v794, %v764
      %v796 = vadd.f32 %v795, %v765
      %v797 = vadd.f32 %v796, %v766
      %v798 = vadd.f32 %v797, %v767
      %v799 = vadd.f32 %v798, %v768
      %v800 = vadd.f32 %v799, %v769
      %v801 = vadd.f32 %v800, %v770
      %v802 = vadd.f32 %v801, %v771
      %v803 = vadd.f32 %v802, %v772
      %v804 = vadd.f32 %v803, %v773
      %v805 = vadd.f32 %v804, %v774
      %v806 = vadd.f32 %v805, %v775
      %v807 = vadd.f32 %v806, %v776
      %v808 = vadd.f32 %v807, %v777
      %v809 = vadd.f32 %v808, %v778
      %v810 = vadd.f32 %v809, %v779
      %v811 = vadd.f32 %v810, %v780
      %v812 = vadd.f32 %v811, %v781
      %v813 = vadd.f32 %v812, %v782
      %v814 = vadd.f32 %v813, %v783
      %v815 = vadd.f32 %v814, %v784
      %v816 = vadd.f32 %v815, %v785
      %v817 = vadd.f32 %v816, %v786
      %v818 = vadd.f32 %v817, %v787
      %v819 = vadd.f32 %v818, %v788
      %v820 = vadd.f32 %v819, %v789
      %v821 = vadd.f32 %v820, %v790
      %v822 = vrot.slane %v821, 4
      %v823 = vadd.f32 %v821, %v822
      %v824 = vrot.slane %v823, 2
      %v825 = vadd.f32 %v823, %v824
      %v826 = vrot.slane %v825, 1
      %v827 = vadd.f32 %v825, %v826
      %vm828 = vcmp.eq.s32.totalorder %v592, 0
      %v829 = vsel %vm828, %v758, 0.0
      %vm830 = vcmp.eq.s32.totalorder %v592, 1
      %v831 = vsel %vm830, %v827, 0.0
      %v832 = vadd.f32 %v829, %v831
      %833 = vst [vmem:[%s4] sm:$0xff] %v832
    $region25: #{pairnorm_forward.5} parent=1 // pred_fallthru
      _
    // Predicated region
    $region26: #{pairnorm_forward.5} parent=1 // pred_check
      _
    $region27: #{pairnorm_forward.5} parent=1 // pred_check_branch
      %835 = sbr.rel (0) target = $region29
    $region28: #{pairnorm_forward.5} parent=1 // pred_region
      _
    $region29: #{pairnorm_forward.5} parent=1 // pred_fallthru
      _
    // Predicated region
    $region30: #{pairnorm_forward.5} parent=1 // pred_check
      _
    $region31: #{pairnorm_forward.5} parent=1 // pred_check_branch
      %837 = sbr.rel (0) target = $region33
    $region32: #{pairnorm_forward.5} parent=1 // pred_region
      _
    $region33: #{pairnorm_forward.5} parent=1 // pred_fallthru
      _
    // Predicated region
    $region34: #{pairnorm_forward.5} parent=1 // pred_check
      _
    $region35: #{pairnorm_forward.5} parent=1 // pred_check_branch
      %839 = sbr.rel (0) target = $region37
    $region36: #{pairnorm_forward.5} parent=1 // pred_region
      _
    $region37: #{pairnorm_forward.5} parent=1 // pred_fallthru
      _
    // Predicated region
    $region38: #{pairnorm_forward.5} parent=1 // pred_check
      _
    $region39: #{pairnorm_forward.5} parent=1 // pred_check_branch
      %841 = sbr.rel (0) target = $region41
    $region40: #{pairnorm_forward.5} parent=1 // pred_region
      _
    $region41: #{pairnorm_forward.5} parent=1 // pred_fallthru
      _
    %842 = vsyncpa [#allocation4], 1

// kernel: pairnorm_forward.7
$region0: #{pairnorm_forward.7}
  #allocation0 [shape = 'u32[]', space=smem, size = 0x4, offset = 0x4, fixed_abs, tag = 'smem constant byte address 0x4 - core index']
  #allocation1 [shape = 'u32[72,128]{1,0:T(1,128)}', space=vmem, size = 0x9000, scoped, tag = 'internal scratch']
  #allocation2 [shape = 'f32[256,128]{1,0:T(8,128)}', space=vmem, size = 0x20000, scoped, tag = 'scratch operand']
  %s0 = inlined_call_operand.hbm [shape: f32[256,256], index: 0, kind: input, shape index: {}]
  %s1 = inlined_call_operand.vmem [shape: f32[256,128], index: 1, kind: input, shape index: {}]
  %s2 = inlined_call_operand.vmem [shape: f32[1,128], index: 2, kind: input, shape index: {}]
  %s3 = inlined_call_operand.vmem [shape: f32[256,128], index: 3, kind: output, shape index: {}]
  %s4 = sld [smem:[#allocation0]]
  $region34: #{pairnorm_forward.7} parent=0
    _
  %s6 = ssub.s32 1, %s4
  %s7 = scalar_select 0, %s6, %s4
  $region1: #{pairnorm_forward.7} parent=0
    #allocation3 [shape = 'u8[262144]{0}', space=vmem, size = 0x40000, scoped, tag = 'input window, operand 0, single buffered']
    #allocation4 [shape = 's32[1]{0}', space=sflag, size = 0x4, scoped, tag = 'scoped memory for pairnorm_forward.7']
    %8 = vsyncpa [#allocation4], 0
    // Predicated region
    $region2: #{pairnorm_forward.7} parent=1 // pred_check
      _
    $region3: #{pairnorm_forward.7} parent=1 // pred_check_branch
      %10 = sbr.rel (0) target = $region5
    $region4: #{pairnorm_forward.7} parent=1 // pred_region
      %12 = vsyncadd [#allocation4], 0
      %s13 = sshll.u32 %s0, 4
      %s14 = int_to_ptr.hbm [resolvable:$true] %s13
      %s15 = sshll.u32 [#allocation3], 4
      %s16 = int_to_ptr.vmem [resolvable:$true] %s15
      %21 = dma.hbm_to_vmem [thread:$0]  %s14, 8192, %s16, [#allocation4], 256, 256, 16
    $region5: #{pairnorm_forward.7} parent=1 // pred_fallthru
      _
    // Predicated region
    $region6: #{pairnorm_forward.7} parent=1 // pred_check
      _
    $region7: #{pairnorm_forward.7} parent=1 // pred_check_branch
      %23 = sbr.rel (0) target = $region9
    $region8: #{pairnorm_forward.7} parent=1 // pred_region
      _
    $region9: #{pairnorm_forward.7} parent=1 // pred_fallthru
      _
    // Predicated region
    $region10: #{pairnorm_forward.7} parent=1 // pred_check
      _
    $region11: #{pairnorm_forward.7} parent=1 // pred_check_branch
      %25 = sbr.rel (0) target = $region13
    $region12: #{pairnorm_forward.7} parent=1 // pred_region
      _
    $region13: #{pairnorm_forward.7} parent=1 // pred_fallthru
      _
    // Predicated region
    $region14: #{pairnorm_forward.7} parent=1 // pred_check
      _
    $region15: #{pairnorm_forward.7} parent=1 // pred_check_branch
      %27 = sbr.rel (0) target = $region17
    $region16: #{pairnorm_forward.7} parent=1 // pred_region
      %29 = dma.done [#allocation4], 8192
    $region17: #{pairnorm_forward.7} parent=1 // pred_fallthru
      _
    %p30 = scmp.eq.s32.totalorder 0, 0
    // Predicated region
    $region18: #{pairnorm_forward.7} parent=1 // pred_check
      %p31 = pneg %p30
    $region19: #{pairnorm_forward.7} parent=1 // pred_check_branch
      %33 = sbr.rel (%p31) target = $region21
    $region20: #{pairnorm_forward.7} parent=1 // pred_region
      %34 = vst [vmem:[#allocation2] sm:$0xff] 0.0
      %35 = vst [vmem:[#allocation2 + $0x8] sm:$0xff] 0.0
      %36 = vst [vmem:[#allocation2 + $0x10] sm:$0xff] 0.0
      %37 = vst [vmem:[#allocation2 + $0x18] sm:$0xff] 0.0
      %38 = vst [vmem:[#allocation2 + $0x20] sm:$0xff] 0.0
      %39 = vst [vmem:[#allocation2 + $0x28] sm:$0xff] 0.0
      %40 = vst [vmem:[#allocation2 + $0x30] sm:$0xff] 0.0
      %41 = vst [vmem:[#allocation2 + $0x38] sm:$0xff] 0.0
      %42 = vst [vmem:[#allocation2 + $0x40] sm:$0xff] 0.0
      %43 = vst [vmem:[#allocation2 + $0x48] sm:$0xff] 0.0
      %44 = vst [vmem:[#allocation2 + $0x50] sm:$0xff] 0.0
      %45 = vst [vmem:[#allocation2 + $0x58] sm:$0xff] 0.0
      %46 = vst [vmem:[#allocation2 + $0x60] sm:$0xff] 0.0
      %47 = vst [vmem:[#allocation2 + $0x68] sm:$0xff] 0.0
      %48 = vst [vmem:[#allocation2 + $0x70] sm:$0xff] 0.0
      %49 = vst [vmem:[#allocation2 + $0x78] sm:$0xff] 0.0
      %50 = vst [vmem:[#allocation2 + $0x80] sm:$0xff] 0.0
      %51 = vst [vmem:[#allocation2 + $0x88] sm:$0xff] 0.0
      %52 = vst [vmem:[#allocation2 + $0x90] sm:$0xff] 0.0
      %53 = vst [vmem:[#allocation2 + $0x98] sm:$0xff] 0.0
      %54 = vst [vmem:[#allocation2 + $0xa0] sm:$0xff] 0.0
      %55 = vst [vmem:[#allocation2 + $0xa8] sm:$0xff] 0.0
      %56 = vst [vmem:[#allocation2 + $0xb0] sm:$0xff] 0.0
      %57 = vst [vmem:[#allocation2 + $0xb8] sm:$0xff] 0.0
      %58 = vst [vmem:[#allocation2 + $0xc0] sm:$0xff] 0.0
      %59 = vst [vmem:[#allocation2 + $0xc8] sm:$0xff] 0.0
      %60 = vst [vmem:[#allocation2 + $0xd0] sm:$0xff] 0.0
      %61 = vst [vmem:[#allocation2 + $0xd8] sm:$0xff] 0.0
      %62 = vst [vmem:[#allocation2 + $0xe0] sm:$0xff] 0.0
      %63 = vst [vmem:[#allocation2 + $0xe8] sm:$0xff] 0.0
      %64 = vst [vmem:[#allocation2 + $0xf0] sm:$0xff] 0.0
      %65 = vst [vmem:[#allocation2 + $0xf8] sm:$0xff] 0.0
    $region21: #{pairnorm_forward.7} parent=1 // pred_fallthru
      _
    %s66 = smul.u32 0, 256
    %s67 = scalar_lea.vmem %s1, %s66
    %v68 = vld [vmem:[%s67] sm:$0xff]
    %v69 = vld [vmem:[%s67 + $0x8] sm:$0xff]
    %v70 = vld [vmem:[%s67 + $0x10] sm:$0xff]
    %v71 = vld [vmem:[%s67 + $0x18] sm:$0xff]
    %v72 = vld [vmem:[%s67 + $0x20] sm:$0xff]
    %v73 = vld [vmem:[%s67 + $0x28] sm:$0xff]
    %v74 = vld [vmem:[%s67 + $0x30] sm:$0xff]
    %v75 = vld [vmem:[%s67 + $0x38] sm:$0xff]
    %v76 = vld [vmem:[%s67 + $0x40] sm:$0xff]
    %v77 = vld [vmem:[%s67 + $0x48] sm:$0xff]
    %v78 = vld [vmem:[%s67 + $0x50] sm:$0xff]
    %v79 = vld [vmem:[%s67 + $0x58] sm:$0xff]
    %v80 = vld [vmem:[%s67 + $0x60] sm:$0xff]
    %v81 = vld [vmem:[%s67 + $0x68] sm:$0xff]
    %v82 = vld [vmem:[%s67 + $0x70] sm:$0xff]
    %v83 = vld [vmem:[%s67 + $0x78] sm:$0xff]
    %v84 = vld [vmem:[%s67 + $0x80] sm:$0xff]
    %v85 = vld [vmem:[%s67 + $0x88] sm:$0xff]
    %v86 = vld [vmem:[%s67 + $0x90] sm:$0xff]
    %v87 = vld [vmem:[%s67 + $0x98] sm:$0xff]
    %v88 = vld [vmem:[%s67 + $0xa0] sm:$0xff]
    %v89 = vld [vmem:[%s67 + $0xa8] sm:$0xff]
    %v90 = vld [vmem:[%s67 + $0xb0] sm:$0xff]
    %v91 = vld [vmem:[%s67 + $0xb8] sm:$0xff]
    %v92 = vld [vmem:[%s67 + $0xc0] sm:$0xff]
    %v93 = vld [vmem:[%s67 + $0xc8] sm:$0xff]
    %v94 = vld [vmem:[%s67 + $0xd0] sm:$0xff]
    %v95 = vld [vmem:[%s67 + $0xd8] sm:$0xff]
    %v96 = vld [vmem:[%s67 + $0xe0] sm:$0xff]
    %v97 = vld [vmem:[%s67 + $0xe8] sm:$0xff]
    %v98 = vld [vmem:[%s67 + $0xf0] sm:$0xff]
    %v99 = vld [vmem:[%s67 + $0xf8] sm:$0xff]
    %v100 = vld [vmem:[#allocation2] sm:$0xff]
    %v101 = vld [vmem:[#allocation2 + $0x8] sm:$0xff]
    %v102 = vld [vmem:[#allocation2 + $0x10] sm:$0xff]
    %v103 = vld [vmem:[#allocation2 + $0x18] sm:$0xff]
    %v104 = vld [vmem:[#allocation2 + $0x20] sm:$0xff]
    %v105 = vld [vmem:[#allocation2 + $0x28] sm:$0xff]
    %v106 = vld [vmem:[#allocation2 + $0x30] sm:$0xff]
    %v107 = vld [vmem:[#allocation2 + $0x38] sm:$0xff]
    %v108 = vld [vmem:[#allocation2 + $0x40] sm:$0xff]
    %v109 = vld [vmem:[#allocation2 + $0x48] sm:$0xff]
    %v110 = vld [vmem:[#allocation2 + $0x50] sm:$0xff]
    %v111 = vld [vmem:[#allocation2 + $0x58] sm:$0xff]
    %v112 = vld [vmem:[#allocation2 + $0x60] sm:$0xff]
    %v113 = vld [vmem:[#allocation2 + $0x68] sm:$0xff]
    %v114 = vld [vmem:[#allocation2 + $0x70] sm:$0xff]
    %v115 = vld [vmem:[#allocation2 + $0x78] sm:$0xff]
    %v116 = vld [vmem:[#allocation2 + $0x80] sm:$0xff]
    %v117 = vld [vmem:[#allocation2 + $0x88] sm:$0xff]
    %v118 = vld [vmem:[#allocation2 + $0x90] sm:$0xff]
    %v119 = vld [vmem:[#allocation2 + $0x98] sm:$0xff]
    %v120 = vld [vmem:[#allocation2 + $0xa0] sm:$0xff]
    %v121 = vld [vmem:[#allocation2 + $0xa8] sm:$0xff]
    %v122 = vld [vmem:[#allocation2 + $0xb0] sm:$0xff]
    %v123 = vld [vmem:[#allocation2 + $0xb8] sm:$0xff]
    %v124 = vld [vmem:[#allocation2 + $0xc0] sm:$0xff]
    %v125 = vld [vmem:[#allocation2 + $0xc8] sm:$0xff]
    %v126 = vld [vmem:[#allocation2 + $0xd0] sm:$0xff]
    %v127 = vld [vmem:[#allocation2 + $0xd8] sm:$0xff]
    %v128 = vld [vmem:[#allocation2 + $0xe0] sm:$0xff]
    %v129 = vld [vmem:[#allocation2 + $0xe8] sm:$0xff]
    %v130 = vld [vmem:[#allocation2 + $0xf0] sm:$0xff]
    %v131 = vld [vmem:[#allocation2 + $0xf8] sm:$0xff]
    %v132 = vld [vmem:[#allocation3] sm:$0xff]
    %v133 = vld [vmem:[#allocation3 + $0x8] sm:$0xff]
    %v134 = vld [vmem:[#allocation3 + $0x10] sm:$0xff]
    %v135 = vld [vmem:[#allocation3 + $0x18] sm:$0xff]
    %v136 = vld [vmem:[#allocation3 + $0x20] sm:$0xff]
    %v137 = vld [vmem:[#allocation3 + $0x28] sm:$0xff]
    %v138 = vld [vmem:[#allocation3 + $0x30] sm:$0xff]
    %v139 = vld [vmem:[#allocation3 + $0x38] sm:$0xff]
    %v140 = vld [vmem:[#allocation3 + $0x40] sm:$0xff]
    %v141 = vld [vmem:[#allocation3 + $0x48] sm:$0xff]
    %v142 = vld [vmem:[#allocation3 + $0x50] sm:$0xff]
    %v143 = vld [vmem:[#allocation3 + $0x58] sm:$0xff]
    %v144 = vld [vmem:[#allocation3 + $0x60] sm:$0xff]
    %v145 = vld [vmem:[#allocation3 + $0x68] sm:$0xff]
    %v146 = vld [vmem:[#allocation3 + $0x70] sm:$0xff]
    %v147 = vld [vmem:[#allocation3 + $0x78] sm:$0xff]
    %v148 = vld [vmem:[#allocation3 + $0x80] sm:$0xff]
    %v149 = vld [vmem:[#allocation3 + $0x88] sm:$0xff]
    %v150 = vld [vmem:[#allocation3 + $0x90] sm:$0xff]
    %v151 = vld [vmem:[#allocation3 + $0x98] sm:$0xff]
    %v152 = vld [vmem:[#allocation3 + $0xa0] sm:$0xff]
    %v153 = vld [vmem:[#allocation3 + $0xa8] sm:$0xff]
    %v154 = vld [vmem:[#allocation3 + $0xb0] sm:$0xff]
    %v155 = vld [vmem:[#allocation3 + $0xb8] sm:$0xff]
    %v156 = vld [vmem:[#allocation3 + $0xc0] sm:$0xff]
    %v157 = vld [vmem:[#allocation3 + $0xc8] sm:$0xff]
    %v158 = vld [vmem:[#allocation3 + $0xd0] sm:$0xff]
    %v159 = vld [vmem:[#allocation3 + $0xd8] sm:$0xff]
    %v160 = vld [vmem:[#allocation3 + $0xe0] sm:$0xff]
    %v161 = vld [vmem:[#allocation3 + $0xe8] sm:$0xff]
    %v162 = vld [vmem:[#allocation3 + $0xf0] sm:$0xff]
    %v163 = vld [vmem:[#allocation3 + $0xf8] sm:$0xff]
    %v164 = vld [vmem:[#allocation3 + $0x100] sm:$0xff]
    %v165 = vld [vmem:[#allocation3 + $0x108] sm:$0xff]
    %v166 = vld [vmem:[#allocation3 + $0x110] sm:$0xff]
    %v167 = vld [vmem:[#allocation3 + $0x118] sm:$0xff]
    %v168 = vld [vmem:[#allocation3 + $0x120] sm:$0xff]
    %v169 = vld [vmem:[#allocation3 + $0x128] sm:$0xff]
    %v170 = vld [vmem:[#allocation3 + $0x130] sm:$0xff]
    %v171 = vld [vmem:[#allocation3 + $0x138] sm:$0xff]
    %v172 = vld [vmem:[#allocation3 + $0x140] sm:$0xff]
    %v173 = vld [vmem:[#allocation3 + $0x148] sm:$0xff]
    %v174 = vld [vmem:[#allocation3 + $0x150] sm:$0xff]
    %v175 = vld [vmem:[#allocation3 + $0x158] sm:$0xff]
    %v176 = vld [vmem:[#allocation3 + $0x160] sm:$0xff]
    %v177 = vld [vmem:[#allocation3 + $0x168] sm:$0xff]
    %v178 = vld [vmem:[#allocation3 + $0x170] sm:$0xff]
    %v179 = vld [vmem:[#allocation3 + $0x178] sm:$0xff]
    %v180 = vld [vmem:[#allocation3 + $0x180] sm:$0xff]
    %v181 = vld [vmem:[#allocation3 + $0x188] sm:$0xff]
    %v182 = vld [vmem:[#allocation3 + $0x190] sm:$0xff]
    %v183 = vld [vmem:[#allocation3 + $0x198] sm:$0xff]
    %v184 = vld [vmem:[#allocation3 + $0x1a0] sm:$0xff]
    %v185 = vld [vmem:[#allocation3 + $0x1a8] sm:$0xff]
    %v186 = vld [vmem:[#allocation3 + $0x1b0] sm:$0xff]
    %v187 = vld [vmem:[#allocation3 + $0x1b8] sm:$0xff]
    %v188 = vld [vmem:[#allocation3 + $0x1c0] sm:$0xff]
    %v189 = vld [vmem:[#allocation3 + $0x1c8] sm:$0xff]
    %v190 = vld [vmem:[#allocation3 + $0x1d0] sm:$0xff]
    %v191 = vld [vmem:[#allocation3 + $0x1d8] sm:$0xff]
    %v192 = vld [vmem:[#allocation3 + $0x1e0] sm:$0xff]
    %v193 = vld [vmem:[#allocation3 + $0x1e8] sm:$0xff]
    %v194 = vld [vmem:[#allocation3 + $0x1f0] sm:$0xff]
    %v195 = vld [vmem:[#allocation3 + $0x1f8] sm:$0xff]
    %196 = vmatpush.msra.mxu0 %v83
    %197 = vmatpush.msra.mxu0 %v82
    %198 = vmatpush.msra.mxu0 %v81
    %199 = vmatpush.msra.mxu0 %v80
    %200 = vmatpush.msra.mxu0 %v79
    %201 = vmatpush.msra.mxu0 %v78
    %202 = vmatpush.msra.mxu0 %v77
    %203 = vmatpush.msra.mxu0 %v76
    %204 = vmatpush.msra.mxu0 %v75
    %205 = vmatpush.msra.mxu0 %v74
    %206 = vmatpush.msra.mxu0 %v73
    %207 = vmatpush.msra.mxu0 %v72
    %208 = vmatpush.msra.mxu0 %v71
    %209 = vmatpush.msra.mxu0 %v70
    %210 = vmatpush.msra.mxu0 %v69
    %211 = vmatpush.msra.mxu0 %v68
    %212 = vmatmul.f32.gmra.mxu0 %v132
    %v213 = vpop.f32.mrf.mxu0
    %v214 = vadd.f32 0.0, %v213
    %215 = vmatmul.f32.gmra.mxu0 %v134
    %v216 = vpop.f32.mrf.mxu0
    %v217 = vadd.f32 0.0, %v216
    %218 = vmatmul.f32.gmra.mxu0 %v136
    %v219 = vpop.f32.mrf.mxu0
    %v220 = vadd.f32 0.0, %v219
    %221 = vmatmul.f32.gmra.mxu0 %v138
    %v222 = vpop.f32.mrf.mxu0
    %v223 = vadd.f32 0.0, %v222
    %224 = vmatmul.f32.gmra.mxu0 %v140
    %v225 = vpop.f32.mrf.mxu0
    %v226 = vadd.f32 0.0, %v225
    %227 = vmatmul.f32.gmra.mxu0 %v142
    %v228 = vpop.f32.mrf.mxu0
    %v229 = vadd.f32 0.0, %v228
    %230 = vmatmul.f32.gmra.mxu0 %v144
    %v231 = vpop.f32.mrf.mxu0
    %v232 = vadd.f32 0.0, %v231
    %233 = vmatmul.f32.gmra.mxu0 %v146
    %v234 = vpop.f32.mrf.mxu0
    %v235 = vadd.f32 0.0, %v234
    %236 = vmatmul.f32.gmra.mxu0 %v148
    %v237 = vpop.f32.mrf.mxu0
    %v238 = vadd.f32 0.0, %v237
    %239 = vmatmul.f32.gmra.mxu0 %v150
    %v240 = vpop.f32.mrf.mxu0
    %v241 = vadd.f32 0.0, %v240
    %242 = vmatmul.f32.gmra.mxu0 %v152
    %v243 = vpop.f32.mrf.mxu0
    %v244 = vadd.f32 0.0, %v243
    %245 = vmatmul.f32.gmra.mxu0 %v154
    %v246 = vpop.f32.mrf.mxu0
    %v247 = vadd.f32 0.0, %v246
    %248 = vmatmul.f32.gmra.mxu0 %v156
    %v249 = vpop.f32.mrf.mxu0
    %v250 = vadd.f32 0.0, %v249
    %251 = vmatmul.f32.gmra.mxu0 %v158
    %v252 = vpop.f32.mrf.mxu0
    %v253 = vadd.f32 0.0, %v252
    %254 = vmatmul.f32.gmra.mxu0 %v160
    %v255 = vpop.f32.mrf.mxu0
    %v256 = vadd.f32 0.0, %v255
    %257 = vmatmul.f32.gmra.mxu0 %v162
    %v258 = vpop.f32.mrf.mxu0
    %v259 = vadd.f32 0.0, %v258
    %260 = vmatmul.f32.gmra.mxu0 %v164
    %v261 = vpop.f32.mrf.mxu0
    %v262 = vadd.f32 0.0, %v261
    %263 = vmatmul.f32.gmra.mxu0 %v166
    %v264 = vpop.f32.mrf.mxu0
    %v265 = vadd.f32 0.0, %v264
    %266 = vmatmul.f32.gmra.mxu0 %v168
    %v267 = vpop.f32.mrf.mxu0
    %v268 = vadd.f32 0.0, %v267
    %269 = vmatmul.f32.gmra.mxu0 %v170
    %v270 = vpop.f32.mrf.mxu0
    %v271 = vadd.f32 0.0, %v270
    %272 = vmatmul.f32.gmra.mxu0 %v172
    %v273 = vpop.f32.mrf.mxu0
    %v274 = vadd.f32 0.0, %v273
    %275 = vmatmul.f32.gmra.mxu0 %v174
    %v276 = vpop.f32.mrf.mxu0
    %v277 = vadd.f32 0.0, %v276
    %278 = vmatmul.f32.gmra.mxu0 %v176
    %v279 = vpop.f32.mrf.mxu0
    %v280 = vadd.f32 0.0, %v279
    %281 = vmatmul.f32.gmra.mxu0 %v178
    %v282 = vpop.f32.mrf.mxu0
    %v283 = vadd.f32 0.0, %v282
    %284 = vmatmul.f32.gmra.mxu0 %v180
    %v285 = vpop.f32.mrf.mxu0
    %v286 = vadd.f32 0.0, %v285
    %287 = vmatmul.f32.gmra.mxu0 %v182
    %v288 = vpop.f32.mrf.mxu0
    %v289 = vadd.f32 0.0, %v288
    %290 = vmatmul.f32.gmra.mxu0 %v184
    %v291 = vpop.f32.mrf.mxu0
    %v292 = vadd.f32 0.0, %v291
    %293 = vmatmul.f32.gmra.mxu0 %v186
    %v294 = vpop.f32.mrf.mxu0
    %v295 = vadd.f32 0.0, %v294
    %296 = vmatmul.f32.gmra.mxu0 %v188
    %v297 = vpop.f32.mrf.mxu0
    %v298 = vadd.f32 0.0, %v297
    %299 = vmatmul.f32.gmra.mxu0 %v190
    %v300 = vpop.f32.mrf.mxu0
    %v301 = vadd.f32 0.0, %v300
    %302 = vmatmul.f32.gmra.mxu0 %v192
    %v303 = vpop.f32.mrf.mxu0
    %v304 = vadd.f32 0.0, %v303
    %305 = vmatmul.f32.gmra.mxu0 %v194
    %v306 = vpop.f32.mrf.mxu0
    %v307 = vadd.f32 0.0, %v306
    %308 = vdwg.mxu0
    %309 = vmatpush.msra.mxu0 %v99
    %310 = vmatpush.msra.mxu0 %v98
    %311 = vmatpush.msra.mxu0 %v97
    %312 = vmatpush.msra.mxu0 %v96
    %313 = vmatpush.msra.mxu0 %v95
    %314 = vmatpush.msra.mxu0 %v94
    %315 = vmatpush.msra.mxu0 %v93
    %316 = vmatpush.msra.mxu0 %v92
    %317 = vmatpush.msra.mxu0 %v91
    %318 = vmatpush.msra.mxu0 %v90
    %319 = vmatpush.msra.mxu0 %v89
    %320 = vmatpush.msra.mxu0 %v88
    %321 = vmatpush.msra.mxu0 %v87
    %322 = vmatpush.msra.mxu0 %v86
    %323 = vmatpush.msra.mxu0 %v85
    %324 = vmatpush.msra.mxu0 %v84
    %325 = vmatmul.f32.gmra.mxu0 %v133
    %v326 = vpop.f32.mrf.mxu0
    %v327 = vadd.f32 %v214, %v326
    %328 = vmatmul.f32.gmra.mxu0 %v135
    %v329 = vpop.f32.mrf.mxu0
    %v330 = vadd.f32 %v217, %v329
    %331 = vmatmul.f32.gmra.mxu0 %v137
    %v332 = vpop.f32.mrf.mxu0
    %v333 = vadd.f32 %v220, %v332
    %334 = vmatmul.f32.gmra.mxu0 %v139
    %v335 = vpop.f32.mrf.mxu0
    %v336 = vadd.f32 %v223, %v335
    %337 = vmatmul.f32.gmra.mxu0 %v141
    %v338 = vpop.f32.mrf.mxu0
    %v339 = vadd.f32 %v226, %v338
    %340 = vmatmul.f32.gmra.mxu0 %v143
    %v341 = vpop.f32.mrf.mxu0
    %v342 = vadd.f32 %v229, %v341
    %343 = vmatmul.f32.gmra.mxu0 %v145
    %v344 = vpop.f32.mrf.mxu0
    %v345 = vadd.f32 %v232, %v344
    %346 = vmatmul.f32.gmra.mxu0 %v147
    %v347 = vpop.f32.mrf.mxu0
    %v348 = vadd.f32 %v235, %v347
    %349 = vmatmul.f32.gmra.mxu0 %v149
    %v350 = vpop.f32.mrf.mxu0
    %v351 = vadd.f32 %v238, %v350
    %352 = vmatmul.f32.gmra.mxu0 %v151
    %v353 = vpop.f32.mrf.mxu0
    %v354 = vadd.f32 %v241, %v353
    %355 = vmatmul.f32.gmra.mxu0 %v153
    %v356 = vpop.f32.mrf.mxu0
    %v357 = vadd.f32 %v244, %v356
    %358 = vmatmul.f32.gmra.mxu0 %v155
    %v359 = vpop.f32.mrf.mxu0
    %v360 = vadd.f32 %v247, %v359
    %361 = vmatmul.f32.gmra.mxu0 %v157
    %v362 = vpop.f32.mrf.mxu0
    %v363 = vadd.f32 %v250, %v362
    %364 = vmatmul.f32.gmra.mxu0 %v159
    %v365 = vpop.f32.mrf.mxu0
    %v366 = vadd.f32 %v253, %v365
    %367 = vmatmul.f32.gmra.mxu0 %v161
    %v368 = vpop.f32.mrf.mxu0
    %v369 = vadd.f32 %v256, %v368
    %370 = vmatmul.f32.gmra.mxu0 %v163
    %v371 = vpop.f32.mrf.mxu0
    %v372 = vadd.f32 %v259, %v371
    %373 = vmatmul.f32.gmra.mxu0 %v165
    %v374 = vpop.f32.mrf.mxu0
    %v375 = vadd.f32 %v262, %v374
    %376 = vmatmul.f32.gmra.mxu0 %v167
    %v377 = vpop.f32.mrf.mxu0
    %v378 = vadd.f32 %v265, %v377
    %379 = vmatmul.f32.gmra.mxu0 %v169
    %v380 = vpop.f32.mrf.mxu0
    %v381 = vadd.f32 %v268, %v380
    %382 = vmatmul.f32.gmra.mxu0 %v171
    %v383 = vpop.f32.mrf.mxu0
    %v384 = vadd.f32 %v271, %v383
    %385 = vmatmul.f32.gmra.mxu0 %v173
    %v386 = vpop.f32.mrf.mxu0
    %v387 = vadd.f32 %v274, %v386
    %388 = vmatmul.f32.gmra.mxu0 %v175
    %v389 = vpop.f32.mrf.mxu0
    %v390 = vadd.f32 %v277, %v389
    %391 = vmatmul.f32.gmra.mxu0 %v177
    %v392 = vpop.f32.mrf.mxu0
    %v393 = vadd.f32 %v280, %v392
    %394 = vmatmul.f32.gmra.mxu0 %v179
    %v395 = vpop.f32.mrf.mxu0
    %v396 = vadd.f32 %v283, %v395
    %397 = vmatmul.f32.gmra.mxu0 %v181
    %v398 = vpop.f32.mrf.mxu0
    %v399 = vadd.f32 %v286, %v398
    %400 = vmatmul.f32.gmra.mxu0 %v183
    %v401 = vpop.f32.mrf.mxu0
    %v402 = vadd.f32 %v289, %v401
    %403 = vmatmul.f32.gmra.mxu0 %v185
    %v404 = vpop.f32.mrf.mxu0
    %v405 = vadd.f32 %v292, %v404
    %406 = vmatmul.f32.gmra.mxu0 %v187
    %v407 = vpop.f32.mrf.mxu0
    %v408 = vadd.f32 %v295, %v407
    %409 = vmatmul.f32.gmra.mxu0 %v189
    %v410 = vpop.f32.mrf.mxu0
    %v411 = vadd.f32 %v298, %v410
    %412 = vmatmul.f32.gmra.mxu0 %v191
    %v413 = vpop.f32.mrf.mxu0
    %v414 = vadd.f32 %v301, %v413
    %415 = vmatmul.f32.gmra.mxu0 %v193
    %v416 = vpop.f32.mrf.mxu0
    %v417 = vadd.f32 %v304, %v416
    %418 = vmatmul.f32.gmra.mxu0 %v195
    %v419 = vpop.f32.mrf.mxu0
    %v420 = vadd.f32 %v307, %v419
    %421 = vdwg.mxu0
    %v422 = vadd.f32 %v100, %v327
    %v423 = vadd.f32 %v101, %v330
    %v424 = vadd.f32 %v102, %v333
    %v425 = vadd.f32 %v103, %v336
    %v426 = vadd.f32 %v104, %v339
    %v427 = vadd.f32 %v105, %v342
    %v428 = vadd.f32 %v106, %v345
    %v429 = vadd.f32 %v107, %v348
    %v430 = vadd.f32 %v108, %v351
    %v431 = vadd.f32 %v109, %v354
    %v432 = vadd.f32 %v110, %v357
    %v433 = vadd.f32 %v111, %v360
    %v434 = vadd.f32 %v112, %v363
    %v435 = vadd.f32 %v113, %v366
    %v436 = vadd.f32 %v114, %v369
    %v437 = vadd.f32 %v115, %v372
    %v438 = vadd.f32 %v116, %v375
    %v439 = vadd.f32 %v117, %v378
    %v440 = vadd.f32 %v118, %v381
    %v441 = vadd.f32 %v119, %v384
    %v442 = vadd.f32 %v120, %v387
    %v443 = vadd.f32 %v121, %v390
    %v444 = vadd.f32 %v122, %v393
    %v445 = vadd.f32 %v123, %v396
    %v446 = vadd.f32 %v124, %v399
    %v447 = vadd.f32 %v125, %v402
    %v448 = vadd.f32 %v126, %v405
    %v449 = vadd.f32 %v127, %v408
    %v450 = vadd.f32 %v128, %v411
    %v451 = vadd.f32 %v129, %v414
    %v452 = vadd.f32 %v130, %v417
    %v453 = vadd.f32 %v131, %v420
    %454 = vst [vmem:[#allocation2] sm:$0xff] %v422
    %455 = vst [vmem:[#allocation2 + $0x8] sm:$0xff] %v423
    %456 = vst [vmem:[#allocation2 + $0x10] sm:$0xff] %v424
    %457 = vst [vmem:[#allocation2 + $0x18] sm:$0xff] %v425
    %458 = vst [vmem:[#allocation2 + $0x20] sm:$0xff] %v426
    %459 = vst [vmem:[#allocation2 + $0x28] sm:$0xff] %v427
    %460 = vst [vmem:[#allocation2 + $0x30] sm:$0xff] %v428
    %461 = vst [vmem:[#allocation2 + $0x38] sm:$0xff] %v429
    %462 = vst [vmem:[#allocation2 + $0x40] sm:$0xff] %v430
    %463 = vst [vmem:[#allocation2 + $0x48] sm:$0xff] %v431
    %464 = vst [vmem:[#allocation2 + $0x50] sm:$0xff] %v432
    %465 = vst [vmem:[#allocation2 + $0x58] sm:$0xff] %v433
    %466 = vst [vmem:[#allocation2 + $0x60] sm:$0xff] %v434
    %467 = vst [vmem:[#allocation2 + $0x68] sm:$0xff] %v435
    %468 = vst [vmem:[#allocation2 + $0x70] sm:$0xff] %v436
    %469 = vst [vmem:[#allocation2 + $0x78] sm:$0xff] %v437
    %470 = vst [vmem:[#allocation2 + $0x80] sm:$0xff] %v438
    %471 = vst [vmem:[#allocation2 + $0x88] sm:$0xff] %v439
    %472 = vst [vmem:[#allocation2 + $0x90] sm:$0xff] %v440
    %473 = vst [vmem:[#allocation2 + $0x98] sm:$0xff] %v441
    %474 = vst [vmem:[#allocation2 + $0xa0] sm:$0xff] %v442
    %475 = vst [vmem:[#allocation2 + $0xa8] sm:$0xff] %v443
    %476 = vst [vmem:[#allocation2 + $0xb0] sm:$0xff] %v444
    %477 = vst [vmem:[#allocation2 + $0xb8] sm:$0xff] %v445
    %478 = vst [vmem:[#allocation2 + $0xc0] sm:$0xff] %v446
    %479 = vst [vmem:[#allocation2 + $0xc8] sm:$0xff] %v447
    %480 = vst [vmem:[#allocation2 + $0xd0] sm:$0xff] %v448
    %481 = vst [vmem:[#allocation2 + $0xd8] sm:$0xff] %v449
    %482 = vst [vmem:[#allocation2 + $0xe0] sm:$0xff] %v450
    %483 = vst [vmem:[#allocation2 + $0xe8] sm:$0xff] %v451
    %484 = vst [vmem:[#allocation2 + $0xf0] sm:$0xff] %v452
    %485 = vst [vmem:[#allocation2 + $0xf8] sm:$0xff] %v453
    // Predicated region
    $region22: #{pairnorm_forward.7} parent=1 // pred_check
      %p486 = pneg %p30
    $region23: #{pairnorm_forward.7} parent=1 // pred_check_branch
      %488 = sbr.rel (%p486) target = $region25
    $region24: #{pairnorm_forward.7} parent=1 // pred_region
      %v489 = vld [vmem:[#allocation2] sm:$0xff]
      %v490 = vld [vmem:[#allocation2 + $0x8] sm:$0xff]
      %v491 = vld [vmem:[#allocation2 + $0x10] sm:$0xff]
      %v492 = vld [vmem:[#allocation2 + $0x18] sm:$0xff]
      %v493 = vld [vmem:[#allocation2 + $0x20] sm:$0xff]
      %v494 = vld [vmem:[#allocation2 + $0x28] sm:$0xff]
      %v495 = vld [vmem:[#allocation2 + $0x30] sm:$0xff]
      %v496 = vld [vmem:[#allocation2 + $0x38] sm:$0xff]
      %v497 = vld [vmem:[#allocation2 + $0x40] sm:$0xff]
      %v498 = vld [vmem:[#allocation2 + $0x48] sm:$0xff]
      %v499 = vld [vmem:[#allocation2 + $0x50] sm:$0xff]
      %v500 = vld [vmem:[#allocation2 + $0x58] sm:$0xff]
      %v501 = vld [vmem:[#allocation2 + $0x60] sm:$0xff]
      %v502 = vld [vmem:[#allocation2 + $0x68] sm:$0xff]
      %v503 = vld [vmem:[#allocation2 + $0x70] sm:$0xff]
      %v504 = vld [vmem:[#allocation2 + $0x78] sm:$0xff]
      %v505 = vld [vmem:[#allocation2 + $0x80] sm:$0xff]
      %v506 = vld [vmem:[#allocation2 + $0x88] sm:$0xff]
      %v507 = vld [vmem:[#allocation2 + $0x90] sm:$0xff]
      %v508 = vld [vmem:[#allocation2 + $0x98] sm:$0xff]
      %v509 = vld [vmem:[#allocation2 + $0xa0] sm:$0xff]
      %v510 = vld [vmem:[#allocation2 + $0xa8] sm:$0xff]
      %v511 = vld [vmem:[#allocation2 + $0xb0] sm:$0xff]
      %v512 = vld [vmem:[#allocation2 + $0xb8] sm:$0xff]
      %v513 = vld [vmem:[#allocation2 + $0xc0] sm:$0xff]
      %v514 = vld [vmem:[#allocation2 + $0xc8] sm:$0xff]
      %v515 = vld [vmem:[#allocation2 + $0xd0] sm:$0xff]
      %v516 = vld [vmem:[#allocation2 + $0xd8] sm:$0xff]
      %v517 = vld [vmem:[#allocation2 + $0xe0] sm:$0xff]
      %v518 = vld [vmem:[#allocation2 + $0xe8] sm:$0xff]
      %v519 = vld [vmem:[#allocation2 + $0xf0] sm:$0xff]
      %v520 = vld [vmem:[#allocation2 + $0xf8] sm:$0xff]
      %v521 = vld [vmem:[%s2] sm:$0x1]
      %v523 = vperm.slane %v521, 0
      %v525 = vadd.f32 %v489, %v523
      %v526 = vadd.f32 %v490, %v523
      %v527 = vadd.f32 %v491, %v523
      %v528 = vadd.f32 %v492, %v523
      %v529 = vadd.f32 %v493, %v523
      %v530 = vadd.f32 %v494, %v523
      %v531 = vadd.f32 %v495, %v523
      %v532 = vadd.f32 %v496, %v523
      %v533 = vadd.f32 %v497, %v523
      %v534 = vadd.f32 %v498, %v523
      %v535 = vadd.f32 %v499, %v523
      %v536 = vadd.f32 %v500, %v523
      %v537 = vadd.f32 %v501, %v523
      %v538 = vadd.f32 %v502, %v523
      %v539 = vadd.f32 %v503, %v523
      %v540 = vadd.f32 %v504, %v523
      %v541 = vadd.f32 %v505, %v523
      %v542 = vadd.f32 %v506, %v523
      %v543 = vadd.f32 %v507, %v523
      %v544 = vadd.f32 %v508, %v523
      %v545 = vadd.f32 %v509, %v523
      %v546 = vadd.f32 %v510, %v523
      %v547 = vadd.f32 %v511, %v523
      %v548 = vadd.f32 %v512, %v523
      %v549 = vadd.f32 %v513, %v523
      %v550 = vadd.f32 %v514, %v523
      %v551 = vadd.f32 %v515, %v523
      %v552 = vadd.f32 %v516, %v523
      %v553 = vadd.f32 %v517, %v523
      %v554 = vadd.f32 %v518, %v523
      %v555 = vadd.f32 %v519, %v523
      %v556 = vadd.f32 %v520, %v523
      %v557 = vlaneseq
      %v558 = vand.u32 %v557, 127
      %vm559 = vcmp.lt.s32.totalorder %v558, 8
      %v560 = vsel %vm559, %v525, -inf
      %v561 = vsel %vm559, %v526, -inf
      %v562 = vsel %vm559, %v527, -inf
      %v563 = vsel %vm559, %v528, -inf
      %v564 = vsel %vm559, %v529, -inf
      %v565 = vsel %vm559, %v530, -inf
      %v566 = vsel %vm559, %v531, -inf
      %v567 = vsel %vm559, %v532, -inf
      %v568 = vsel %vm559, %v533, -inf
      %v569 = vsel %vm559, %v534, -inf
      %v570 = vsel %vm559, %v535, -inf
      %v571 = vsel %vm559, %v536, -inf
      %v572 = vsel %vm559, %v537, -inf
      %v573 = vsel %vm559, %v538, -inf
      %v574 = vsel %vm559, %v539, -inf
      %v575 = vsel %vm559, %v540, -inf
      %v576 = vsel %vm559, %v541, -inf
      %v577 = vsel %vm559, %v542, -inf
      %v578 = vsel %vm559, %v543, -inf
      %v579 = vsel %vm559, %v544, -inf
      %v580 = vsel %vm559, %v545, -inf
      %v581 = vsel %vm559, %v546, -inf
      %v582 = vsel %vm559, %v547, -inf
      %v583 = vsel %vm559, %v548, -inf
      %v584 = vsel %vm559, %v549, -inf
      %v585 = vsel %vm559, %v550, -inf
      %v586 = vsel %vm559, %v551, -inf
      %v587 = vsel %vm559, %v552, -inf
      %v588 = vsel %vm559, %v553, -inf
      %v589 = vsel %vm559, %v554, -inf
      %v590 = vsel %vm559, %v555, -inf
      %v591 = vsel %vm559, %v556, -inf
      %592 = vmax.xlane.f32.xlu0 %v560
      %v593 = vpop.xlane.xlu0 %592
      %594 = vmax.xlane.f32.xlu0 %v561
      %v595 = vpop.xlane.xlu0 %594
      %596 = vmax.xlane.f32.xlu0 %v562
      %v597 = vpop.xlane.xlu0 %596
      %598 = vmax.xlane.f32.xlu0 %v563
      %v599 = vpop.xlane.xlu0 %598
      %600 = vmax.xlane.f32.xlu0 %v564
      %v601 = vpop.xlane.xlu0 %600
      %602 = vmax.xlane.f32.xlu0 %v565
      %v603 = vpop.xlane.xlu0 %602
      %604 = vmax.xlane.f32.xlu0 %v566
      %v605 = vpop.xlane.xlu0 %604
      %606 = vmax.xlane.f32.xlu0 %v567
      %v607 = vpop.xlane.xlu0 %606
      %608 = vmax.xlane.f32.xlu0 %v568
      %v609 = vpop.xlane.xlu0 %608
      %610 = vmax.xlane.f32.xlu0 %v569
      %v611 = vpop.xlane.xlu0 %610
      %612 = vmax.xlane.f32.xlu0 %v570
      %v613 = vpop.xlane.xlu0 %612
      %614 = vmax.xlane.f32.xlu0 %v571
      %v615 = vpop.xlane.xlu0 %614
      %616 = vmax.xlane.f32.xlu0 %v572
      %v617 = vpop.xlane.xlu0 %616
      %618 = vmax.xlane.f32.xlu0 %v573
      %v619 = vpop.xlane.xlu0 %618
      %620 = vmax.xlane.f32.xlu0 %v574
      %v621 = vpop.xlane.xlu0 %620
      %622 = vmax.xlane.f32.xlu0 %v575
      %v623 = vpop.xlane.xlu0 %622
      %624 = vmax.xlane.f32.xlu0 %v576
      %v625 = vpop.xlane.xlu0 %624
      %626 = vmax.xlane.f32.xlu0 %v577
      %v627 = vpop.xlane.xlu0 %626
      %628 = vmax.xlane.f32.xlu0 %v578
      %v629 = vpop.xlane.xlu0 %628
      %630 = vmax.xlane.f32.xlu0 %v579
      %v631 = vpop.xlane.xlu0 %630
      %632 = vmax.xlane.f32.xlu0 %v580
      %v633 = vpop.xlane.xlu0 %632
      %634 = vmax.xlane.f32.xlu0 %v581
      %v635 = vpop.xlane.xlu0 %634
      %636 = vmax.xlane.f32.xlu0 %v582
      %v637 = vpop.xlane.xlu0 %636
      %638 = vmax.xlane.f32.xlu0 %v583
      %v639 = vpop.xlane.xlu0 %638
      %640 = vmax.xlane.f32.xlu0 %v584
      %v641 = vpop.xlane.xlu0 %640
      %642 = vmax.xlane.f32.xlu0 %v585
      %v643 = vpop.xlane.xlu0 %642
      %644 = vmax.xlane.f32.xlu0 %v586
      %v645 = vpop.xlane.xlu0 %644
      %646 = vmax.xlane.f32.xlu0 %v587
      %v647 = vpop.xlane.xlu0 %646
      %648 = vmax.xlane.f32.xlu0 %v588
      %v649 = vpop.xlane.xlu0 %648
      %650 = vmax.xlane.f32.xlu0 %v589
      %v651 = vpop.xlane.xlu0 %650
      %652 = vmax.xlane.f32.xlu0 %v590
      %v653 = vpop.xlane.xlu0 %652
      %654 = vmax.xlane.f32.xlu0 %v591
      %v655 = vpop.xlane.xlu0 %654
      %v656 = vsub.f32 %v560, %v593
      %v657 = vsub.f32 %v561, %v595
      %v658 = vsub.f32 %v562, %v597
      %v659 = vsub.f32 %v563, %v599
      %v660 = vsub.f32 %v564, %v601
      %v661 = vsub.f32 %v565, %v603
      %v662 = vsub.f32 %v566, %v605
      %v663 = vsub.f32 %v567, %v607
      %v664 = vsub.f32 %v568, %v609
      %v665 = vsub.f32 %v569, %v611
      %v666 = vsub.f32 %v570, %v613
      %v667 = vsub.f32 %v571, %v615
      %v668 = vsub.f32 %v572, %v617
      %v669 = vsub.f32 %v573, %v619
      %v670 = vsub.f32 %v574, %v621
      %v671 = vsub.f32 %v575, %v623
      %v672 = vsub.f32 %v576, %v625
      %v673 = vsub.f32 %v577, %v627
      %v674 = vsub.f32 %v578, %v629
      %v675 = vsub.f32 %v579, %v631
      %v676 = vsub.f32 %v580, %v633
      %v677 = vsub.f32 %v581, %v635
      %v678 = vsub.f32 %v582, %v637
      %v679 = vsub.f32 %v583, %v639
      %v680 = vsub.f32 %v584, %v641
      %v681 = vsub.f32 %v585, %v643
      %v682 = vsub.f32 %v586, %v645
      %v683 = vsub.f32 %v587, %v647
      %v684 = vsub.f32 %v588, %v649
      %v685 = vsub.f32 %v589, %v651
      %v686 = vsub.f32 %v590, %v653
      %v687 = vsub.f32 %v591, %v655
      %v688 = vmul.f32 %v656, 1.442695
      %v689 = vpow.pop %v688
      %v690 = vmul.f32 %v657, 1.442695
      %v691 = vpow.pop %v690
      %v692 = vmul.f32 %v658, 1.442695
      %v693 = vpow.pop %v692
      %v694 = vmul.f32 %v659, 1.442695
      %v695 = vpow.pop %v694
      %v696 = vmul.f32 %v660, 1.442695
      %v697 = vpow.pop %v696
      %v698 = vmul.f32 %v661, 1.442695
      %v699 = vpow.pop %v698
      %v700 = vmul.f32 %v662, 1.442695
      %v701 = vpow.pop %v700
      %v702 = vmul.f32 %v663, 1.442695
      %v703 = vpow.pop %v702
      %v704 = vmul.f32 %v664, 1.442695
      %v705 = vpow.pop %v704
      %v706 = vmul.f32 %v665, 1.442695
      %v707 = vpow.pop %v706
      %v708 = vmul.f32 %v666, 1.442695
      %v709 = vpow.pop %v708
      %v710 = vmul.f32 %v667, 1.442695
      %v711 = vpow.pop %v710
      %v712 = vmul.f32 %v668, 1.442695
      %v713 = vpow.pop %v712
      %v714 = vmul.f32 %v669, 1.442695
      %v715 = vpow.pop %v714
      %v716 = vmul.f32 %v670, 1.442695
      %v717 = vpow.pop %v716
      %v718 = vmul.f32 %v671, 1.442695
      %v719 = vpow.pop %v718
      %v720 = vmul.f32 %v672, 1.442695
      %v721 = vpow.pop %v720
      %v722 = vmul.f32 %v673, 1.442695
      %v723 = vpow.pop %v722
      %v724 = vmul.f32 %v674, 1.442695
      %v725 = vpow.pop %v724
      %v726 = vmul.f32 %v675, 1.442695
      %v727 = vpow.pop %v726
      %v728 = vmul.f32 %v676, 1.442695
      %v729 = vpow.pop %v728
      %v730 = vmul.f32 %v677, 1.442695
      %v731 = vpow.pop %v730
      %v732 = vmul.f32 %v678, 1.442695
      %v733 = vpow.pop %v732
      %v734 = vmul.f32 %v679, 1.442695
      %v735 = vpow.pop %v734
      %v736 = vmul.f32 %v680, 1.442695
      %v737 = vpow.pop %v736
      %v738 = vmul.f32 %v681, 1.442695
      %v739 = vpow.pop %v738
      %v740 = vmul.f32 %v682, 1.442695
      %v741 = vpow.pop %v740
      %v742 = vmul.f32 %v683, 1.442695
      %v743 = vpow.pop %v742
      %v744 = vmul.f32 %v684, 1.442695
      %v745 = vpow.pop %v744
      %v746 = vmul.f32 %v685, 1.442695
      %v747 = vpow.pop %v746
      %v748 = vmul.f32 %v686, 1.442695
      %v749 = vpow.pop %v748
      %v750 = vmul.f32 %v687, 1.442695
      %v751 = vpow.pop %v750
      %v752 = vsel %vm559, %v689, 0.0
      %v753 = vsel %vm559, %v691, 0.0
      %v754 = vsel %vm559, %v693, 0.0
      %v755 = vsel %vm559, %v695, 0.0
      %v756 = vsel %vm559, %v697, 0.0
      %v757 = vsel %vm559, %v699, 0.0
      %v758 = vsel %vm559, %v701, 0.0
      %v759 = vsel %vm559, %v703, 0.0
      %v760 = vsel %vm559, %v705, 0.0
      %v761 = vsel %vm559, %v707, 0.0
      %v762 = vsel %vm559, %v709, 0.0
      %v763 = vsel %vm559, %v711, 0.0
      %v764 = vsel %vm559, %v713, 0.0
      %v765 = vsel %vm559, %v715, 0.0
      %v766 = vsel %vm559, %v717, 0.0
      %v767 = vsel %vm559, %v719, 0.0
      %v768 = vsel %vm559, %v721, 0.0
      %v769 = vsel %vm559, %v723, 0.0
      %v770 = vsel %vm559, %v725, 0.0
      %v771 = vsel %vm559, %v727, 0.0
      %v772 = vsel %vm559, %v729, 0.0
      %v773 = vsel %vm559, %v731, 0.0
      %v774 = vsel %vm559, %v733, 0.0
      %v775 = vsel %vm559, %v735, 0.0
      %v776 = vsel %vm559, %v737, 0.0
      %v777 = vsel %vm559, %v739, 0.0
      %v778 = vsel %vm559, %v741, 0.0
      %v779 = vsel %vm559, %v743, 0.0
      %v780 = vsel %vm559, %v745, 0.0
      %v781 = vsel %vm559, %v747, 0.0
      %v782 = vsel %vm559, %v749, 0.0
      %v783 = vsel %vm559, %v751, 0.0
      %784 = vadd.xlane.f32.xlu0 %v752
      %v785 = vpop.xlane.xlu0 %784
      %786 = vadd.xlane.f32.xlu0 %v753
      %v787 = vpop.xlane.xlu0 %786
      %788 = vadd.xlane.f32.xlu0 %v754
      %v789 = vpop.xlane.xlu0 %788
      %790 = vadd.xlane.f32.xlu0 %v755
      %v791 = vpop.xlane.xlu0 %790
      %792 = vadd.xlane.f32.xlu0 %v756
      %v793 = vpop.xlane.xlu0 %792
      %794 = vadd.xlane.f32.xlu0 %v757
      %v795 = vpop.xlane.xlu0 %794
      %796 = vadd.xlane.f32.xlu0 %v758
      %v797 = vpop.xlane.xlu0 %796
      %798 = vadd.xlane.f32.xlu0 %v759
      %v799 = vpop.xlane.xlu0 %798
      %800 = vadd.xlane.f32.xlu0 %v760
      %v801 = vpop.xlane.xlu0 %800
      %802 = vadd.xlane.f32.xlu0 %v761
      %v803 = vpop.xlane.xlu0 %802
      %804 = vadd.xlane.f32.xlu0 %v762
      %v805 = vpop.xlane.xlu0 %804
      %806 = vadd.xlane.f32.xlu0 %v763
      %v807 = vpop.xlane.xlu0 %806
      %808 = vadd.xlane.f32.xlu0 %v764
      %v809 = vpop.xlane.xlu0 %808
      %810 = vadd.xlane.f32.xlu0 %v765
      %v811 = vpop.xlane.xlu0 %810
      %812 = vadd.xlane.f32.xlu0 %v766
      %v813 = vpop.xlane.xlu0 %812
      %814 = vadd.xlane.f32.xlu0 %v767
      %v815 = vpop.xlane.xlu0 %814
      %816 = vadd.xlane.f32.xlu0 %v768
      %v817 = vpop.xlane.xlu0 %816
      %818 = vadd.xlane.f32.xlu0 %v769
      %v819 = vpop.xlane.xlu0 %818
      %820 = vadd.xlane.f32.xlu0 %v770
      %v821 = vpop.xlane.xlu0 %820
      %822 = vadd.xlane.f32.xlu0 %v771
      %v823 = vpop.xlane.xlu0 %822
      %824 = vadd.xlane.f32.xlu0 %v772
      %v825 = vpop.xlane.xlu0 %824
      %826 = vadd.xlane.f32.xlu0 %v773
      %v827 = vpop.xlane.xlu0 %826
      %828 = vadd.xlane.f32.xlu0 %v774
      %v829 = vpop.xlane.xlu0 %828
      %830 = vadd.xlane.f32.xlu0 %v775
      %v831 = vpop.xlane.xlu0 %830
      %832 = vadd.xlane.f32.xlu0 %v776
      %v833 = vpop.xlane.xlu0 %832
      %834 = vadd.xlane.f32.xlu0 %v777
      %v835 = vpop.xlane.xlu0 %834
      %836 = vadd.xlane.f32.xlu0 %v778
      %v837 = vpop.xlane.xlu0 %836
      %838 = vadd.xlane.f32.xlu0 %v779
      %v839 = vpop.xlane.xlu0 %838
      %840 = vadd.xlane.f32.xlu0 %v780
      %v841 = vpop.xlane.xlu0 %840
      %842 = vadd.xlane.f32.xlu0 %v781
      %v843 = vpop.xlane.xlu0 %842
      %844 = vadd.xlane.f32.xlu0 %v782
      %v845 = vpop.xlane.xlu0 %844
      %846 = vadd.xlane.f32.xlu0 %v783
      %v847 = vpop.xlane.xlu0 %846
      %v848 = vlog2.pop %v785
      %v849 = vmul.f32 %v848, 0.6931472
      %v850 = vlog2.pop %v787
      %v851 = vmul.f32 %v850, 0.6931472
      %v852 = vlog2.pop %v789
      %v853 = vmul.f32 %v852, 0.6931472
      %v854 = vlog2.pop %v791
      %v855 = vmul.f32 %v854, 0.6931472
      %v856 = vlog2.pop %v793
      %v857 = vmul.f32 %v856, 0.6931472
      %v858 = vlog2.pop %v795
      %v859 = vmul.f32 %v858, 0.6931472
      %v860 = vlog2.pop %v797
      %v861 = vmul.f32 %v860, 0.6931472
      %v862 = vlog2.pop %v799
      %v863 = vmul.f32 %v862, 0.6931472
      %v864 = vlog2.pop %v801
      %v865 = vmul.f32 %v864, 0.6931472
      %v866 = vlog2.pop %v803
      %v867 = vmul.f32 %v866, 0.6931472
      %v868 = vlog2.pop %v805
      %v869 = vmul.f32 %v868, 0.6931472
      %v870 = vlog2.pop %v807
      %v871 = vmul.f32 %v870, 0.6931472
      %v872 = vlog2.pop %v809
      %v873 = vmul.f32 %v872, 0.6931472
      %v874 = vlog2.pop %v811
      %v875 = vmul.f32 %v874, 0.6931472
      %v876 = vlog2.pop %v813
      %v877 = vmul.f32 %v876, 0.6931472
      %v878 = vlog2.pop %v815
      %v879 = vmul.f32 %v878, 0.6931472
      %v880 = vlog2.pop %v817
      %v881 = vmul.f32 %v880, 0.6931472
      %v882 = vlog2.pop %v819
      %v883 = vmul.f32 %v882, 0.6931472
      %v884 = vlog2.pop %v821
      %v885 = vmul.f32 %v884, 0.6931472
      %v886 = vlog2.pop %v823
      %v887 = vmul.f32 %v886, 0.6931472
      %v888 = vlog2.pop %v825
      %v889 = vmul.f32 %v888, 0.6931472
      %v890 = vlog2.pop %v827
      %v891 = vmul.f32 %v890, 0.6931472
      %v892 = vlog2.pop %v829
      %v893 = vmul.f32 %v892, 0.6931472
      %v894 = vlog2.pop %v831
      %v895 = vmul.f32 %v894, 0.6931472
      %v896 = vlog2.pop %v833
      %v897 = vmul.f32 %v896, 0.6931472
      %v898 = vlog2.pop %v835
      %v899 = vmul.f32 %v898, 0.6931472
      %v900 = vlog2.pop %v837
      %v901 = vmul.f32 %v900, 0.6931472
      %v902 = vlog2.pop %v839
      %v903 = vmul.f32 %v902, 0.6931472
      %v904 = vlog2.pop %v841
      %v905 = vmul.f32 %v904, 0.6931472
      %v906 = vlog2.pop %v843
      %v907 = vmul.f32 %v906, 0.6931472
      %v908 = vlog2.pop %v845
      %v909 = vmul.f32 %v908, 0.6931472
      %v910 = vlog2.pop %v847
      %v911 = vmul.f32 %v910, 0.6931472
      %v912 = vsub.f32 %v656, %v849
      %v913 = vsub.f32 %v657, %v851
      %v914 = vsub.f32 %v658, %v853
      %v915 = vsub.f32 %v659, %v855
      %v916 = vsub.f32 %v660, %v857
      %v917 = vsub.f32 %v661, %v859
      %v918 = vsub.f32 %v662, %v861
      %v919 = vsub.f32 %v663, %v863
      %v920 = vsub.f32 %v664, %v865
      %v921 = vsub.f32 %v665, %v867
      %v922 = vsub.f32 %v666, %v869
      %v923 = vsub.f32 %v667, %v871
      %v924 = vsub.f32 %v668, %v873
      %v925 = vsub.f32 %v669, %v875
      %v926 = vsub.f32 %v670, %v877
      %v927 = vsub.f32 %v671, %v879
      %v928 = vsub.f32 %v672, %v881
      %v929 = vsub.f32 %v673, %v883
      %v930 = vsub.f32 %v674, %v885
      %v931 = vsub.f32 %v675, %v887
      %v932 = vsub.f32 %v676, %v889
      %v933 = vsub.f32 %v677, %v891
      %v934 = vsub.f32 %v678, %v893
      %v935 = vsub.f32 %v679, %v895
      %v936 = vsub.f32 %v680, %v897
      %v937 = vsub.f32 %v681, %v899
      %v938 = vsub.f32 %v682, %v901
      %v939 = vsub.f32 %v683, %v903
      %v940 = vsub.f32 %v684, %v905
      %v941 = vsub.f32 %v685, %v907
      %v942 = vsub.f32 %v686, %v909
      %v943 = vsub.f32 %v687, %v911
      %944 = vst [vmem:[%s3] sm:$0xff] %v912
      %945 = vst [vmem:[%s3 + $0x8] sm:$0xff] %v913
      %946 = vst [vmem:[%s3 + $0x10] sm:$0xff] %v914
      %947 = vst [vmem:[%s3 + $0x18] sm:$0xff] %v915
      %948 = vst [vmem:[%s3 + $0x20] sm:$0xff] %v916
      %949 = vst [vmem:[%s3 + $0x28] sm:$0xff] %v917
      %950 = vst [vmem:[%s3 + $0x30] sm:$0xff] %v918
      %951 = vst [vmem:[%s3 + $0x38] sm:$0xff] %v919
      %952 = vst [vmem:[%s3 + $0x40] sm:$0xff] %v920
      %953 = vst [vmem:[%s3 + $0x48] sm:$0xff] %v921
      %954 = vst [vmem:[%s3 + $0x50] sm:$0xff] %v922
      %955 = vst [vmem:[%s3 + $0x58] sm:$0xff] %v923
      %956 = vst [vmem:[%s3 + $0x60] sm:$0xff] %v924
      %957 = vst [vmem:[%s3 + $0x68] sm:$0xff] %v925
      %958 = vst [vmem:[%s3 + $0x70] sm:$0xff] %v926
      %959 = vst [vmem:[%s3 + $0x78] sm:$0xff] %v927
      %960 = vst [vmem:[%s3 + $0x80] sm:$0xff] %v928
      %961 = vst [vmem:[%s3 + $0x88] sm:$0xff] %v929
      %962 = vst [vmem:[%s3 + $0x90] sm:$0xff] %v930
      %963 = vst [vmem:[%s3 + $0x98] sm:$0xff] %v931
      %964 = vst [vmem:[%s3 + $0xa0] sm:$0xff] %v932
      %965 = vst [vmem:[%s3 + $0xa8] sm:$0xff] %v933
      %966 = vst [vmem:[%s3 + $0xb0] sm:$0xff] %v934
      %967 = vst [vmem:[%s3 + $0xb8] sm:$0xff] %v935
      %968 = vst [vmem:[%s3 + $0xc0] sm:$0xff] %v936
      %969 = vst [vmem:[%s3 + $0xc8] sm:$0xff] %v937
      %970 = vst [vmem:[%s3 + $0xd0] sm:$0xff] %v938
      %971 = vst [vmem:[%s3 + $0xd8] sm:$0xff] %v939
      %972 = vst [vmem:[%s3 + $0xe0] sm:$0xff] %v940
      %973 = vst [vmem:[%s3 + $0xe8] sm:$0xff] %v941
      %974 = vst [vmem:[%s3 + $0xf0] sm:$0xff] %v942
      %975 = vst [vmem:[%s3 + $0xf8] sm:$0xff] %v943
    $region25: #{pairnorm_forward.7} parent=1 // pred_fallthru
      _
    // Predicated region
    $region26: #{pairnorm_forward.7} parent=1 // pred_check
      _
    $region27: #{pairnorm_forward.7} parent=1 // pred_check_branch
      %977 = sbr.rel (0) target = $region29
    $region28: #{pairnorm_forward.7} parent=1 // pred_region
      _
    $region29: #{pairnorm_forward.7} parent=1 // pred_fallthru
      _
    // Predicated region
    $region30: #{pairnorm_forward.7} parent=1 // pred_check
      _
    $region31: #{pairnorm_forward.7} parent=1 // pred_check_branch
      %979 = sbr.rel (0) target = $region33
    $region32: #{pairnorm_forward.7} parent=1 // pred_region
      _
    $region33: #{pairnorm_forward.7} parent=1 // pred_fallthru
      _
    %980 = vsyncpa [#allocation4], 1

</llo_original>
